<compile_context>
chip_gen: v6e
topology: v6e:2x2x1
jax: 0.10.0
libtpu: 0.0.40
codegen_flags: <defaults>
</compile_context>

<pallas_src>
import numpy as np
import jax
import jax.numpy as jnp
from jax import lax
from jax.experimental import pallas as pl
from jax.experimental.pallas import tpu as pltpu


# ----------------------------- Pallas kernel -------------------------------

def net_kernel(xe_ref, xo_ref, w1_ref, b1_ref, w2_ref, b2_ref,
               wf1_ref, bf1_ref, wf2_ref, bf2_ref, wf3_ref, bf3_ref, o_ref):
    """Full LeNet forward for one batch tile of BLOCK_N samples.

    xe_ref/xo_ref : (R, 128)  R = BLOCK_N*16; row b*16+q = input NHWC row 2q / 2q+1
                               (lanes = w*3 + c, zero-padded 96 -> 128)
    w1/w2         : (640, 256) band-expanded conv weights; slab kh = rows kh*128..+127,
                               lanes [0:128) even pool-col parity, [128:256) odd parity
    wf1           : (640, 128) fc1 weight, PyTorch NCHW flatten folded in (slab per h)
    wf2, wf3      : (128, 128) padded fc weights; biases are (1, 128) padded rows
    o_ref         : (R, 128)   logits at per-sample row 0, lanes 0..9
    """
    f32 = jnp.float32

    def shift_up(y, d):
        # out[r] = y[r + d] (flat).  The d wrapped tail rows only ever land in
        # per-sample pad rows that no later stage reads.
        if d == 0:
            return y
        return jnp.concatenate([y[d:], y[:d]], axis=0)

    def dotk(x, w_ref, k):
        return jnp.dot(x, w_ref[k * 128:(k + 1) * 128, :],
                       preferred_element_type=f32)

    xe = xe_ref[...]          # even input rows  (R, 128)
    xo = xo_ref[...]          # odd  input rows  (R, 128)

    # ---- conv1 + 2x2 maxpool + bias + ReLU -> S1 (R, 128) ----
    # Valid per-sample rows 0..13; lane layout pw*6 + co; lanes 84..127 stay 0.
    a_e = (dotk(xe, w1_ref, 0) + dotk(xo, w1_ref, 1)
           + shift_up(dotk(xe, w1_ref, 2) + dotk(xo, w1_ref, 3), 1)
           + shift_up(dotk(xe, w1_ref, 4), 2))
    a_o = (dotk(xo, w1_ref, 0)
           + shift_up(dotk(xe, w1_ref, 1) + dotk(xo, w1_ref, 2), 1)
           + shift_up(dotk(xe, w1_ref, 3) + dotk(xo, w1_ref, 4), 2))
    m1 = jnp.maximum(a_e, a_o)                      # max over pool-row parity
    m1 = jnp.maximum(m1[:, :128], m1[:, 128:])      # max over pool-col parity (aligned)
    s1 = jnp.maximum(m1 + b1_ref[...], 0.0)

    # ---- conv2 + pool + bias + ReLU -> S2 (R, 128) ----
    # Valid at per-sample rows 0,2,4,6,8; lane layout pw2*16 + co2; lanes 80..127 = 0.
    c2 = dotk(s1, w2_ref, 0)
    for kh in range(1, 5):
        c2 = c2 + shift_up(dotk(s1, w2_ref, kh), kh)
    d2 = jnp.maximum(c2, shift_up(c2, 1))
    d2 = jnp.maximum(d2[:, :128], d2[:, 128:])
    s2 = jnp.maximum(d2 + b2_ref[...], 0.0)

    # ---- fc1 (NCHW flatten folded into wf1) -> valid at per-sample row 0 ----
    f = dotk(s2, wf1_ref, 0)
    for h in range(1, 5):
        f = f + shift_up(dotk(s2, wf1_ref, h), 2 * h)
    h1 = jnp.maximum(f + bf1_ref[...], 0.0)

    # ---- fc2 + fc3 (row-wise; only per-sample row 0 is meaningful — cheaper than an
    # in-kernel strided row gather; the wrapper slices the rest off) ----
    h2 = jnp.maximum(jnp.dot(h1, wf2_ref[...], preferred_element_type=f32)
                     + bf2_ref[...], 0.0)
    o_ref[...] = (jnp.dot(h2, wf3_ref[...], preferred_element_type=f32)
                  + bf3_ref[...])


# --------------------------- parameter preparation --------------------------

def _expand_conv_weight(w_oihw, n_pool_cols):
    """OIHW conv weight -> (5*128, 256) band-expanded, pool-column-parity fused.

    For kernel row kh (slab rows kh*128..+127):
      W[kh*128 + (2*pw + half + kw)*Cin + ci, half*128 + pw*Cout + co] = w[co, ci, kh, kw]
    so (input NHWC row) @ slab gives that row's kh-contribution to the conv output at
    columns 2*pw+half, already laid out as pooled-grid NHWC lanes pw*Cout + co.
    """
    w = np.asarray(w_oihw, np.float32)
    cout, cin, k, _ = w.shape
    W = np.zeros((k, 128, 256), np.float32)
    for kh in range(k):
        for kw in range(k):
            blk = w[:, :, kh, kw].T                       # (cin, cout)
            for half in range(2):                         # pool-column parity
                for pw in range(n_pool_cols):
                    r0 = (2 * pw + half + kw) * cin
                    c0 = half * 128 + pw * cout
                    W[kh, r0:r0 + cin, c0:c0 + cout] = blk
    return jnp.asarray(W.reshape(k * 128, 256))


def _pad2(a, rows, cols):
    out = np.zeros((rows, cols), np.float32)
    out[:a.shape[0], :a.shape[1]] = a
    return out


def prepare_params(p):
    """One-time transform of PyTorch-convention params into the kernel layout."""
    fc1 = np.asarray(p["fc1_w"], np.float32)              # (120, 400); in = c*25 + h*5 + w
    wf1 = fc1.reshape(120, 16, 5, 5).transpose(2, 3, 1, 0).reshape(5, 80, 120)
    wf1p = np.zeros((5, 128, 128), np.float32)
    wf1p[:, :80, :120] = wf1

    def bias_row(v):
        return jnp.asarray(_pad2(np.asarray(v, np.float32)[None, :], 1, 128))

    return {
        "w1": _expand_conv_weight(p["conv1_w"], 14),                        # (640, 256)
        "b1": bias_row(np.tile(np.asarray(p["conv1_b"], np.float32), 14)),  # (1, 128)
        "w2": _expand_conv_weight(p["conv2_w"], 5),                         # (640, 256)
        "b2": bias_row(np.tile(np.asarray(p["conv2_b"], np.float32), 5)),
        "wf1": jnp.asarray(wf1p.reshape(640, 128)),
        "bf1": bias_row(p["fc1_b"]),
        "wf2": jnp.asarray(_pad2(np.asarray(p["fc2_w"], np.float32).T, 128, 128)),
        "bf2": bias_row(p["fc2_b"]),
        "wf3": jnp.asarray(_pad2(np.asarray(p["fc3_w"], np.float32).T, 128, 128)),
        "bf3": bias_row(p["fc3_b"]),
    }


# ------------------------------- entry point --------------------------------

def net_forward(x_nchw, kp, block_n=None):
    N = x_nchw.shape[0]
    if block_n is None:
        block_n = 8 if N <= 16 else 32      # keep grid >= 2 for batch 16 (v7x: 2 TCs)

    # NCHW -> NHWC, rows = H, lanes = W*C (96), zero-padded to 128 lanes.
    x = jnp.transpose(x_nchw.astype(jnp.float32), (0, 2, 3, 1)).reshape(N, 32, 96)
    x = jnp.pad(x, ((0, 0), (0, 0), (0, 32)))
    n_pad = (-N) % block_n
    if n_pad:
        x = jnp.pad(x, ((0, n_pad), (0, 0), (0, 0)))
    n_total = N + n_pad

    # Row-parity split (even/odd H rows), flattened to per-sample 16-row slabs.
    xe = x[:, 0::2, :].reshape(n_total * 16, 128)
    xo = x[:, 1::2, :].reshape(n_total * 16, 128)

    rows = block_n * 16
    grid = (n_total // block_n,)
    names = ["w1", "b1", "w2", "b2", "wf1", "bf1", "wf2", "bf2", "wf3", "bf3"]
    weights = [kp[k] for k in names]

    out = pl.pallas_call(
        net_kernel,
        out_shape=jax.ShapeDtypeStruct((n_total * 16, 128), jnp.float32),
        grid=grid,
        in_specs=([pl.BlockSpec((rows, 128), lambda i: (i, 0)),
                   pl.BlockSpec((rows, 128), lambda i: (i, 0))]
                  + [pl.BlockSpec(w.shape, lambda i: (0, 0)) for w in weights]),
        out_specs=pl.BlockSpec((rows, 128), lambda i: (i, 0)),
        compiler_params=pltpu.CompilerParams(
            dimension_semantics=("parallel",),
            vmem_limit_bytes=32 * 1024 * 1024),
    )(xe, xo, *weights)

    # Extract the valid logits (per-sample row 0, lanes 0..9) — pure XLA, free.
    return out.reshape(n_total, 16, 128)[:N, 0, :10]


# --------------------- deterministic params & reference ---------------------

def init_params(key):
    ks = jax.random.split(key, 10)

    def u(k, shape, fan_in):
        bound = 1.0 / np.sqrt(fan_in)
        return jax.random.uniform(k, shape, jnp.float32, -bound, bound)

    return {
        "conv1_w": u(ks[0], (6, 3, 5, 5), 3 * 25),   # PyTorch OIHW
        "conv1_b": u(ks[1], (6,), 3 * 25),
        "conv2_w": u(ks[2], (16, 6, 5, 5), 6 * 25),
        "conv2_b": u(ks[3], (16,), 6 * 25),
        "fc1_w": u(ks[4], (120, 400), 400),          # PyTorch (out, in)
        "fc1_b": u(ks[5], (120,), 400),
        "fc2_w": u(ks[6], (84, 120), 120),
        "fc2_b": u(ks[7], (84,), 120),
        "fc3_w": u(ks[8], (10, 84), 84),
        "fc3_b": u(ks[9], (10,), 84),
    }


def ref_forward(x, p):
    dn = ("NCHW", "OIHW", "NCHW")
    prec = lax.Precision.HIGHEST

    def conv(a, w, b):
        y = lax.conv_general_dilated(a, w, (1, 1), "VALID",
                                     dimension_numbers=dn, precision=prec)
        return y + b[None, :, None, None]

    def pool(a):
        return lax.reduce_window(a, -jnp.inf, lax.max,
                                 (1, 1, 2, 2), (1, 1, 2, 2), "VALID")

    h = pool(jnp.maximum(conv(x, p["conv1_w"], p["conv1_b"]), 0.0))
    h = pool(jnp.maximum(conv(h, p["conv2_w"], p["conv2_b"]), 0.0))
    h = h.reshape(x.shape[0], -1)
    h = jnp.maximum(jnp.dot(h, p["fc1_w"].T, precision=prec) + p["fc1_b"], 0.0)
    h = jnp.maximum(jnp.dot(h, p["fc2_w"].T, precision=prec) + p["fc2_b"], 0.0)
    return jnp.dot(h, p["fc3_w"].T, precision=prec) + p["fc3_b"]


if __name__ == "__main__":
    key = jax.random.PRNGKey(0)
    kx, kparam = jax.random.split(key)
    # Net requires 32x32 spatial input (16*5*5 flatten); batch 16 -> 2 grid steps of 8.
    x = jax.random.normal(kx, (16, 3, 32, 32), jnp.float32)
    params = init_params(kparam)
    kernel_params = prepare_params(params)

    fwd = jax.jit(net_forward)
    out = jax.block_until_ready(fwd(x, kernel_params))
    assert out.shape == (16, 10), out.shape

    ref = jax.block_until_ready(ref_forward(x, params))
    # Tolerance sized so that possible bf16 multi-pass handling of f32 MXU matmuls on
    # either side still passes, while any layout/indexing bug (O(1) errors) is caught.
    np.testing.assert_allclose(np.asarray(out), np.asarray(ref),
                               rtol=2e-2, atol=2e-2)
    print("KERNEL_OK")
</pallas_src>

<mosaic_0001>
module attributes {stable_mosaic.version = 11 : i64} {
  func.func @net_kernel(%arg0: i32, %arg1: memref<128x128xf32, #tpu.memory_space<vmem>>, %arg2: memref<128x128xf32, #tpu.memory_space<vmem>>, %arg3: memref<640x256xf32, #tpu.memory_space<vmem>>, %arg4: memref<1x128xf32, #tpu.memory_space<vmem>>, %arg5: memref<640x256xf32, #tpu.memory_space<vmem>>, %arg6: memref<1x128xf32, #tpu.memory_space<vmem>>, %arg7: memref<640x128xf32, #tpu.memory_space<vmem>>, %arg8: memref<1x128xf32, #tpu.memory_space<vmem>>, %arg9: memref<128x128xf32, #tpu.memory_space<vmem>>, %arg10: memref<1x128xf32, #tpu.memory_space<vmem>>, %arg11: memref<128x128xf32, #tpu.memory_space<vmem>>, %arg12: memref<1x128xf32, #tpu.memory_space<vmem>>, %arg13: memref<128x128xf32, #tpu.memory_space<vmem>>) attributes {dimension_semantics = [#tpu.dimension_semantics<parallel>], iteration_bounds = array<i64: 2>, scalar_prefetch = 0 : i64, scratch_operands = 0 : i64, tpu.core_type = #tpu.core_type<tc>, window_params = [{transform_indices = @transform_0, window_bounds = array<i64: 128, 128>}, {transform_indices = @transform_1, window_bounds = array<i64: 128, 128>}, {pipeline_mode = #tpu.pipeline_mode<synchronous>, transform_indices = @transform_2, window_bounds = array<i64: 640, 256>}, {pipeline_mode = #tpu.pipeline_mode<synchronous>, transform_indices = @transform_3, window_bounds = array<i64: 1, 128>}, {pipeline_mode = #tpu.pipeline_mode<synchronous>, transform_indices = @transform_4, window_bounds = array<i64: 640, 256>}, {pipeline_mode = #tpu.pipeline_mode<synchronous>, transform_indices = @transform_5, window_bounds = array<i64: 1, 128>}, {pipeline_mode = #tpu.pipeline_mode<synchronous>, transform_indices = @transform_6, window_bounds = array<i64: 640, 128>}, {pipeline_mode = #tpu.pipeline_mode<synchronous>, transform_indices = @transform_7, window_bounds = array<i64: 1, 128>}, {pipeline_mode = #tpu.pipeline_mode<synchronous>, transform_indices = @transform_8, window_bounds = array<i64: 128, 128>}, {pipeline_mode = #tpu.pipeline_mode<synchronous>, transform_indices = @transform_9, window_bounds = array<i64: 1, 128>}, {pipeline_mode = #tpu.pipeline_mode<synchronous>, transform_indices = @transform_10, window_bounds = array<i64: 128, 128>}, {pipeline_mode = #tpu.pipeline_mode<synchronous>, transform_indices = @transform_11, window_bounds = array<i64: 1, 128>}, {transform_indices = @transform_12, window_bounds = array<i64: 128, 128>}]} {
    %c0 = arith.constant 0 : index
    %c0_0 = arith.constant 0 : index
    %0 = vector.load %arg1[%c0, %c0_0] : memref<128x128xf32, #tpu.memory_space<vmem>>, vector<128x128xf32>
    %c0_1 = arith.constant 0 : index
    %c0_2 = arith.constant 0 : index
    %1 = vector.load %arg2[%c0_1, %c0_2] : memref<128x128xf32, #tpu.memory_space<vmem>>, vector<128x128xf32>
    %c0_3 = arith.constant 0 : index
    %c0_4 = arith.constant 0 : index
    %2 = vector.load %arg3[%c0_3, %c0_4] : memref<640x256xf32, #tpu.memory_space<vmem>>, vector<128x256xf32>
    %cst = arith.constant dense<0.000000e+00> : vector<128x256xf32>
    %3 = tpu.matmul %0, %2, %cst {dimension_numbers = #tpu.dot_dimension_numbers<[1], [0], [0], [1], [0, 0, 1, 1], [], []>} : vector<128x128xf32>, vector<128x256xf32>, vector<128x256xf32> -> vector<128x256xf32>
    %c128 = arith.constant 128 : index
    %c0_5 = arith.constant 0 : index
    %4 = vector.load %arg3[%c128, %c0_5] : memref<640x256xf32, #tpu.memory_space<vmem>>, vector<128x256xf32>
    %cst_6 = arith.constant dense<0.000000e+00> : vector<128x256xf32>
    %5 = tpu.matmul %1, %4, %cst_6 {dimension_numbers = #tpu.dot_dimension_numbers<[1], [0], [0], [1], [0, 0, 1, 1], [], []>} : vector<128x128xf32>, vector<128x256xf32>, vector<128x256xf32> -> vector<128x256xf32>
    %6 = arith.addf %3, %5 : vector<128x256xf32>
    %c256 = arith.constant 256 : index
    %c0_7 = arith.constant 0 : index
    %7 = vector.load %arg3[%c256, %c0_7] : memref<640x256xf32, #tpu.memory_space<vmem>>, vector<128x256xf32>
    %cst_8 = arith.constant dense<0.000000e+00> : vector<128x256xf32>
    %8 = tpu.matmul %0, %7, %cst_8 {dimension_numbers = #tpu.dot_dimension_numbers<[1], [0], [0], [1], [0, 0, 1, 1], [], []>} : vector<128x128xf32>, vector<128x256xf32>, vector<128x256xf32> -> vector<128x256xf32>
    %c384 = arith.constant 384 : index
    %c0_9 = arith.constant 0 : index
    %9 = vector.load %arg3[%c384, %c0_9] : memref<640x256xf32, #tpu.memory_space<vmem>>, vector<128x256xf32>
    %cst_10 = arith.constant dense<0.000000e+00> : vector<128x256xf32>
    %10 = tpu.matmul %1, %9, %cst_10 {dimension_numbers = #tpu.dot_dimension_numbers<[1], [0], [0], [1], [0, 0, 1, 1], [], []>} : vector<128x128xf32>, vector<128x256xf32>, vector<128x256xf32> -> vector<128x256xf32>
    %11 = arith.addf %8, %10 : vector<128x256xf32>
    %12 = vector.extract_strided_slice %11 {offsets = [1, 0], sizes = [127, 256], strides = [1, 1]} : vector<128x256xf32> to vector<127x256xf32>
    %13 = vector.extract_strided_slice %11 {offsets = [0, 0], sizes = [1, 256], strides = [1, 1]} : vector<128x256xf32> to vector<1x256xf32>
    %14 = tpu.concatenate %12, %13 in 0 : vector<127x256xf32>, vector<1x256xf32> -> vector<128x256xf32>
    %15 = arith.addf %6, %14 : vector<128x256xf32>
    %c512 = arith.constant 512 : index
    %c0_11 = arith.constant 0 : index
    %16 = vector.load %arg3[%c512, %c0_11] : memref<640x256xf32, #tpu.memory_space<vmem>>, vector<128x256xf32>
    %cst_12 = arith.constant dense<0.000000e+00> : vector<128x256xf32>
    %17 = tpu.matmul %0, %16, %cst_12 {dimension_numbers = #tpu.dot_dimension_numbers<[1], [0], [0], [1], [0, 0, 1, 1], [], []>} : vector<128x128xf32>, vector<128x256xf32>, vector<128x256xf32> -> vector<128x256xf32>
    %18 = vector.extract_strided_slice %17 {offsets = [2, 0], sizes = [126, 256], strides = [1, 1]} : vector<128x256xf32> to vector<126x256xf32>
    %19 = vector.extract_strided_slice %17 {offsets = [0, 0], sizes = [2, 256], strides = [1, 1]} : vector<128x256xf32> to vector<2x256xf32>
    %20 = tpu.concatenate %18, %19 in 0 : vector<126x256xf32>, vector<2x256xf32> -> vector<128x256xf32>
    %21 = arith.addf %15, %20 : vector<128x256xf32>
    %c0_13 = arith.constant 0 : index
    %c0_14 = arith.constant 0 : index
    %22 = vector.load %arg3[%c0_13, %c0_14] : memref<640x256xf32, #tpu.memory_space<vmem>>, vector<128x256xf32>
    %cst_15 = arith.constant dense<0.000000e+00> : vector<128x256xf32>
    %23 = tpu.matmul %1, %22, %cst_15 {dimension_numbers = #tpu.dot_dimension_numbers<[1], [0], [0], [1], [0, 0, 1, 1], [], []>} : vector<128x128xf32>, vector<128x256xf32>, vector<128x256xf32> -> vector<128x256xf32>
    %c128_16 = arith.constant 128 : index
    %c0_17 = arith.constant 0 : index
    %24 = vector.load %arg3[%c128_16, %c0_17] : memref<640x256xf32, #tpu.memory_space<vmem>>, vector<128x256xf32>
    %cst_18 = arith.constant dense<0.000000e+00> : vector<128x256xf32>
    %25 = tpu.matmul %0, %24, %cst_18 {dimension_numbers = #tpu.dot_dimension_numbers<[1], [0], [0], [1], [0, 0, 1, 1], [], []>} : vector<128x128xf32>, vector<128x256xf32>, vector<128x256xf32> -> vector<128x256xf32>
    %c256_19 = arith.constant 256 : index
    %c0_20 = arith.constant 0 : index
    %26 = vector.load %arg3[%c256_19, %c0_20] : memref<640x256xf32, #tpu.memory_space<vmem>>, vector<128x256xf32>
    %cst_21 = arith.constant dense<0.000000e+00> : vector<128x256xf32>
    %27 = tpu.matmul %1, %26, %cst_21 {dimension_numbers = #tpu.dot_dimension_numbers<[1], [0], [0], [1], [0, 0, 1, 1], [], []>} : vector<128x128xf32>, vector<128x256xf32>, vector<128x256xf32> -> vector<128x256xf32>
    %28 = arith.addf %25, %27 : vector<128x256xf32>
    %29 = vector.extract_strided_slice %28 {offsets = [1, 0], sizes = [127, 256], strides = [1, 1]} : vector<128x256xf32> to vector<127x256xf32>
    %30 = vector.extract_strided_slice %28 {offsets = [0, 0], sizes = [1, 256], strides = [1, 1]} : vector<128x256xf32> to vector<1x256xf32>
    %31 = tpu.concatenate %29, %30 in 0 : vector<127x256xf32>, vector<1x256xf32> -> vector<128x256xf32>
    %32 = arith.addf %23, %31 : vector<128x256xf32>
    %c384_22 = arith.constant 384 : index
    %c0_23 = arith.constant 0 : index
    %33 = vector.load %arg3[%c384_22, %c0_23] : memref<640x256xf32, #tpu.memory_space<vmem>>, vector<128x256xf32>
    %cst_24 = arith.constant dense<0.000000e+00> : vector<128x256xf32>
    %34 = tpu.matmul %0, %33, %cst_24 {dimension_numbers = #tpu.dot_dimension_numbers<[1], [0], [0], [1], [0, 0, 1, 1], [], []>} : vector<128x128xf32>, vector<128x256xf32>, vector<128x256xf32> -> vector<128x256xf32>
    %c512_25 = arith.constant 512 : index
    %c0_26 = arith.constant 0 : index
    %35 = vector.load %arg3[%c512_25, %c0_26] : memref<640x256xf32, #tpu.memory_space<vmem>>, vector<128x256xf32>
    %cst_27 = arith.constant dense<0.000000e+00> : vector<128x256xf32>
    %36 = tpu.matmul %1, %35, %cst_27 {dimension_numbers = #tpu.dot_dimension_numbers<[1], [0], [0], [1], [0, 0, 1, 1], [], []>} : vector<128x128xf32>, vector<128x256xf32>, vector<128x256xf32> -> vector<128x256xf32>
    %37 = arith.addf %34, %36 : vector<128x256xf32>
    %38 = vector.extract_strided_slice %37 {offsets = [2, 0], sizes = [126, 256], strides = [1, 1]} : vector<128x256xf32> to vector<126x256xf32>
    %39 = vector.extract_strided_slice %37 {offsets = [0, 0], sizes = [2, 256], strides = [1, 1]} : vector<128x256xf32> to vector<2x256xf32>
    %40 = tpu.concatenate %38, %39 in 0 : vector<126x256xf32>, vector<2x256xf32> -> vector<128x256xf32>
    %41 = arith.addf %32, %40 : vector<128x256xf32>
    %42 = arith.maximumf %21, %41 : vector<128x256xf32>
    %43 = vector.extract_strided_slice %42 {offsets = [0, 0], sizes = [128, 128], strides = [1, 1]} : vector<128x256xf32> to vector<128x128xf32>
    %44 = vector.extract_strided_slice %42 {offsets = [0, 128], sizes = [128, 128], strides = [1, 1]} : vector<128x256xf32> to vector<128x128xf32>
    %45 = arith.maximumf %43, %44 : vector<128x128xf32>
    %c0_28 = arith.constant 0 : index
    %c0_29 = arith.constant 0 : index
    %46 = vector.load %arg4[%c0_28, %c0_29] : memref<1x128xf32, #tpu.memory_space<vmem>>, vector<1x128xf32>
    %47 = vector.broadcast %46 : vector<1x128xf32> to vector<128x128xf32>
    %48 = arith.addf %45, %47 : vector<128x128xf32>
    %cst_30 = arith.constant 0.000000e+00 : f32
    %49 = vector.broadcast %cst_30 : f32 to vector<128x128xf32>
    %50 = arith.maximumf %48, %49 : vector<128x128xf32>
    %c0_31 = arith.constant 0 : index
    %c0_32 = arith.constant 0 : index
    %51 = vector.load %arg5[%c0_31, %c0_32] : memref<640x256xf32, #tpu.memory_space<vmem>>, vector<128x256xf32>
    %cst_33 = arith.constant dense<0.000000e+00> : vector<128x256xf32>
    %52 = tpu.matmul %50, %51, %cst_33 {dimension_numbers = #tpu.dot_dimension_numbers<[1], [0], [0], [1], [0, 0, 1, 1], [], []>} : vector<128x128xf32>, vector<128x256xf32>, vector<128x256xf32> -> vector<128x256xf32>
    %c128_34 = arith.constant 128 : index
    %c0_35 = arith.constant 0 : index
    %53 = vector.load %arg5[%c128_34, %c0_35] : memref<640x256xf32, #tpu.memory_space<vmem>>, vector<128x256xf32>
    %cst_36 = arith.constant dense<0.000000e+00> : vector<128x256xf32>
    %54 = tpu.matmul %50, %53, %cst_36 {dimension_numbers = #tpu.dot_dimension_numbers<[1], [0], [0], [1], [0, 0, 1, 1], [], []>} : vector<128x128xf32>, vector<128x256xf32>, vector<128x256xf32> -> vector<128x256xf32>
    %55 = vector.extract_strided_slice %54 {offsets = [1, 0], sizes = [127, 256], strides = [1, 1]} : vector<128x256xf32> to vector<127x256xf32>
    %56 = vector.extract_strided_slice %54 {offsets = [0, 0], sizes = [1, 256], strides = [1, 1]} : vector<128x256xf32> to vector<1x256xf32>
    %57 = tpu.concatenate %55, %56 in 0 : vector<127x256xf32>, vector<1x256xf32> -> vector<128x256xf32>
    %58 = arith.addf %52, %57 : vector<128x256xf32>
    %c256_37 = arith.constant 256 : index
    %c0_38 = arith.constant 0 : index
    %59 = vector.load %arg5[%c256_37, %c0_38] : memref<640x256xf32, #tpu.memory_space<vmem>>, vector<128x256xf32>
    %cst_39 = arith.constant dense<0.000000e+00> : vector<128x256xf32>
    %60 = tpu.matmul %50, %59, %cst_39 {dimension_numbers = #tpu.dot_dimension_numbers<[1], [0], [0], [1], [0, 0, 1, 1], [], []>} : vector<128x128xf32>, vector<128x256xf32>, vector<128x256xf32> -> vector<128x256xf32>
    %61 = vector.extract_strided_slice %60 {offsets = [2, 0], sizes = [126, 256], strides = [1, 1]} : vector<128x256xf32> to vector<126x256xf32>
    %62 = vector.extract_strided_slice %60 {offsets = [0, 0], sizes = [2, 256], strides = [1, 1]} : vector<128x256xf32> to vector<2x256xf32>
    %63 = tpu.concatenate %61, %62 in 0 : vector<126x256xf32>, vector<2x256xf32> -> vector<128x256xf32>
    %64 = arith.addf %58, %63 : vector<128x256xf32>
    %c384_40 = arith.constant 384 : index
    %c0_41 = arith.constant 0 : index
    %65 = vector.load %arg5[%c384_40, %c0_41] : memref<640x256xf32, #tpu.memory_space<vmem>>, vector<128x256xf32>
    %cst_42 = arith.constant dense<0.000000e+00> : vector<128x256xf32>
    %66 = tpu.matmul %50, %65, %cst_42 {dimension_numbers = #tpu.dot_dimension_numbers<[1], [0], [0], [1], [0, 0, 1, 1], [], []>} : vector<128x128xf32>, vector<128x256xf32>, vector<128x256xf32> -> vector<128x256xf32>
    %67 = vector.extract_strided_slice %66 {offsets = [3, 0], sizes = [125, 256], strides = [1, 1]} : vector<128x256xf32> to vector<125x256xf32>
    %68 = vector.extract_strided_slice %66 {offsets = [0, 0], sizes = [3, 256], strides = [1, 1]} : vector<128x256xf32> to vector<3x256xf32>
    %69 = tpu.concatenate %67, %68 in 0 : vector<125x256xf32>, vector<3x256xf32> -> vector<128x256xf32>
    %70 = arith.addf %64, %69 : vector<128x256xf32>
    %c512_43 = arith.constant 512 : index
    %c0_44 = arith.constant 0 : index
    %71 = vector.load %arg5[%c512_43, %c0_44] : memref<640x256xf32, #tpu.memory_space<vmem>>, vector<128x256xf32>
    %cst_45 = arith.constant dense<0.000000e+00> : vector<128x256xf32>
    %72 = tpu.matmul %50, %71, %cst_45 {dimension_numbers = #tpu.dot_dimension_numbers<[1], [0], [0], [1], [0, 0, 1, 1], [], []>} : vector<128x128xf32>, vector<128x256xf32>, vector<128x256xf32> -> vector<128x256xf32>
    %73 = vector.extract_strided_slice %72 {offsets = [4, 0], sizes = [124, 256], strides = [1, 1]} : vector<128x256xf32> to vector<124x256xf32>
    %74 = vector.extract_strided_slice %72 {offsets = [0, 0], sizes = [4, 256], strides = [1, 1]} : vector<128x256xf32> to vector<4x256xf32>
    %75 = tpu.concatenate %73, %74 in 0 : vector<124x256xf32>, vector<4x256xf32> -> vector<128x256xf32>
    %76 = arith.addf %70, %75 : vector<128x256xf32>
    %77 = vector.extract_strided_slice %76 {offsets = [1, 0], sizes = [127, 256], strides = [1, 1]} : vector<128x256xf32> to vector<127x256xf32>
    %78 = vector.extract_strided_slice %76 {offsets = [0, 0], sizes = [1, 256], strides = [1, 1]} : vector<128x256xf32> to vector<1x256xf32>
    %79 = tpu.concatenate %77, %78 in 0 : vector<127x256xf32>, vector<1x256xf32> -> vector<128x256xf32>
    %80 = arith.maximumf %76, %79 : vector<128x256xf32>
    %81 = vector.extract_strided_slice %80 {offsets = [0, 0], sizes = [128, 128], strides = [1, 1]} : vector<128x256xf32> to vector<128x128xf32>
    %82 = vector.extract_strided_slice %80 {offsets = [0, 128], sizes = [128, 128], strides = [1, 1]} : vector<128x256xf32> to vector<128x128xf32>
    %83 = arith.maximumf %81, %82 : vector<128x128xf32>
    %c0_46 = arith.constant 0 : index
    %c0_47 = arith.constant 0 : index
    %84 = vector.load %arg6[%c0_46, %c0_47] : memref<1x128xf32, #tpu.memory_space<vmem>>, vector<1x128xf32>
    %85 = vector.broadcast %84 : vector<1x128xf32> to vector<128x128xf32>
    %86 = arith.addf %83, %85 : vector<128x128xf32>
    %cst_48 = arith.constant 0.000000e+00 : f32
    %87 = vector.broadcast %cst_48 : f32 to vector<128x128xf32>
    %88 = arith.maximumf %86, %87 : vector<128x128xf32>
    %c0_49 = arith.constant 0 : index
    %c0_50 = arith.constant 0 : index
    %89 = vector.load %arg7[%c0_49, %c0_50] : memref<640x128xf32, #tpu.memory_space<vmem>>, vector<128x128xf32>
    %cst_51 = arith.constant dense<0.000000e+00> : vector<128x128xf32>
    %90 = tpu.matmul %88, %89, %cst_51 {dimension_numbers = #tpu.dot_dimension_numbers<[1], [0], [0], [1], [0, 0, 1, 1], [], []>} : vector<128x128xf32>, vector<128x128xf32>, vector<128x128xf32> -> vector<128x128xf32>
    %c128_52 = arith.constant 128 : index
    %c0_53 = arith.constant 0 : index
    %91 = vector.load %arg7[%c128_52, %c0_53] : memref<640x128xf32, #tpu.memory_space<vmem>>, vector<128x128xf32>
    %cst_54 = arith.constant dense<0.000000e+00> : vector<128x128xf32>
    %92 = tpu.matmul %88, %91, %cst_54 {dimension_numbers = #tpu.dot_dimension_numbers<[1], [0], [0], [1], [0, 0, 1, 1], [], []>} : vector<128x128xf32>, vector<128x128xf32>, vector<128x128xf32> -> vector<128x128xf32>
    %93 = vector.extract_strided_slice %92 {offsets = [2, 0], sizes = [126, 128], strides = [1, 1]} : vector<128x128xf32> to vector<126x128xf32>
    %94 = vector.extract_strided_slice %92 {offsets = [0, 0], sizes = [2, 128], strides = [1, 1]} : vector<128x128xf32> to vector<2x128xf32>
    %95 = tpu.concatenate %93, %94 in 0 : vector<126x128xf32>, vector<2x128xf32> -> vector<128x128xf32>
    %96 = arith.addf %90, %95 : vector<128x128xf32>
    %c256_55 = arith.constant 256 : index
    %c0_56 = arith.constant 0 : index
    %97 = vector.load %arg7[%c256_55, %c0_56] : memref<640x128xf32, #tpu.memory_space<vmem>>, vector<128x128xf32>
    %cst_57 = arith.constant dense<0.000000e+00> : vector<128x128xf32>
    %98 = tpu.matmul %88, %97, %cst_57 {dimension_numbers = #tpu.dot_dimension_numbers<[1], [0], [0], [1], [0, 0, 1, 1], [], []>} : vector<128x128xf32>, vector<128x128xf32>, vector<128x128xf32> -> vector<128x128xf32>
    %99 = vector.extract_strided_slice %98 {offsets = [4, 0], sizes = [124, 128], strides = [1, 1]} : vector<128x128xf32> to vector<124x128xf32>
    %100 = vector.extract_strided_slice %98 {offsets = [0, 0], sizes = [4, 128], strides = [1, 1]} : vector<128x128xf32> to vector<4x128xf32>
    %101 = tpu.concatenate %99, %100 in 0 : vector<124x128xf32>, vector<4x128xf32> -> vector<128x128xf32>
    %102 = arith.addf %96, %101 : vector<128x128xf32>
    %c384_58 = arith.constant 384 : index
    %c0_59 = arith.constant 0 : index
    %103 = vector.load %arg7[%c384_58, %c0_59] : memref<640x128xf32, #tpu.memory_space<vmem>>, vector<128x128xf32>
    %cst_60 = arith.constant dense<0.000000e+00> : vector<128x128xf32>
    %104 = tpu.matmul %88, %103, %cst_60 {dimension_numbers = #tpu.dot_dimension_numbers<[1], [0], [0], [1], [0, 0, 1, 1], [], []>} : vector<128x128xf32>, vector<128x128xf32>, vector<128x128xf32> -> vector<128x128xf32>
    %105 = vector.extract_strided_slice %104 {offsets = [6, 0], sizes = [122, 128], strides = [1, 1]} : vector<128x128xf32> to vector<122x128xf32>
    %106 = vector.extract_strided_slice %104 {offsets = [0, 0], sizes = [6, 128], strides = [1, 1]} : vector<128x128xf32> to vector<6x128xf32>
    %107 = tpu.concatenate %105, %106 in 0 : vector<122x128xf32>, vector<6x128xf32> -> vector<128x128xf32>
    %108 = arith.addf %102, %107 : vector<128x128xf32>
    %c512_61 = arith.constant 512 : index
    %c0_62 = arith.constant 0 : index
    %109 = vector.load %arg7[%c512_61, %c0_62] : memref<640x128xf32, #tpu.memory_space<vmem>>, vector<128x128xf32>
    %cst_63 = arith.constant dense<0.000000e+00> : vector<128x128xf32>
    %110 = tpu.matmul %88, %109, %cst_63 {dimension_numbers = #tpu.dot_dimension_numbers<[1], [0], [0], [1], [0, 0, 1, 1], [], []>} : vector<128x128xf32>, vector<128x128xf32>, vector<128x128xf32> -> vector<128x128xf32>
    %111 = vector.extract_strided_slice %110 {offsets = [8, 0], sizes = [120, 128], strides = [1, 1]} : vector<128x128xf32> to vector<120x128xf32>
    %112 = vector.extract_strided_slice %110 {offsets = [0, 0], sizes = [8, 128], strides = [1, 1]} : vector<128x128xf32> to vector<8x128xf32>
    %113 = tpu.concatenate %111, %112 in 0 : vector<120x128xf32>, vector<8x128xf32> -> vector<128x128xf32>
    %114 = arith.addf %108, %113 : vector<128x128xf32>
    %c0_64 = arith.constant 0 : index
    %c0_65 = arith.constant 0 : index
    %115 = vector.load %arg8[%c0_64, %c0_65] : memref<1x128xf32, #tpu.memory_space<vmem>>, vector<1x128xf32>
    %116 = vector.broadcast %115 : vector<1x128xf32> to vector<128x128xf32>
    %117 = arith.addf %114, %116 : vector<128x128xf32>
    %cst_66 = arith.constant 0.000000e+00 : f32
    %118 = vector.broadcast %cst_66 : f32 to vector<128x128xf32>
    %119 = arith.maximumf %117, %118 : vector<128x128xf32>
    %c0_67 = arith.constant 0 : index
    %c0_68 = arith.constant 0 : index
    %120 = vector.load %arg9[%c0_67, %c0_68] : memref<128x128xf32, #tpu.memory_space<vmem>>, vector<128x128xf32>
    %cst_69 = arith.constant dense<0.000000e+00> : vector<128x128xf32>
    %121 = tpu.matmul %119, %120, %cst_69 {dimension_numbers = #tpu.dot_dimension_numbers<[1], [0], [0], [1], [0, 0, 1, 1], [], []>} : vector<128x128xf32>, vector<128x128xf32>, vector<128x128xf32> -> vector<128x128xf32>
    %c0_70 = arith.constant 0 : index
    %c0_71 = arith.constant 0 : index
    %122 = vector.load %arg10[%c0_70, %c0_71] : memref<1x128xf32, #tpu.memory_space<vmem>>, vector<1x128xf32>
    %123 = vector.broadcast %122 : vector<1x128xf32> to vector<128x128xf32>
    %124 = arith.addf %121, %123 : vector<128x128xf32>
    %cst_72 = arith.constant 0.000000e+00 : f32
    %125 = vector.broadcast %cst_72 : f32 to vector<128x128xf32>
    %126 = arith.maximumf %124, %125 : vector<128x128xf32>
    %c0_73 = arith.constant 0 : index
    %c0_74 = arith.constant 0 : index
    %127 = vector.load %arg11[%c0_73, %c0_74] : memref<128x128xf32, #tpu.memory_space<vmem>>, vector<128x128xf32>
    %cst_75 = arith.constant dense<0.000000e+00> : vector<128x128xf32>
    %128 = tpu.matmul %126, %127, %cst_75 {dimension_numbers = #tpu.dot_dimension_numbers<[1], [0], [0], [1], [0, 0, 1, 1], [], []>} : vector<128x128xf32>, vector<128x128xf32>, vector<128x128xf32> -> vector<128x128xf32>
    %c0_76 = arith.constant 0 : index
    %c0_77 = arith.constant 0 : index
    %129 = vector.load %arg12[%c0_76, %c0_77] : memref<1x128xf32, #tpu.memory_space<vmem>>, vector<1x128xf32>
    %130 = vector.broadcast %129 : vector<1x128xf32> to vector<128x128xf32>
    %131 = arith.addf %128, %130 : vector<128x128xf32>
    %c0_78 = arith.constant 0 : index
    %c0_79 = arith.constant 0 : index
    %132 = vector.load %arg13[%c0_78, %c0_79] : memref<128x128xf32, #tpu.memory_space<vmem>>, vector<128x128xf32>
    tpu.vector_store %arg13[%c0_78, %c0_79], %131 {strides = array<i32>} : memref<128x128xf32, #tpu.memory_space<vmem>>, vector<128x128xf32>,
    return
  }
  func.func @transform_0(%arg0: i32) -> (i32, i32) {
    %c0_i32 = arith.constant 0 : i32
    %c0_i32_0 = arith.constant 0 : i32
    return %arg0, %c0_i32 : i32, i32
  }
  func.func @transform_1(%arg0: i32) -> (i32, i32) {
    %c0_i32 = arith.constant 0 : i32
    %c0_i32_0 = arith.constant 0 : i32
    return %arg0, %c0_i32 : i32, i32
  }
  func.func @transform_2(%arg0: i32) -> (i32, i32) {
    %c0_i32 = arith.constant 0 : i32
    %c0_i32_0 = arith.constant 0 : i32
    %c0_i32_1 = arith.constant 0 : i32
    return %c0_i32, %c0_i32_0 : i32, i32
  }
  func.func @transform_3(%arg0: i32) -> (i32, i32) {
    %c0_i32 = arith.constant 0 : i32
    %c0_i32_0 = arith.constant 0 : i32
    %c0_i32_1 = arith.constant 0 : i32
    return %c0_i32, %c0_i32_0 : i32, i32
  }
  func.func @transform_4(%arg0: i32) -> (i32, i32) {
    %c0_i32 = arith.constant 0 : i32
    %c0_i32_0 = arith.constant 0 : i32
    %c0_i32_1 = arith.constant 0 : i32
    return %c0_i32, %c0_i32_0 : i32, i32
  }
  func.func @transform_5(%arg0: i32) -> (i32, i32) {
    %c0_i32 = arith.constant 0 : i32
    %c0_i32_0 = arith.constant 0 : i32
    %c0_i32_1 = arith.constant 0 : i32
    return %c0_i32, %c0_i32_0 : i32, i32
  }
  func.func @transform_6(%arg0: i32) -> (i32, i32) {
    %c0_i32 = arith.constant 0 : i32
    %c0_i32_0 = arith.constant 0 : i32
    %c0_i32_1 = arith.constant 0 : i32
    return %c0_i32, %c0_i32_0 : i32, i32
  }
  func.func @transform_7(%arg0: i32) -> (i32, i32) {
    %c0_i32 = arith.constant 0 : i32
    %c0_i32_0 = arith.constant 0 : i32
    %c0_i32_1 = arith.constant 0 : i32
    return %c0_i32, %c0_i32_0 : i32, i32
  }
  func.func @transform_8(%arg0: i32) -> (i32, i32) {
    %c0_i32 = arith.constant 0 : i32
    %c0_i32_0 = arith.constant 0 : i32
    %c0_i32_1 = arith.constant 0 : i32
    return %c0_i32, %c0_i32_0 : i32, i32
  }
  func.func @transform_9(%arg0: i32) -> (i32, i32) {
    %c0_i32 = arith.constant 0 : i32
    %c0_i32_0 = arith.constant 0 : i32
    %c0_i32_1 = arith.constant 0 : i32
    return %c0_i32, %c0_i32_0 : i32, i32
  }
  func.func @transform_10(%arg0: i32) -> (i32, i32) {
    %c0_i32 = arith.constant 0 : i32
    %c0_i32_0 = arith.constant 0 : i32
    %c0_i32_1 = arith.constant 0 : i32
    return %c0_i32, %c0_i32_0 : i32, i32
  }
  func.func @transform_11(%arg0: i32) -> (i32, i32) {
    %c0_i32 = arith.constant 0 : i32
    %c0_i32_0 = arith.constant 0 : i32
    %c0_i32_1 = arith.constant 0 : i32
    return %c0_i32, %c0_i32_0 : i32, i32
  }
  func.func @transform_12(%arg0: i32) -> (i32, i32) {
    %c0_i32 = arith.constant 0 : i32
    %c0_i32_0 = arith.constant 0 : i32
    return %arg0, %c0_i32 : i32, i32
  }
}

</mosaic_0001>

<llo_original>
// kernel: net_forward.1
$region0: #{net_forward.1}
  #allocation0 [shape = 'u32[]', space=smem, size = 0x4, offset = 0x4, fixed_abs, tag = 'smem constant byte address 0x4 - core index']
  #allocation1 [shape = 'u32[144,128]{1,0:T(1,128)}', space=vmem, size = 0x12000, scoped, tag = 'internal scratch']
  %s0 = inlined_call_operand.vmem [shape: f32[256,128], index: 0, kind: input, shape index: {}]
  %s1 = inlined_call_operand.vmem [shape: f32[256,128], index: 1, kind: input, shape index: {}]
  %s2 = inlined_call_operand.vmem [shape: f32[640,256], index: 2, kind: input, shape index: {}]
  %s3 = inlined_call_operand.vmem [shape: f32[1,128], index: 3, kind: input, shape index: {}]
  %s4 = inlined_call_operand.vmem [shape: f32[640,256], index: 4, kind: input, shape index: {}]
  %s5 = inlined_call_operand.vmem [shape: f32[1,128], index: 5, kind: input, shape index: {}]
  %s6 = inlined_call_operand.vmem [shape: f32[640,128], index: 6, kind: input, shape index: {}]
  %s7 = inlined_call_operand.vmem [shape: f32[1,128], index: 7, kind: input, shape index: {}]
  %s8 = inlined_call_operand.vmem [shape: f32[128,128], index: 8, kind: input, shape index: {}]
  %s9 = inlined_call_operand.vmem [shape: f32[1,128], index: 9, kind: input, shape index: {}]
  %s10 = inlined_call_operand.vmem [shape: f32[128,128], index: 10, kind: input, shape index: {}]
  %s11 = inlined_call_operand.vmem [shape: f32[1,128], index: 11, kind: input, shape index: {}]
  %s12 = inlined_call_operand.vmem [shape: f32[256,128], index: 12, kind: output, shape index: {}]
  %s13 = sld [smem:[#allocation0]]
  $region81: #{net_forward.1} parent=0
    _
  %s15 = ssub.s32 1, %s13
  %s16 = scalar_select 0, %s15, %s13
  loop: start=0, step=1, limit=4
  $region2: #{net_forward.1} parent=0 // loop_pre_header
    _
  $region3: #{net_forward.1} parent=0 // loop_header
    %s18 = sphi 0, %s22
    %p19 = scmp.ge.s32.totalorder %s18, 4
    %s28 = sphi 0, %s30
    %s31 = sphi 0, %s28
    %s32 = sphi 0, %s31
    %s48 = sphi 0, %s32
    %s54 = sphi 0, %s56
    %s57 = sphi 0, %s54
    %s58 = sphi 0, %s57
    %s74 = sphi 0, %s58
    %s78 = sphi 0, %s78
    %s80 = sphi 0, %s78
    %s81 = sphi 0, %s80
    %s95 = sphi 0, %s81
    %s99 = sphi 0, %s99
    %s101 = sphi 0, %s99
    %s102 = sphi 0, %s101
    %s116 = sphi 0, %s102
    %s120 = sphi 0, %s120
    %s122 = sphi 0, %s120
    %s123 = sphi 0, %s122
    %s137 = sphi 0, %s123
    %s141 = sphi 0, %s141
    %s143 = sphi 0, %s141
    %s144 = sphi 0, %s143
    %s158 = sphi 0, %s144
    %s162 = sphi 0, %s162
    %s164 = sphi 0, %s162
    %s165 = sphi 0, %s164
    %s179 = sphi 0, %s165
    %s183 = sphi 0, %s183
    %s185 = sphi 0, %s183
    %s186 = sphi 0, %s185
    %s200 = sphi 0, %s186
    %s204 = sphi 0, %s204
    %s206 = sphi 0, %s204
    %s207 = sphi 0, %s206
    %s221 = sphi 0, %s207
    %s225 = sphi 0, %s225
    %s227 = sphi 0, %s225
    %s228 = sphi 0, %s227
    %s242 = sphi 0, %s228
    %s246 = sphi 0, %s246
    %s248 = sphi 0, %s246
    %s249 = sphi 0, %s248
    %s263 = sphi 0, %s249
    %s267 = sphi 0, %s267
    %s269 = sphi 0, %s267
    %s270 = sphi 0, %s269
    %s284 = sphi 0, %s270
    %s290 = sphi 0, %s292
    %s293 = sphi 0, %s290
    %s294 = sphi 0, %s293
    %s310 = sphi 0, %s294
  $region4: #{net_forward.1} parent=0 // loop_header_branch
    %21 = sbr.rel (%p19) target = $region8
  $region5: #{net_forward.1} parent=0 // loop_body
    %s23 = ssub.s32 %s18, 1
    %s24 = ssub.s32 %s18, 2
    %s25 = sadd.s32 %s18, 1
    %s26 = ssub.s32 %s18, %s25
    %p27 = scmp.eq.s32.totalorder %s26, 0
    %s29 = sadd.s32 %s28, 1
    %s30 = scalar_select %p27, %s28, %s29
    %p33 = pneg %p27
    %p34 = scmp.eq.s32.totalorder %s18, 1
    %p35 = por %p33, %p34
    %p36 = scmp.ne.s32.totalorder %s28, %s31
    %p37 = scmp.eq.s32.totalorder %s18, 0
    %p38 = por %p36, %p37
    %p39 = scmp.ne.s32.totalorder %s28, %s31
    %p40 = scmp.eq.s32.totalorder %s23, 1
    %p41 = por %p39, %p40
    %p42 = scmp.ne.s32.totalorder %s31, %s32
    %p43 = scmp.eq.s32.totalorder %s23, 0
    %p44 = por %p42, %p43
    %p45 = scmp.ne.s32.totalorder %s31, %s32
    %p46 = scmp.eq.s32.totalorder %s24, 1
    %p47 = por %p45, %p46
    %p49 = scmp.ne.s32.totalorder %s32, %s48
    %p50 = scmp.eq.s32.totalorder %s24, 0
    %p51 = por %p49, %p50
    %s52 = ssub.s32 %s18, %s25
    %p53 = scmp.eq.s32.totalorder %s52, 0
    %s55 = sadd.s32 %s54, 1
    %s56 = scalar_select %p53, %s54, %s55
    %p59 = pneg %p53
    %p60 = scmp.eq.s32.totalorder %s18, 1
    %p61 = por %p59, %p60
    %p62 = scmp.ne.s32.totalorder %s54, %s57
    %p63 = scmp.eq.s32.totalorder %s18, 0
    %p64 = por %p62, %p63
    %p65 = scmp.ne.s32.totalorder %s54, %s57
    %p66 = scmp.eq.s32.totalorder %s23, 1
    %p67 = por %p65, %p66
    %p68 = scmp.ne.s32.totalorder %s57, %s58
    %p69 = scmp.eq.s32.totalorder %s23, 0
    %p70 = por %p68, %p69
    %p71 = scmp.ne.s32.totalorder %s57, %s58
    %p72 = scmp.eq.s32.totalorder %s24, 1
    %p73 = por %p71, %p72
    %p75 = scmp.ne.s32.totalorder %s58, %s74
    %p76 = scmp.eq.s32.totalorder %s24, 0
    %p77 = por %p75, %p76
    %s79 = sadd.s32 %s78, 1
    %p82 = scmp.eq.s32.totalorder %s18, 1
    %p83 = scmp.ne.s32.totalorder %s78, %s80
    %p84 = scmp.eq.s32.totalorder %s18, 0
    %p85 = por %p83, %p84
    %p86 = scmp.ne.s32.totalorder %s78, %s80
    %p87 = scmp.eq.s32.totalorder %s23, 1
    %p88 = por %p86, %p87
    %p89 = scmp.ne.s32.totalorder %s80, %s81
    %p90 = scmp.eq.s32.totalorder %s23, 0
    %p91 = por %p89, %p90
    %p92 = scmp.ne.s32.totalorder %s80, %s81
    %p93 = scmp.eq.s32.totalorder %s24, 1
    %p94 = por %p92, %p93
    %p96 = scmp.ne.s32.totalorder %s81, %s95
    %p97 = scmp.eq.s32.totalorder %s24, 0
    %p98 = por %p96, %p97
    %s100 = sadd.s32 %s99, 1
    %p103 = scmp.eq.s32.totalorder %s18, 1
    %p104 = scmp.ne.s32.totalorder %s99, %s101
    %p105 = scmp.eq.s32.totalorder %s18, 0
    %p106 = por %p104, %p105
    %p107 = scmp.ne.s32.totalorder %s99, %s101
    %p108 = scmp.eq.s32.totalorder %s23, 1
    %p109 = por %p107, %p108
    %p110 = scmp.ne.s32.totalorder %s101, %s102
    %p111 = scmp.eq.s32.totalorder %s23, 0
    %p112 = por %p110, %p111
    %p113 = scmp.ne.s32.totalorder %s101, %s102
    %p114 = scmp.eq.s32.totalorder %s24, 1
    %p115 = por %p113, %p114
    %p117 = scmp.ne.s32.totalorder %s102, %s116
    %p118 = scmp.eq.s32.totalorder %s24, 0
    %p119 = por %p117, %p118
    %s121 = sadd.s32 %s120, 1
    %p124 = scmp.eq.s32.totalorder %s18, 1
    %p125 = scmp.ne.s32.totalorder %s120, %s122
    %p126 = scmp.eq.s32.totalorder %s18, 0
    %p127 = por %p125, %p126
    %p128 = scmp.ne.s32.totalorder %s120, %s122
    %p129 = scmp.eq.s32.totalorder %s23, 1
    %p130 = por %p128, %p129
    %p131 = scmp.ne.s32.totalorder %s122, %s123
    %p132 = scmp.eq.s32.totalorder %s23, 0
    %p133 = por %p131, %p132
    %p134 = scmp.ne.s32.totalorder %s122, %s123
    %p135 = scmp.eq.s32.totalorder %s24, 1
    %p136 = por %p134, %p135
    %p138 = scmp.ne.s32.totalorder %s123, %s137
    %p139 = scmp.eq.s32.totalorder %s24, 0
    %p140 = por %p138, %p139
    %s142 = sadd.s32 %s141, 1
    %p145 = scmp.eq.s32.totalorder %s18, 1
    %p146 = scmp.ne.s32.totalorder %s141, %s143
    %p147 = scmp.eq.s32.totalorder %s18, 0
    %p148 = por %p146, %p147
    %p149 = scmp.ne.s32.totalorder %s141, %s143
    %p150 = scmp.eq.s32.totalorder %s23, 1
    %p151 = por %p149, %p150
    %p152 = scmp.ne.s32.totalorder %s143, %s144
    %p153 = scmp.eq.s32.totalorder %s23, 0
    %p154 = por %p152, %p153
    %p155 = scmp.ne.s32.totalorder %s143, %s144
    %p156 = scmp.eq.s32.totalorder %s24, 1
    %p157 = por %p155, %p156
    %p159 = scmp.ne.s32.totalorder %s144, %s158
    %p160 = scmp.eq.s32.totalorder %s24, 0
    %p161 = por %p159, %p160
    %s163 = sadd.s32 %s162, 1
    %p166 = scmp.eq.s32.totalorder %s18, 1
    %p167 = scmp.ne.s32.totalorder %s162, %s164
    %p168 = scmp.eq.s32.totalorder %s18, 0
    %p169 = por %p167, %p168
    %p170 = scmp.ne.s32.totalorder %s162, %s164
    %p171 = scmp.eq.s32.totalorder %s23, 1
    %p172 = por %p170, %p171
    %p173 = scmp.ne.s32.totalorder %s164, %s165
    %p174 = scmp.eq.s32.totalorder %s23, 0
    %p175 = por %p173, %p174
    %p176 = scmp.ne.s32.totalorder %s164, %s165
    %p177 = scmp.eq.s32.totalorder %s24, 1
    %p178 = por %p176, %p177
    %p180 = scmp.ne.s32.totalorder %s165, %s179
    %p181 = scmp.eq.s32.totalorder %s24, 0
    %p182 = por %p180, %p181
    %s184 = sadd.s32 %s183, 1
    %p187 = scmp.eq.s32.totalorder %s18, 1
    %p188 = scmp.ne.s32.totalorder %s183, %s185
    %p189 = scmp.eq.s32.totalorder %s18, 0
    %p190 = por %p188, %p189
    %p191 = scmp.ne.s32.totalorder %s183, %s185
    %p192 = scmp.eq.s32.totalorder %s23, 1
    %p193 = por %p191, %p192
    %p194 = scmp.ne.s32.totalorder %s185, %s186
    %p195 = scmp.eq.s32.totalorder %s23, 0
    %p196 = por %p194, %p195
    %p197 = scmp.ne.s32.totalorder %s185, %s186
    %p198 = scmp.eq.s32.totalorder %s24, 1
    %p199 = por %p197, %p198
    %p201 = scmp.ne.s32.totalorder %s186, %s200
    %p202 = scmp.eq.s32.totalorder %s24, 0
    %p203 = por %p201, %p202
    %s205 = sadd.s32 %s204, 1
    %p208 = scmp.eq.s32.totalorder %s18, 1
    %p209 = scmp.ne.s32.totalorder %s204, %s206
    %p210 = scmp.eq.s32.totalorder %s18, 0
    %p211 = por %p209, %p210
    %p212 = scmp.ne.s32.totalorder %s204, %s206
    %p213 = scmp.eq.s32.totalorder %s23, 1
    %p214 = por %p212, %p213
    %p215 = scmp.ne.s32.totalorder %s206, %s207
    %p216 = scmp.eq.s32.totalorder %s23, 0
    %p217 = por %p215, %p216
    %p218 = scmp.ne.s32.totalorder %s206, %s207
    %p219 = scmp.eq.s32.totalorder %s24, 1
    %p220 = por %p218, %p219
    %p222 = scmp.ne.s32.totalorder %s207, %s221
    %p223 = scmp.eq.s32.totalorder %s24, 0
    %p224 = por %p222, %p223
    %s226 = sadd.s32 %s225, 1
    %p229 = scmp.eq.s32.totalorder %s18, 1
    %p230 = scmp.ne.s32.totalorder %s225, %s227
    %p231 = scmp.eq.s32.totalorder %s18, 0
    %p232 = por %p230, %p231
    %p233 = scmp.ne.s32.totalorder %s225, %s227
    %p234 = scmp.eq.s32.totalorder %s23, 1
    %p235 = por %p233, %p234
    %p236 = scmp.ne.s32.totalorder %s227, %s228
    %p237 = scmp.eq.s32.totalorder %s23, 0
    %p238 = por %p236, %p237
    %p239 = scmp.ne.s32.totalorder %s227, %s228
    %p240 = scmp.eq.s32.totalorder %s24, 1
    %p241 = por %p239, %p240
    %p243 = scmp.ne.s32.totalorder %s228, %s242
    %p244 = scmp.eq.s32.totalorder %s24, 0
    %p245 = por %p243, %p244
    %s247 = sadd.s32 %s246, 1
    %p250 = scmp.eq.s32.totalorder %s18, 1
    %p251 = scmp.ne.s32.totalorder %s246, %s248
    %p252 = scmp.eq.s32.totalorder %s18, 0
    %p253 = por %p251, %p252
    %p254 = scmp.ne.s32.totalorder %s246, %s248
    %p255 = scmp.eq.s32.totalorder %s23, 1
    %p256 = por %p254, %p255
    %p257 = scmp.ne.s32.totalorder %s248, %s249
    %p258 = scmp.eq.s32.totalorder %s23, 0
    %p259 = por %p257, %p258
    %p260 = scmp.ne.s32.totalorder %s248, %s249
    %p261 = scmp.eq.s32.totalorder %s24, 1
    %p262 = por %p260, %p261
    %p264 = scmp.ne.s32.totalorder %s249, %s263
    %p265 = scmp.eq.s32.totalorder %s24, 0
    %p266 = por %p264, %p265
    %s268 = sadd.s32 %s267, 1
    %p271 = scmp.eq.s32.totalorder %s18, 1
    %p272 = scmp.ne.s32.totalorder %s267, %s269
    %p273 = scmp.eq.s32.totalorder %s18, 0
    %p274 = por %p272, %p273
    %p275 = scmp.ne.s32.totalorder %s267, %s269
    %p276 = scmp.eq.s32.totalorder %s23, 1
    %p277 = por %p275, %p276
    %p278 = scmp.ne.s32.totalorder %s269, %s270
    %p279 = scmp.eq.s32.totalorder %s23, 0
    %p280 = por %p278, %p279
    %p281 = scmp.ne.s32.totalorder %s269, %s270
    %p282 = scmp.eq.s32.totalorder %s24, 1
    %p283 = por %p281, %p282
    %p285 = scmp.ne.s32.totalorder %s270, %s284
    %p286 = scmp.eq.s32.totalorder %s24, 0
    %p287 = por %p285, %p286
    %s288 = ssub.s32 %s18, %s25
    %p289 = scmp.eq.s32.totalorder %s288, 0
    %s291 = sadd.s32 %s290, 1
    %s292 = scalar_select %p289, %s290, %s291
    %p295 = pneg %p289
    %p296 = scmp.eq.s32.totalorder %s18, 1
    %p297 = por %p295, %p296
    %p298 = scmp.ne.s32.totalorder %s290, %s293
    %p299 = scmp.eq.s32.totalorder %s18, 0
    %p300 = por %p298, %p299
    %p301 = scmp.ne.s32.totalorder %s290, %s293
    %p302 = scmp.eq.s32.totalorder %s23, 1
    %p303 = por %p301, %p302
    %p304 = scmp.ne.s32.totalorder %s293, %s294
    %p305 = scmp.eq.s32.totalorder %s23, 0
    %p306 = por %p304, %p305
    %p307 = scmp.ne.s32.totalorder %s293, %s294
    %p308 = scmp.eq.s32.totalorder %s24, 1
    %p309 = por %p307, %p308
    %p311 = scmp.ne.s32.totalorder %s294, %s310
    %p312 = scmp.eq.s32.totalorder %s24, 0
    %p313 = por %p311, %p312
    %p314 = scmp.le.s32.totalorder 1, %s18
    %p315 = scmp.lt.s32.totalorder %s18, 3
    %p316 = pnand %p314, %p315
    %p317 = pneg %p316
    // Predicated region
    $region9: #{net_forward.1} parent=5 // pred_check
      _
    $region10: #{net_forward.1} parent=5 // pred_check_branch
      %319 = sbr.rel (%p316) target = $region12
    $region11: #{net_forward.1} parent=5 // pred_region
      %s320 = ssub.s32 %s18, 1
      // Predicated region
      $region13: #{net_forward.1} parent=11 // pred_check
        %p321 = pneg %p91
      $region14: #{net_forward.1} parent=11 // pred_check_branch
        %323 = sbr.rel (%p321) target = $region16
      $region15: #{net_forward.1} parent=11 // pred_region
        _
      $region16: #{net_forward.1} parent=11 // pred_fallthru
        _
      // Predicated region
      $region17: #{net_forward.1} parent=11 // pred_check
        %p324 = pneg %p112
      $region18: #{net_forward.1} parent=11 // pred_check_branch
        %326 = sbr.rel (%p324) target = $region20
      $region19: #{net_forward.1} parent=11 // pred_region
        _
      $region20: #{net_forward.1} parent=11 // pred_fallthru
        _
      // Predicated region
      $region21: #{net_forward.1} parent=11 // pred_check
        %p327 = pneg %p133
      $region22: #{net_forward.1} parent=11 // pred_check_branch
        %329 = sbr.rel (%p327) target = $region24
      $region23: #{net_forward.1} parent=11 // pred_region
        _
      $region24: #{net_forward.1} parent=11 // pred_fallthru
        _
      // Predicated region
      $region25: #{net_forward.1} parent=11 // pred_check
        %p330 = pneg %p154
      $region26: #{net_forward.1} parent=11 // pred_check_branch
        %332 = sbr.rel (%p330) target = $region28
      $region27: #{net_forward.1} parent=11 // pred_region
        _
      $region28: #{net_forward.1} parent=11 // pred_fallthru
        _
      // Predicated region
      $region29: #{net_forward.1} parent=11 // pred_check
        %p333 = pneg %p175
      $region30: #{net_forward.1} parent=11 // pred_check_branch
        %335 = sbr.rel (%p333) target = $region32
      $region31: #{net_forward.1} parent=11 // pred_region
        _
      $region32: #{net_forward.1} parent=11 // pred_fallthru
        _
      // Predicated region
      $region33: #{net_forward.1} parent=11 // pred_check
        %p336 = pneg %p196
      $region34: #{net_forward.1} parent=11 // pred_check_branch
        %338 = sbr.rel (%p336) target = $region36
      $region35: #{net_forward.1} parent=11 // pred_region
        _
      $region36: #{net_forward.1} parent=11 // pred_fallthru
        _
      // Predicated region
      $region37: #{net_forward.1} parent=11 // pred_check
        %p339 = pneg %p217
      $region38: #{net_forward.1} parent=11 // pred_check_branch
        %341 = sbr.rel (%p339) target = $region40
      $region39: #{net_forward.1} parent=11 // pred_region
        _
      $region40: #{net_forward.1} parent=11 // pred_fallthru
        _
      // Predicated region
      $region41: #{net_forward.1} parent=11 // pred_check
        %p342 = pneg %p238
      $region42: #{net_forward.1} parent=11 // pred_check_branch
        %344 = sbr.rel (%p342) target = $region44
      $region43: #{net_forward.1} parent=11 // pred_region
        _
      $region44: #{net_forward.1} parent=11 // pred_fallthru
        _
      // Predicated region
      $region45: #{net_forward.1} parent=11 // pred_check
        %p345 = pneg %p259
      $region46: #{net_forward.1} parent=11 // pred_check_branch
        %347 = sbr.rel (%p345) target = $region48
      $region47: #{net_forward.1} parent=11 // pred_region
        _
      $region48: #{net_forward.1} parent=11 // pred_fallthru
        _
      // Predicated region
      $region49: #{net_forward.1} parent=11 // pred_check
        %p348 = pneg %p280
      $region50: #{net_forward.1} parent=11 // pred_check_branch
        %350 = sbr.rel (%p348) target = $region52
      $region51: #{net_forward.1} parent=11 // pred_region
        _
      $region52: #{net_forward.1} parent=11 // pred_fallthru
        _
    $region12: #{net_forward.1} parent=5 // pred_fallthru
      _
    %p351 = scmp.lt.s32.totalorder %s18, 2
    // Predicated region
    $region53: #{net_forward.1} parent=5 // pred_check
      %p352 = pneg %p351
    $region54: #{net_forward.1} parent=5 // pred_check_branch
      %354 = sbr.rel (%p352) target = $region56
    $region55: #{net_forward.1} parent=5 // pred_region
      // Predicated region
      $region57: #{net_forward.1} parent=55 // pred_check
        %p355 = pneg %p38
      $region58: #{net_forward.1} parent=55 // pred_check_branch
        %357 = sbr.rel (%p355) target = $region60
      $region59: #{net_forward.1} parent=55 // pred_region
        %s358 = smul.u32 16, %s18
        %p359 = scmp.lt.s32.totalorder %s358, 31
        %s360 = scalar_select %p359, %s358, 31
        %s361 = smul.addr %s360, 8
        %s362 = scalar_lea.vmem %s0, %s361
        %s363 = smul.u32 16, %s18
      $region60: #{net_forward.1} parent=55 // pred_fallthru
        _
      // Predicated region
      $region61: #{net_forward.1} parent=55 // pred_check
        %p364 = pneg %p64
      $region62: #{net_forward.1} parent=55 // pred_check_branch
        %366 = sbr.rel (%p364) target = $region64
      $region63: #{net_forward.1} parent=55 // pred_region
        %s367 = smul.u32 16, %s18
        %p368 = scmp.lt.s32.totalorder %s367, 31
        %s369 = scalar_select %p368, %s367, 31
        %s370 = smul.addr %s369, 8
        %s371 = scalar_lea.vmem %s1, %s370
        %s372 = smul.u32 16, %s18
      $region64: #{net_forward.1} parent=55 // pred_fallthru
        _
    $region56: #{net_forward.1} parent=5 // pred_fallthru
      _
    %p373 = scmp.le.s32.totalorder 1, %s18
    %p374 = scmp.lt.s32.totalorder %s18, 3
    %p375 = pnand %p373, %p374
    %p376 = pneg %p375
    // Predicated region
    $region65: #{net_forward.1} parent=5 // pred_check
      _
    $region66: #{net_forward.1} parent=5 // pred_check_branch
      %378 = sbr.rel (%p375) target = $region68
    $region67: #{net_forward.1} parent=5 // pred_region
      %s379 = ssub.s32 %s18, 1
      %s380 = smul.u32 16, %s23
      %p381 = scmp.lt.s32.totalorder %s380, 31
      %s382 = scalar_select %p381, %s380, 31
      %s383 = smul.addr %s382, 8
      %s384 = scalar_lea.vmem %s0, %s383
      %p385 = pneg %p44
      %p386 = pneg %p41
      %s387 = smul.u32 16, %s23
      %p388 = scmp.lt.s32.totalorder %s387, 31
      %s389 = scalar_select %p388, %s387, 31
      %s390 = smul.addr %s389, 8
      %s391 = scalar_lea.vmem %s1, %s390
      %p392 = pneg %p70
      %p393 = pneg %p67
      %p394 = pneg %p91
      %p395 = pneg %p88
      %p396 = pneg %p112
      %p397 = pneg %p109
      %p398 = pneg %p133
      %p399 = pneg %p130
      %p400 = pneg %p154
      %p401 = pneg %p151
      %p402 = pneg %p175
      %p403 = pneg %p172
      %p404 = pneg %p196
      %p405 = pneg %p193
      %p406 = pneg %p217
      %p407 = pneg %p214
      %p408 = pneg %p238
      %p409 = pneg %p235
      %p410 = pneg %p259
      %p411 = pneg %p256
      %p412 = pneg %p280
      %p413 = pneg %p277
      %p414 = pneg %p306
      %p415 = pneg %p303
      %s416 = smul.u32 16, %s23
      %p417 = scmp.lt.s32.totalorder %s416, 31
      %s418 = scalar_select %p417, %s416, 31
      %s419 = smul.addr %s418, 8
      %s420 = scalar_lea.vmem %s12, %s419
      %s421 = smul.u32 16, %s23
      %p422 = scmp.lt.s32.totalorder %s421, 31
      %s423 = scalar_select %p422, %s421, 31
      %s424 = smul.addr %s423, 8
      %s425 = scalar_lea.vmem %s0, %s424
      %s426 = smul.u32 16, %s23
      %s427 = smul.u32 16, %s23
      %p428 = scmp.lt.s32.totalorder %s427, 31
      %s429 = scalar_select %p428, %s427, 31
      %s430 = smul.addr %s429, 8
      %s431 = scalar_lea.vmem %s1, %s430
      %s432 = smul.u32 16, %s23
      %s433 = smul.u32 16, %s23
      %p434 = scmp.lt.s32.totalorder %s433, 31
      %s435 = scalar_select %p434, %s433, 31
      %s436 = smul.addr %s435, 8
      %s437 = scalar_lea.vmem %s12, %s436
      %s438 = smul.u32 16, %s23
      %v439 = vld [vmem:[%s425] sm:$0xff]
      %v440 = vld [vmem:[%s425 + $0x8] sm:$0xff]
      %v441 = vld [vmem:[%s425 + $0x10] sm:$0xff]
      %v442 = vld [vmem:[%s425 + $0x18] sm:$0xff]
      %v443 = vld [vmem:[%s425 + $0x20] sm:$0xff]
      %v444 = vld [vmem:[%s425 + $0x28] sm:$0xff]
      %v445 = vld [vmem:[%s425 + $0x30] sm:$0xff]
      %v446 = vld [vmem:[%s425 + $0x38] sm:$0xff]
      %v447 = vld [vmem:[%s425 + $0x40] sm:$0xff]
      %v448 = vld [vmem:[%s425 + $0x48] sm:$0xff]
      %v449 = vld [vmem:[%s425 + $0x50] sm:$0xff]
      %v450 = vld [vmem:[%s425 + $0x58] sm:$0xff]
      %v451 = vld [vmem:[%s425 + $0x60] sm:$0xff]
      %v452 = vld [vmem:[%s425 + $0x68] sm:$0xff]
      %v453 = vld [vmem:[%s425 + $0x70] sm:$0xff]
      %v454 = vld [vmem:[%s425 + $0x78] sm:$0xff]
      %v455 = vld [vmem:[%s431] sm:$0xff]
      %v456 = vld [vmem:[%s431 + $0x8] sm:$0xff]
      %v457 = vld [vmem:[%s431 + $0x10] sm:$0xff]
      %v458 = vld [vmem:[%s431 + $0x18] sm:$0xff]
      %v459 = vld [vmem:[%s431 + $0x20] sm:$0xff]
      %v460 = vld [vmem:[%s431 + $0x28] sm:$0xff]
      %v461 = vld [vmem:[%s431 + $0x30] sm:$0xff]
      %v462 = vld [vmem:[%s431 + $0x38] sm:$0xff]
      %v463 = vld [vmem:[%s431 + $0x40] sm:$0xff]
      %v464 = vld [vmem:[%s431 + $0x48] sm:$0xff]
      %v465 = vld [vmem:[%s431 + $0x50] sm:$0xff]
      %v466 = vld [vmem:[%s431 + $0x58] sm:$0xff]
      %v467 = vld [vmem:[%s431 + $0x60] sm:$0xff]
      %v468 = vld [vmem:[%s431 + $0x68] sm:$0xff]
      %v469 = vld [vmem:[%s431 + $0x70] sm:$0xff]
      %v470 = vld [vmem:[%s431 + $0x78] sm:$0xff]
      %v471 = vld [vmem:[%s2] sm:$0xff]
      %v472 = vld [vmem:[%s2 + $0x8] sm:$0xff]
      %v473 = vld [vmem:[%s2 + $0x10] sm:$0xff]
      %v474 = vld [vmem:[%s2 + $0x18] sm:$0xff]
      %v475 = vld [vmem:[%s2 + $0x20] sm:$0xff]
      %v476 = vld [vmem:[%s2 + $0x28] sm:$0xff]
      %v477 = vld [vmem:[%s2 + $0x30] sm:$0xff]
      %v478 = vld [vmem:[%s2 + $0x38] sm:$0xff]
      %v479 = vld [vmem:[%s2 + $0x40] sm:$0xff]
      %v480 = vld [vmem:[%s2 + $0x48] sm:$0xff]
      %v481 = vld [vmem:[%s2 + $0x50] sm:$0xff]
      %v482 = vld [vmem:[%s2 + $0x58] sm:$0xff]
      %v483 = vld [vmem:[%s2 + $0x60] sm:$0xff]
      %v484 = vld [vmem:[%s2 + $0x68] sm:$0xff]
      %v485 = vld [vmem:[%s2 + $0x70] sm:$0xff]
      %v486 = vld [vmem:[%s2 + $0x78] sm:$0xff]
      %v487 = vld [vmem:[%s2 + $0x80] sm:$0xff]
      %v488 = vld [vmem:[%s2 + $0x88] sm:$0xff]
      %v489 = vld [vmem:[%s2 + $0x90] sm:$0xff]
      %v490 = vld [vmem:[%s2 + $0x98] sm:$0xff]
      %v491 = vld [vmem:[%s2 + $0xa0] sm:$0xff]
      %v492 = vld [vmem:[%s2 + $0xa8] sm:$0xff]
      %v493 = vld [vmem:[%s2 + $0xb0] sm:$0xff]
      %v494 = vld [vmem:[%s2 + $0xb8] sm:$0xff]
      %v495 = vld [vmem:[%s2 + $0xc0] sm:$0xff]
      %v496 = vld [vmem:[%s2 + $0xc8] sm:$0xff]
      %v497 = vld [vmem:[%s2 + $0xd0] sm:$0xff]
      %v498 = vld [vmem:[%s2 + $0xd8] sm:$0xff]
      %v499 = vld [vmem:[%s2 + $0xe0] sm:$0xff]
      %v500 = vld [vmem:[%s2 + $0xe8] sm:$0xff]
      %v501 = vld [vmem:[%s2 + $0xf0] sm:$0xff]
      %v502 = vld [vmem:[%s2 + $0xf8] sm:$0xff]
      %v503 = vld [vmem:[%s2 + $0x100] sm:$0xff]
      %v504 = vld [vmem:[%s2 + $0x108] sm:$0xff]
      %v505 = vld [vmem:[%s2 + $0x110] sm:$0xff]
      %v506 = vld [vmem:[%s2 + $0x118] sm:$0xff]
      %v507 = vld [vmem:[%s2 + $0x120] sm:$0xff]
      %v508 = vld [vmem:[%s2 + $0x128] sm:$0xff]
      %v509 = vld [vmem:[%s2 + $0x130] sm:$0xff]
      %v510 = vld [vmem:[%s2 + $0x138] sm:$0xff]
      %v511 = vld [vmem:[%s2 + $0x140] sm:$0xff]
      %v512 = vld [vmem:[%s2 + $0x148] sm:$0xff]
      %v513 = vld [vmem:[%s2 + $0x150] sm:$0xff]
      %v514 = vld [vmem:[%s2 + $0x158] sm:$0xff]
      %v515 = vld [vmem:[%s2 + $0x160] sm:$0xff]
      %v516 = vld [vmem:[%s2 + $0x168] sm:$0xff]
      %v517 = vld [vmem:[%s2 + $0x170] sm:$0xff]
      %v518 = vld [vmem:[%s2 + $0x178] sm:$0xff]
      %v519 = vld [vmem:[%s2 + $0x180] sm:$0xff]
      %v520 = vld [vmem:[%s2 + $0x188] sm:$0xff]
      %v521 = vld [vmem:[%s2 + $0x190] sm:$0xff]
      %v522 = vld [vmem:[%s2 + $0x198] sm:$0xff]
      %v523 = vld [vmem:[%s2 + $0x1a0] sm:$0xff]
      %v524 = vld [vmem:[%s2 + $0x1a8] sm:$0xff]
      %v525 = vld [vmem:[%s2 + $0x1b0] sm:$0xff]
      %v526 = vld [vmem:[%s2 + $0x1b8] sm:$0xff]
      %v527 = vld [vmem:[%s2 + $0x1c0] sm:$0xff]
      %v528 = vld [vmem:[%s2 + $0x1c8] sm:$0xff]
      %v529 = vld [vmem:[%s2 + $0x1d0] sm:$0xff]
      %v530 = vld [vmem:[%s2 + $0x1d8] sm:$0xff]
      %v531 = vld [vmem:[%s2 + $0x1e0] sm:$0xff]
      %v532 = vld [vmem:[%s2 + $0x1e8] sm:$0xff]
      %v533 = vld [vmem:[%s2 + $0x1f0] sm:$0xff]
      %v534 = vld [vmem:[%s2 + $0x1f8] sm:$0xff]
      %535 = vmatprep.subr.mxu0 %v534
      %536 = vmatpush1.msra.mxu0 %v533
      %537 = vmatprep.subr.mxu0 %v532
      %538 = vmatpush1.msra.mxu0 %v531
      %539 = vmatprep.subr.mxu0 %v530
      %540 = vmatpush1.msra.mxu0 %v529
      %541 = vmatprep.subr.mxu0 %v528
      %542 = vmatpush1.msra.mxu0 %v527
      %543 = vmatprep.subr.mxu0 %v526
      %544 = vmatpush1.msra.mxu0 %v525
      %545 = vmatprep.subr.mxu0 %v524
      %546 = vmatpush1.msra.mxu0 %v523
      %547 = vmatprep.subr.mxu0 %v522
      %548 = vmatpush1.msra.mxu0 %v521
      %549 = vmatprep.subr.mxu0 %v520
      %550 = vmatpush1.msra.mxu0 %v519
      %551 = vmatprep.subr.mxu0 %v518
      %552 = vmatpush1.msra.mxu0 %v517
      %553 = vmatprep.subr.mxu0 %v516
      %554 = vmatpush1.msra.mxu0 %v515
      %555 = vmatprep.subr.mxu0 %v514
      %556 = vmatpush1.msra.mxu0 %v513
      %557 = vmatprep.subr.mxu0 %v512
      %558 = vmatpush1.msra.mxu0 %v511
      %559 = vmatprep.subr.mxu0 %v510
      %560 = vmatpush1.msra.mxu0 %v509
      %561 = vmatprep.subr.mxu0 %v508
      %562 = vmatpush1.msra.mxu0 %v507
      %563 = vmatprep.subr.mxu0 %v506
      %564 = vmatpush1.msra.mxu0 %v505
      %565 = vmatprep.subr.mxu0 %v504
      %566 = vmatpush1.msra.mxu0 %v503
      %567 = vmatprep.subr.mxu0 0.0
      %568 = vmatpush2.msra.mxu0 0.0
      %569 = vmatprep.subr.mxu0 0.0
      %570 = vmatpush2.msra.mxu0 0.0
      %571 = vmatprep.subr.mxu0 0.0
      %572 = vmatpush2.msra.mxu0 0.0
      %573 = vmatprep.subr.mxu0 0.0
      %574 = vmatpush2.msra.mxu0 0.0
      %575 = vmatprep.subr.mxu0 0.0
      %576 = vmatpush2.msra.mxu0 0.0
      %577 = vmatprep.subr.mxu0 0.0
      %578 = vmatpush2.msra.mxu0 0.0
      %579 = vmatprep.subr.mxu0 0.0
      %580 = vmatpush2.msra.mxu0 0.0
      %581 = vmatprep.subr.mxu0 0.0
      %582 = vmatpush2.msra.mxu0 0.0
      %583 = vmatprep.subr.mxu0 0.0
      %584 = vmatpush2.msra.mxu0 0.0
      %585 = vmatprep.subr.mxu0 0.0
      %586 = vmatpush2.msra.mxu0 0.0
      %587 = vmatprep.subr.mxu0 0.0
      %588 = vmatpush2.msra.mxu0 0.0
      %589 = vmatprep.subr.mxu0 0.0
      %590 = vmatpush2.msra.mxu0 0.0
      %591 = vmatprep.subr.mxu0 0.0
      %592 = vmatpush2.msra.mxu0 0.0
      %593 = vmatprep.subr.mxu0 0.0
      %594 = vmatpush2.msra.mxu0 0.0
      %595 = vmatprep.subr.mxu0 0.0
      %596 = vmatpush2.msra.mxu0 0.0
      %597 = vmatprep.subr.mxu0 0.0
      %598 = vmatpush2.msra.mxu0 0.0
      %599 = vmatprep.mubr.f32.mxu0 0.0
      %600 = vmatmul.mubr.f32.gmra.mxu0 %v455
      %v601 = vpop.f32.mrf.mxu0
      %v602 = vadd.f32 0.0, %v601
      %v603 = vpop.f32.mrf.mxu0
      %v604 = vadd.f32 0.0, %v603
      %605 = vmatprep.mubr.f32.mxu0 0.0
      %606 = vmatmul.mubr.f32.gmra.mxu0 %v456
      %v607 = vpop.f32.mrf.mxu0
      %v608 = vadd.f32 0.0, %v607
      %v609 = vpop.f32.mrf.mxu0
      %v610 = vadd.f32 0.0, %v609
      %611 = vmatprep.mubr.f32.mxu0 0.0
      %612 = vmatmul.mubr.f32.gmra.mxu0 %v457
      %v613 = vpop.f32.mrf.mxu0
      %v614 = vadd.f32 0.0, %v613
      %v615 = vpop.f32.mrf.mxu0
      %v616 = vadd.f32 0.0, %v615
      %617 = vmatprep.mubr.f32.mxu0 0.0
      %618 = vmatmul.mubr.f32.gmra.mxu0 %v458
      %v619 = vpop.f32.mrf.mxu0
      %v620 = vadd.f32 0.0, %v619
      %v621 = vpop.f32.mrf.mxu0
      %v622 = vadd.f32 0.0, %v621
      %623 = vmatprep.mubr.f32.mxu0 0.0
      %624 = vmatmul.mubr.f32.gmra.mxu0 %v459
      %v625 = vpop.f32.mrf.mxu0
      %v626 = vadd.f32 0.0, %v625
      %v627 = vpop.f32.mrf.mxu0
      %v628 = vadd.f32 0.0, %v627
      %629 = vmatprep.mubr.f32.mxu0 0.0
      %630 = vmatmul.mubr.f32.gmra.mxu0 %v460
      %v631 = vpop.f32.mrf.mxu0
      %v632 = vadd.f32 0.0, %v631
      %v633 = vpop.f32.mrf.mxu0
      %v634 = vadd.f32 0.0, %v633
      %635 = vmatprep.mubr.f32.mxu0 0.0
      %636 = vmatmul.mubr.f32.gmra.mxu0 %v461
      %v637 = vpop.f32.mrf.mxu0
      %v638 = vadd.f32 0.0, %v637
      %v639 = vpop.f32.mrf.mxu0
      %v640 = vadd.f32 0.0, %v639
      %641 = vmatprep.mubr.f32.mxu0 0.0
      %642 = vmatmul.mubr.f32.gmra.mxu0 %v462
      %v643 = vpop.f32.mrf.mxu0
      %v644 = vadd.f32 0.0, %v643
      %v645 = vpop.f32.mrf.mxu0
      %v646 = vadd.f32 0.0, %v645
      %647 = vmatprep.mubr.f32.mxu0 0.0
      %648 = vmatmul.mubr.f32.gmra.mxu0 %v463
      %v649 = vpop.f32.mrf.mxu0
      %v650 = vadd.f32 0.0, %v649
      %v651 = vpop.f32.mrf.mxu0
      %v652 = vadd.f32 0.0, %v651
      %653 = vmatprep.mubr.f32.mxu0 0.0
      %654 = vmatmul.mubr.f32.gmra.mxu0 %v464
      %v655 = vpop.f32.mrf.mxu0
      %v656 = vadd.f32 0.0, %v655
      %v657 = vpop.f32.mrf.mxu0
      %v658 = vadd.f32 0.0, %v657
      %659 = vmatprep.mubr.f32.mxu0 0.0
      %660 = vmatmul.mubr.f32.gmra.mxu0 %v465
      %v661 = vpop.f32.mrf.mxu0
      %v662 = vadd.f32 0.0, %v661
      %v663 = vpop.f32.mrf.mxu0
      %v664 = vadd.f32 0.0, %v663
      %665 = vmatprep.mubr.f32.mxu0 0.0
      %666 = vmatmul.mubr.f32.gmra.mxu0 %v466
      %v667 = vpop.f32.mrf.mxu0
      %v668 = vadd.f32 0.0, %v667
      %v669 = vpop.f32.mrf.mxu0
      %v670 = vadd.f32 0.0, %v669
      %671 = vmatprep.mubr.f32.mxu0 0.0
      %672 = vmatmul.mubr.f32.gmra.mxu0 %v467
      %v673 = vpop.f32.mrf.mxu0
      %v674 = vadd.f32 0.0, %v673
      %v675 = vpop.f32.mrf.mxu0
      %v676 = vadd.f32 0.0, %v675
      %677 = vmatprep.mubr.f32.mxu0 0.0
      %678 = vmatmul.mubr.f32.gmra.mxu0 %v468
      %v679 = vpop.f32.mrf.mxu0
      %v680 = vadd.f32 0.0, %v679
      %v681 = vpop.f32.mrf.mxu0
      %v682 = vadd.f32 0.0, %v681
      %683 = vmatprep.mubr.f32.mxu0 0.0
      %684 = vmatmul.mubr.f32.gmra.mxu0 %v469
      %v685 = vpop.f32.mrf.mxu0
      %v686 = vadd.f32 0.0, %v685
      %v687 = vpop.f32.mrf.mxu0
      %v688 = vadd.f32 0.0, %v687
      %689 = vmatprep.mubr.f32.mxu0 0.0
      %690 = vmatmul.mubr.f32.gmra.mxu0 %v470
      %v691 = vpop.f32.mrf.mxu0
      %v692 = vadd.f32 0.0, %v691
      %v693 = vpop.f32.mrf.mxu0
      %v694 = vadd.f32 0.0, %v693
      %695 = vdwg.mxu0
      %696 = vmatprep.subr.mxu0 %v502
      %697 = vmatpush1.msra.mxu0 %v501
      %698 = vmatprep.subr.mxu0 %v500
      %699 = vmatpush1.msra.mxu0 %v499
      %700 = vmatprep.subr.mxu0 %v498
      %701 = vmatpush1.msra.mxu0 %v497
      %702 = vmatprep.subr.mxu0 %v496
      %703 = vmatpush1.msra.mxu0 %v495
      %704 = vmatprep.subr.mxu0 %v494
      %705 = vmatpush1.msra.mxu0 %v493
      %706 = vmatprep.subr.mxu0 %v492
      %707 = vmatpush1.msra.mxu0 %v491
      %708 = vmatprep.subr.mxu0 %v490
      %709 = vmatpush1.msra.mxu0 %v489
      %710 = vmatprep.subr.mxu0 %v488
      %711 = vmatpush1.msra.mxu0 %v487
      %712 = vmatprep.subr.mxu0 %v486
      %713 = vmatpush1.msra.mxu0 %v485
      %714 = vmatprep.subr.mxu0 %v484
      %715 = vmatpush1.msra.mxu0 %v483
      %716 = vmatprep.subr.mxu0 %v482
      %717 = vmatpush1.msra.mxu0 %v481
      %718 = vmatprep.subr.mxu0 %v480
      %719 = vmatpush1.msra.mxu0 %v479
      %720 = vmatprep.subr.mxu0 %v478
      %721 = vmatpush1.msra.mxu0 %v477
      %722 = vmatprep.subr.mxu0 %v476
      %723 = vmatpush1.msra.mxu0 %v475
      %724 = vmatprep.subr.mxu0 %v474
      %725 = vmatpush1.msra.mxu0 %v473
      %726 = vmatprep.subr.mxu0 %v472
      %727 = vmatpush1.msra.mxu0 %v471
      %728 = vmatprep.subr.mxu0 0.0
      %729 = vmatpush2.msra.mxu0 0.0
      %730 = vmatprep.subr.mxu0 0.0
      %731 = vmatpush2.msra.mxu0 0.0
      %732 = vmatprep.subr.mxu0 0.0
      %733 = vmatpush2.msra.mxu0 0.0
      %734 = vmatprep.subr.mxu0 0.0
      %735 = vmatpush2.msra.mxu0 0.0
      %736 = vmatprep.subr.mxu0 0.0
      %737 = vmatpush2.msra.mxu0 0.0
      %738 = vmatprep.subr.mxu0 0.0
      %739 = vmatpush2.msra.mxu0 0.0
      %740 = vmatprep.subr.mxu0 0.0
      %741 = vmatpush2.msra.mxu0 0.0
      %742 = vmatprep.subr.mxu0 0.0
      %743 = vmatpush2.msra.mxu0 0.0
      %744 = vmatprep.subr.mxu0 0.0
      %745 = vmatpush2.msra.mxu0 0.0
      %746 = vmatprep.subr.mxu0 0.0
      %747 = vmatpush2.msra.mxu0 0.0
      %748 = vmatprep.subr.mxu0 0.0
      %749 = vmatpush2.msra.mxu0 0.0
      %750 = vmatprep.subr.mxu0 0.0
      %751 = vmatpush2.msra.mxu0 0.0
      %752 = vmatprep.subr.mxu0 0.0
      %753 = vmatpush2.msra.mxu0 0.0
      %754 = vmatprep.subr.mxu0 0.0
      %755 = vmatpush2.msra.mxu0 0.0
      %756 = vmatprep.subr.mxu0 0.0
      %757 = vmatpush2.msra.mxu0 0.0
      %758 = vmatprep.subr.mxu0 0.0
      %759 = vmatpush2.msra.mxu0 0.0
      %760 = vmatprep.mubr.f32.mxu0 0.0
      %761 = vmatmul.mubr.f32.gmra.mxu0 %v439
      %v762 = vpop.f32.mrf.mxu0
      %v763 = vadd.f32 %v602, %v762
      %v764 = vpop.f32.mrf.mxu0
      %v765 = vadd.f32 %v604, %v764
      %766 = vmatprep.mubr.f32.mxu0 0.0
      %767 = vmatmul.mubr.f32.gmra.mxu0 %v440
      %v768 = vpop.f32.mrf.mxu0
      %v769 = vadd.f32 %v608, %v768
      %v770 = vpop.f32.mrf.mxu0
      %v771 = vadd.f32 %v610, %v770
      %772 = vmatprep.mubr.f32.mxu0 0.0
      %773 = vmatmul.mubr.f32.gmra.mxu0 %v441
      %v774 = vpop.f32.mrf.mxu0
      %v775 = vadd.f32 %v614, %v774
      %v776 = vpop.f32.mrf.mxu0
      %v777 = vadd.f32 %v616, %v776
      %778 = vmatprep.mubr.f32.mxu0 0.0
      %779 = vmatmul.mubr.f32.gmra.mxu0 %v442
      %v780 = vpop.f32.mrf.mxu0
      %v781 = vadd.f32 %v620, %v780
      %v782 = vpop.f32.mrf.mxu0
      %v783 = vadd.f32 %v622, %v782
      %784 = vmatprep.mubr.f32.mxu0 0.0
      %785 = vmatmul.mubr.f32.gmra.mxu0 %v443
      %v786 = vpop.f32.mrf.mxu0
      %v787 = vadd.f32 %v626, %v786
      %v788 = vpop.f32.mrf.mxu0
      %v789 = vadd.f32 %v628, %v788
      %790 = vmatprep.mubr.f32.mxu0 0.0
      %791 = vmatmul.mubr.f32.gmra.mxu0 %v444
      %v792 = vpop.f32.mrf.mxu0
      %v793 = vadd.f32 %v632, %v792
      %v794 = vpop.f32.mrf.mxu0
      %v795 = vadd.f32 %v634, %v794
      %796 = vmatprep.mubr.f32.mxu0 0.0
      %797 = vmatmul.mubr.f32.gmra.mxu0 %v445
      %v798 = vpop.f32.mrf.mxu0
      %v799 = vadd.f32 %v638, %v798
      %v800 = vpop.f32.mrf.mxu0
      %v801 = vadd.f32 %v640, %v800
      %802 = vmatprep.mubr.f32.mxu0 0.0
      %803 = vmatmul.mubr.f32.gmra.mxu0 %v446
      %v804 = vpop.f32.mrf.mxu0
      %v805 = vadd.f32 %v644, %v804
      %v806 = vpop.f32.mrf.mxu0
      %v807 = vadd.f32 %v646, %v806
      %808 = vmatprep.mubr.f32.mxu0 0.0
      %809 = vmatmul.mubr.f32.gmra.mxu0 %v447
      %v810 = vpop.f32.mrf.mxu0
      %v811 = vadd.f32 %v650, %v810
      %v812 = vpop.f32.mrf.mxu0
      %v813 = vadd.f32 %v652, %v812
      %814 = vmatprep.mubr.f32.mxu0 0.0
      %815 = vmatmul.mubr.f32.gmra.mxu0 %v448
      %v816 = vpop.f32.mrf.mxu0
      %v817 = vadd.f32 %v656, %v816
      %v818 = vpop.f32.mrf.mxu0
      %v819 = vadd.f32 %v658, %v818
      %820 = vmatprep.mubr.f32.mxu0 0.0
      %821 = vmatmul.mubr.f32.gmra.mxu0 %v449
      %v822 = vpop.f32.mrf.mxu0
      %v823 = vadd.f32 %v662, %v822
      %v824 = vpop.f32.mrf.mxu0
      %v825 = vadd.f32 %v664, %v824
      %826 = vmatprep.mubr.f32.mxu0 0.0
      %827 = vmatmul.mubr.f32.gmra.mxu0 %v450
      %v828 = vpop.f32.mrf.mxu0
      %v829 = vadd.f32 %v668, %v828
      %v830 = vpop.f32.mrf.mxu0
      %v831 = vadd.f32 %v670, %v830
      %832 = vmatprep.mubr.f32.mxu0 0.0
      %833 = vmatmul.mubr.f32.gmra.mxu0 %v451
      %v834 = vpop.f32.mrf.mxu0
      %v835 = vadd.f32 %v674, %v834
      %v836 = vpop.f32.mrf.mxu0
      %v837 = vadd.f32 %v676, %v836
      %838 = vmatprep.mubr.f32.mxu0 0.0
      %839 = vmatmul.mubr.f32.gmra.mxu0 %v452
      %v840 = vpop.f32.mrf.mxu0
      %v841 = vadd.f32 %v680, %v840
      %v842 = vpop.f32.mrf.mxu0
      %v843 = vadd.f32 %v682, %v842
      %844 = vmatprep.mubr.f32.mxu0 0.0
      %845 = vmatmul.mubr.f32.gmra.mxu0 %v453
      %v846 = vpop.f32.mrf.mxu0
      %v847 = vadd.f32 %v686, %v846
      %v848 = vpop.f32.mrf.mxu0
      %v849 = vadd.f32 %v688, %v848
      %850 = vmatprep.mubr.f32.mxu0 0.0
      %851 = vmatmul.mubr.f32.gmra.mxu0 %v454
      %v852 = vpop.f32.mrf.mxu0
      %v853 = vadd.f32 %v692, %v852
      %v854 = vpop.f32.mrf.mxu0
      %v855 = vadd.f32 %v694, %v854
      %856 = vdwg.mxu0
      %v857 = vld [vmem:[%s2 + $0x200] sm:$0xff]
      %v858 = vld [vmem:[%s2 + $0x208] sm:$0xff]
      %v859 = vld [vmem:[%s2 + $0x210] sm:$0xff]
      %v860 = vld [vmem:[%s2 + $0x218] sm:$0xff]
      %v861 = vld [vmem:[%s2 + $0x220] sm:$0xff]
      %v862 = vld [vmem:[%s2 + $0x228] sm:$0xff]
      %v863 = vld [vmem:[%s2 + $0x230] sm:$0xff]
      %v864 = vld [vmem:[%s2 + $0x238] sm:$0xff]
      %v865 = vld [vmem:[%s2 + $0x240] sm:$0xff]
      %v866 = vld [vmem:[%s2 + $0x248] sm:$0xff]
      %v867 = vld [vmem:[%s2 + $0x250] sm:$0xff]
      %v868 = vld [vmem:[%s2 + $0x258] sm:$0xff]
      %v869 = vld [vmem:[%s2 + $0x260] sm:$0xff]
      %v870 = vld [vmem:[%s2 + $0x268] sm:$0xff]
      %v871 = vld [vmem:[%s2 + $0x270] sm:$0xff]
      %v872 = vld [vmem:[%s2 + $0x278] sm:$0xff]
      %v873 = vld [vmem:[%s2 + $0x280] sm:$0xff]
      %v874 = vld [vmem:[%s2 + $0x288] sm:$0xff]
      %v875 = vld [vmem:[%s2 + $0x290] sm:$0xff]
      %v876 = vld [vmem:[%s2 + $0x298] sm:$0xff]
      %v877 = vld [vmem:[%s2 + $0x2a0] sm:$0xff]
      %v878 = vld [vmem:[%s2 + $0x2a8] sm:$0xff]
      %v879 = vld [vmem:[%s2 + $0x2b0] sm:$0xff]
      %v880 = vld [vmem:[%s2 + $0x2b8] sm:$0xff]
      %v881 = vld [vmem:[%s2 + $0x2c0] sm:$0xff]
      %v882 = vld [vmem:[%s2 + $0x2c8] sm:$0xff]
      %v883 = vld [vmem:[%s2 + $0x2d0] sm:$0xff]
      %v884 = vld [vmem:[%s2 + $0x2d8] sm:$0xff]
      %v885 = vld [vmem:[%s2 + $0x2e0] sm:$0xff]
      %v886 = vld [vmem:[%s2 + $0x2e8] sm:$0xff]
      %v887 = vld [vmem:[%s2 + $0x2f0] sm:$0xff]
      %v888 = vld [vmem:[%s2 + $0x2f8] sm:$0xff]
      %v889 = vld [vmem:[%s2 + $0x300] sm:$0xff]
      %v890 = vld [vmem:[%s2 + $0x308] sm:$0xff]
      %v891 = vld [vmem:[%s2 + $0x310] sm:$0xff]
      %v892 = vld [vmem:[%s2 + $0x318] sm:$0xff]
      %v893 = vld [vmem:[%s2 + $0x320] sm:$0xff]
      %v894 = vld [vmem:[%s2 + $0x328] sm:$0xff]
      %v895 = vld [vmem:[%s2 + $0x330] sm:$0xff]
      %v896 = vld [vmem:[%s2 + $0x338] sm:$0xff]
      %v897 = vld [vmem:[%s2 + $0x340] sm:$0xff]
      %v898 = vld [vmem:[%s2 + $0x348] sm:$0xff]
      %v899 = vld [vmem:[%s2 + $0x350] sm:$0xff]
      %v900 = vld [vmem:[%s2 + $0x358] sm:$0xff]
      %v901 = vld [vmem:[%s2 + $0x360] sm:$0xff]
      %v902 = vld [vmem:[%s2 + $0x368] sm:$0xff]
      %v903 = vld [vmem:[%s2 + $0x370] sm:$0xff]
      %v904 = vld [vmem:[%s2 + $0x378] sm:$0xff]
      %v905 = vld [vmem:[%s2 + $0x380] sm:$0xff]
      %v906 = vld [vmem:[%s2 + $0x388] sm:$0xff]
      %v907 = vld [vmem:[%s2 + $0x390] sm:$0xff]
      %v908 = vld [vmem:[%s2 + $0x398] sm:$0xff]
      %v909 = vld [vmem:[%s2 + $0x3a0] sm:$0xff]
      %v910 = vld [vmem:[%s2 + $0x3a8] sm:$0xff]
      %v911 = vld [vmem:[%s2 + $0x3b0] sm:$0xff]
      %v912 = vld [vmem:[%s2 + $0x3b8] sm:$0xff]
      %v913 = vld [vmem:[%s2 + $0x3c0] sm:$0xff]
      %v914 = vld [vmem:[%s2 + $0x3c8] sm:$0xff]
      %v915 = vld [vmem:[%s2 + $0x3d0] sm:$0xff]
      %v916 = vld [vmem:[%s2 + $0x3d8] sm:$0xff]
      %v917 = vld [vmem:[%s2 + $0x3e0] sm:$0xff]
      %v918 = vld [vmem:[%s2 + $0x3e8] sm:$0xff]
      %v919 = vld [vmem:[%s2 + $0x3f0] sm:$0xff]
      %v920 = vld [vmem:[%s2 + $0x3f8] sm:$0xff]
      %921 = vmatprep.subr.mxu0 %v920
      %922 = vmatpush1.msra.mxu0 %v919
      %923 = vmatprep.subr.mxu0 %v918
      %924 = vmatpush1.msra.mxu0 %v917
      %925 = vmatprep.subr.mxu0 %v916
      %926 = vmatpush1.msra.mxu0 %v915
      %927 = vmatprep.subr.mxu0 %v914
      %928 = vmatpush1.msra.mxu0 %v913
      %929 = vmatprep.subr.mxu0 %v912
      %930 = vmatpush1.msra.mxu0 %v911
      %931 = vmatprep.subr.mxu0 %v910
      %932 = vmatpush1.msra.mxu0 %v909
      %933 = vmatprep.subr.mxu0 %v908
      %934 = vmatpush1.msra.mxu0 %v907
      %935 = vmatprep.subr.mxu0 %v906
      %936 = vmatpush1.msra.mxu0 %v905
      %937 = vmatprep.subr.mxu0 %v904
      %938 = vmatpush1.msra.mxu0 %v903
      %939 = vmatprep.subr.mxu0 %v902
      %940 = vmatpush1.msra.mxu0 %v901
      %941 = vmatprep.subr.mxu0 %v900
      %942 = vmatpush1.msra.mxu0 %v899
      %943 = vmatprep.subr.mxu0 %v898
      %944 = vmatpush1.msra.mxu0 %v897
      %945 = vmatprep.subr.mxu0 %v896
      %946 = vmatpush1.msra.mxu0 %v895
      %947 = vmatprep.subr.mxu0 %v894
      %948 = vmatpush1.msra.mxu0 %v893
      %949 = vmatprep.subr.mxu0 %v892
      %950 = vmatpush1.msra.mxu0 %v891
      %951 = vmatprep.subr.mxu0 %v890
      %952 = vmatpush1.msra.mxu0 %v889
      %953 = vmatprep.subr.mxu0 0.0
      %954 = vmatpush2.msra.mxu0 0.0
      %955 = vmatprep.subr.mxu0 0.0
      %956 = vmatpush2.msra.mxu0 0.0
      %957 = vmatprep.subr.mxu0 0.0
      %958 = vmatpush2.msra.mxu0 0.0
      %959 = vmatprep.subr.mxu0 0.0
      %960 = vmatpush2.msra.mxu0 0.0
      %961 = vmatprep.subr.mxu0 0.0
      %962 = vmatpush2.msra.mxu0 0.0
      %963 = vmatprep.subr.mxu0 0.0
      %964 = vmatpush2.msra.mxu0 0.0
      %965 = vmatprep.subr.mxu0 0.0
      %966 = vmatpush2.msra.mxu0 0.0
      %967 = vmatprep.subr.mxu0 0.0
      %968 = vmatpush2.msra.mxu0 0.0
      %969 = vmatprep.subr.mxu0 0.0
      %970 = vmatpush2.msra.mxu0 0.0
      %971 = vmatprep.subr.mxu0 0.0
      %972 = vmatpush2.msra.mxu0 0.0
      %973 = vmatprep.subr.mxu0 0.0
      %974 = vmatpush2.msra.mxu0 0.0
      %975 = vmatprep.subr.mxu0 0.0
      %976 = vmatpush2.msra.mxu0 0.0
      %977 = vmatprep.subr.mxu0 0.0
      %978 = vmatpush2.msra.mxu0 0.0
      %979 = vmatprep.subr.mxu0 0.0
      %980 = vmatpush2.msra.mxu0 0.0
      %981 = vmatprep.subr.mxu0 0.0
      %982 = vmatpush2.msra.mxu0 0.0
      %983 = vmatprep.subr.mxu0 0.0
      %984 = vmatpush2.msra.mxu0 0.0
      %985 = vmatprep.mubr.f32.mxu0 0.0
      %986 = vmatmul.mubr.f32.gmra.mxu0 %v455
      %v987 = vpop.f32.mrf.mxu0
      %v988 = vadd.f32 0.0, %v987
      %v989 = vpop.f32.mrf.mxu0
      %v990 = vadd.f32 0.0, %v989
      %991 = vmatprep.mubr.f32.mxu0 0.0
      %992 = vmatmul.mubr.f32.gmra.mxu0 %v456
      %v993 = vpop.f32.mrf.mxu0
      %v994 = vadd.f32 0.0, %v993
      %v995 = vpop.f32.mrf.mxu0
      %v996 = vadd.f32 0.0, %v995
      %997 = vmatprep.mubr.f32.mxu0 0.0
      %998 = vmatmul.mubr.f32.gmra.mxu0 %v457
      %v999 = vpop.f32.mrf.mxu0
      %v1000 = vadd.f32 0.0, %v999
      %v1001 = vpop.f32.mrf.mxu0
      %v1002 = vadd.f32 0.0, %v1001
      %1003 = vmatprep.mubr.f32.mxu0 0.0
      %1004 = vmatmul.mubr.f32.gmra.mxu0 %v458
      %v1005 = vpop.f32.mrf.mxu0
      %v1006 = vadd.f32 0.0, %v1005
      %v1007 = vpop.f32.mrf.mxu0
      %v1008 = vadd.f32 0.0, %v1007
      %1009 = vmatprep.mubr.f32.mxu0 0.0
      %1010 = vmatmul.mubr.f32.gmra.mxu0 %v459
      %v1011 = vpop.f32.mrf.mxu0
      %v1012 = vadd.f32 0.0, %v1011
      %v1013 = vpop.f32.mrf.mxu0
      %v1014 = vadd.f32 0.0, %v1013
      %1015 = vmatprep.mubr.f32.mxu0 0.0
      %1016 = vmatmul.mubr.f32.gmra.mxu0 %v460
      %v1017 = vpop.f32.mrf.mxu0
      %v1018 = vadd.f32 0.0, %v1017
      %v1019 = vpop.f32.mrf.mxu0
      %v1020 = vadd.f32 0.0, %v1019
      %1021 = vmatprep.mubr.f32.mxu0 0.0
      %1022 = vmatmul.mubr.f32.gmra.mxu0 %v461
      %v1023 = vpop.f32.mrf.mxu0
      %v1024 = vadd.f32 0.0, %v1023
      %v1025 = vpop.f32.mrf.mxu0
      %v1026 = vadd.f32 0.0, %v1025
      %1027 = vmatprep.mubr.f32.mxu0 0.0
      %1028 = vmatmul.mubr.f32.gmra.mxu0 %v462
      %v1029 = vpop.f32.mrf.mxu0
      %v1030 = vadd.f32 0.0, %v1029
      %v1031 = vpop.f32.mrf.mxu0
      %v1032 = vadd.f32 0.0, %v1031
      %1033 = vmatprep.mubr.f32.mxu0 0.0
      %1034 = vmatmul.mubr.f32.gmra.mxu0 %v463
      %v1035 = vpop.f32.mrf.mxu0
      %v1036 = vadd.f32 0.0, %v1035
      %v1037 = vpop.f32.mrf.mxu0
      %v1038 = vadd.f32 0.0, %v1037
      %1039 = vmatprep.mubr.f32.mxu0 0.0
      %1040 = vmatmul.mubr.f32.gmra.mxu0 %v464
      %v1041 = vpop.f32.mrf.mxu0
      %v1042 = vadd.f32 0.0, %v1041
      %v1043 = vpop.f32.mrf.mxu0
      %v1044 = vadd.f32 0.0, %v1043
      %1045 = vmatprep.mubr.f32.mxu0 0.0
      %1046 = vmatmul.mubr.f32.gmra.mxu0 %v465
      %v1047 = vpop.f32.mrf.mxu0
      %v1048 = vadd.f32 0.0, %v1047
      %v1049 = vpop.f32.mrf.mxu0
      %v1050 = vadd.f32 0.0, %v1049
      %1051 = vmatprep.mubr.f32.mxu0 0.0
      %1052 = vmatmul.mubr.f32.gmra.mxu0 %v466
      %v1053 = vpop.f32.mrf.mxu0
      %v1054 = vadd.f32 0.0, %v1053
      %v1055 = vpop.f32.mrf.mxu0
      %v1056 = vadd.f32 0.0, %v1055
      %1057 = vmatprep.mubr.f32.mxu0 0.0
      %1058 = vmatmul.mubr.f32.gmra.mxu0 %v467
      %v1059 = vpop.f32.mrf.mxu0
      %v1060 = vadd.f32 0.0, %v1059
      %v1061 = vpop.f32.mrf.mxu0
      %v1062 = vadd.f32 0.0, %v1061
      %1063 = vmatprep.mubr.f32.mxu0 0.0
      %1064 = vmatmul.mubr.f32.gmra.mxu0 %v468
      %v1065 = vpop.f32.mrf.mxu0
      %v1066 = vadd.f32 0.0, %v1065
      %v1067 = vpop.f32.mrf.mxu0
      %v1068 = vadd.f32 0.0, %v1067
      %1069 = vmatprep.mubr.f32.mxu0 0.0
      %1070 = vmatmul.mubr.f32.gmra.mxu0 %v469
      %v1071 = vpop.f32.mrf.mxu0
      %v1072 = vadd.f32 0.0, %v1071
      %v1073 = vpop.f32.mrf.mxu0
      %v1074 = vadd.f32 0.0, %v1073
      %1075 = vmatprep.mubr.f32.mxu0 0.0
      %1076 = vmatmul.mubr.f32.gmra.mxu0 %v470
      %v1077 = vpop.f32.mrf.mxu0
      %v1078 = vadd.f32 0.0, %v1077
      %v1079 = vpop.f32.mrf.mxu0
      %v1080 = vadd.f32 0.0, %v1079
      %1081 = vdwg.mxu0
      %1082 = vmatprep.subr.mxu0 %v888
      %1083 = vmatpush1.msra.mxu0 %v887
      %1084 = vmatprep.subr.mxu0 %v886
      %1085 = vmatpush1.msra.mxu0 %v885
      %1086 = vmatprep.subr.mxu0 %v884
      %1087 = vmatpush1.msra.mxu0 %v883
      %1088 = vmatprep.subr.mxu0 %v882
      %1089 = vmatpush1.msra.mxu0 %v881
      %1090 = vmatprep.subr.mxu0 %v880
      %1091 = vmatpush1.msra.mxu0 %v879
      %1092 = vmatprep.subr.mxu0 %v878
      %1093 = vmatpush1.msra.mxu0 %v877
      %1094 = vmatprep.subr.mxu0 %v876
      %1095 = vmatpush1.msra.mxu0 %v875
      %1096 = vmatprep.subr.mxu0 %v874
      %1097 = vmatpush1.msra.mxu0 %v873
      %1098 = vmatprep.subr.mxu0 %v872
      %1099 = vmatpush1.msra.mxu0 %v871
      %1100 = vmatprep.subr.mxu0 %v870
      %1101 = vmatpush1.msra.mxu0 %v869
      %1102 = vmatprep.subr.mxu0 %v868
      %1103 = vmatpush1.msra.mxu0 %v867
      %1104 = vmatprep.subr.mxu0 %v866
      %1105 = vmatpush1.msra.mxu0 %v865
      %1106 = vmatprep.subr.mxu0 %v864
      %1107 = vmatpush1.msra.mxu0 %v863
      %1108 = vmatprep.subr.mxu0 %v862
      %1109 = vmatpush1.msra.mxu0 %v861
      %1110 = vmatprep.subr.mxu0 %v860
      %1111 = vmatpush1.msra.mxu0 %v859
      %1112 = vmatprep.subr.mxu0 %v858
      %1113 = vmatpush1.msra.mxu0 %v857
      %1114 = vmatprep.subr.mxu0 0.0
      %1115 = vmatpush2.msra.mxu0 0.0
      %1116 = vmatprep.subr.mxu0 0.0
      %1117 = vmatpush2.msra.mxu0 0.0
      %1118 = vmatprep.subr.mxu0 0.0
      %1119 = vmatpush2.msra.mxu0 0.0
      %1120 = vmatprep.subr.mxu0 0.0
      %1121 = vmatpush2.msra.mxu0 0.0
      %1122 = vmatprep.subr.mxu0 0.0
      %1123 = vmatpush2.msra.mxu0 0.0
      %1124 = vmatprep.subr.mxu0 0.0
      %1125 = vmatpush2.msra.mxu0 0.0
      %1126 = vmatprep.subr.mxu0 0.0
      %1127 = vmatpush2.msra.mxu0 0.0
      %1128 = vmatprep.subr.mxu0 0.0
      %1129 = vmatpush2.msra.mxu0 0.0
      %1130 = vmatprep.subr.mxu0 0.0
      %1131 = vmatpush2.msra.mxu0 0.0
      %1132 = vmatprep.subr.mxu0 0.0
      %1133 = vmatpush2.msra.mxu0 0.0
      %1134 = vmatprep.subr.mxu0 0.0
      %1135 = vmatpush2.msra.mxu0 0.0
      %1136 = vmatprep.subr.mxu0 0.0
      %1137 = vmatpush2.msra.mxu0 0.0
      %1138 = vmatprep.subr.mxu0 0.0
      %1139 = vmatpush2.msra.mxu0 0.0
      %1140 = vmatprep.subr.mxu0 0.0
      %1141 = vmatpush2.msra.mxu0 0.0
      %1142 = vmatprep.subr.mxu0 0.0
      %1143 = vmatpush2.msra.mxu0 0.0
      %1144 = vmatprep.subr.mxu0 0.0
      %1145 = vmatpush2.msra.mxu0 0.0
      %1146 = vmatprep.mubr.f32.mxu0 0.0
      %1147 = vmatmul.mubr.f32.gmra.mxu0 %v439
      %v1148 = vpop.f32.mrf.mxu0
      %v1149 = vadd.f32 %v988, %v1148
      %v1150 = vpop.f32.mrf.mxu0
      %v1151 = vadd.f32 %v990, %v1150
      %1152 = vmatprep.mubr.f32.mxu0 0.0
      %1153 = vmatmul.mubr.f32.gmra.mxu0 %v440
      %v1154 = vpop.f32.mrf.mxu0
      %v1155 = vadd.f32 %v994, %v1154
      %v1156 = vpop.f32.mrf.mxu0
      %v1157 = vadd.f32 %v996, %v1156
      %1158 = vmatprep.mubr.f32.mxu0 0.0
      %1159 = vmatmul.mubr.f32.gmra.mxu0 %v441
      %v1160 = vpop.f32.mrf.mxu0
      %v1161 = vadd.f32 %v1000, %v1160
      %v1162 = vpop.f32.mrf.mxu0
      %v1163 = vadd.f32 %v1002, %v1162
      %1164 = vmatprep.mubr.f32.mxu0 0.0
      %1165 = vmatmul.mubr.f32.gmra.mxu0 %v442
      %v1166 = vpop.f32.mrf.mxu0
      %v1167 = vadd.f32 %v1006, %v1166
      %v1168 = vpop.f32.mrf.mxu0
      %v1169 = vadd.f32 %v1008, %v1168
      %1170 = vmatprep.mubr.f32.mxu0 0.0
      %1171 = vmatmul.mubr.f32.gmra.mxu0 %v443
      %v1172 = vpop.f32.mrf.mxu0
      %v1173 = vadd.f32 %v1012, %v1172
      %v1174 = vpop.f32.mrf.mxu0
      %v1175 = vadd.f32 %v1014, %v1174
      %1176 = vmatprep.mubr.f32.mxu0 0.0
      %1177 = vmatmul.mubr.f32.gmra.mxu0 %v444
      %v1178 = vpop.f32.mrf.mxu0
      %v1179 = vadd.f32 %v1018, %v1178
      %v1180 = vpop.f32.mrf.mxu0
      %v1181 = vadd.f32 %v1020, %v1180
      %1182 = vmatprep.mubr.f32.mxu0 0.0
      %1183 = vmatmul.mubr.f32.gmra.mxu0 %v445
      %v1184 = vpop.f32.mrf.mxu0
      %v1185 = vadd.f32 %v1024, %v1184
      %v1186 = vpop.f32.mrf.mxu0
      %v1187 = vadd.f32 %v1026, %v1186
      %1188 = vmatprep.mubr.f32.mxu0 0.0
      %1189 = vmatmul.mubr.f32.gmra.mxu0 %v446
      %v1190 = vpop.f32.mrf.mxu0
      %v1191 = vadd.f32 %v1030, %v1190
      %v1192 = vpop.f32.mrf.mxu0
      %v1193 = vadd.f32 %v1032, %v1192
      %1194 = vmatprep.mubr.f32.mxu0 0.0
      %1195 = vmatmul.mubr.f32.gmra.mxu0 %v447
      %v1196 = vpop.f32.mrf.mxu0
      %v1197 = vadd.f32 %v1036, %v1196
      %v1198 = vpop.f32.mrf.mxu0
      %v1199 = vadd.f32 %v1038, %v1198
      %1200 = vmatprep.mubr.f32.mxu0 0.0
      %1201 = vmatmul.mubr.f32.gmra.mxu0 %v448
      %v1202 = vpop.f32.mrf.mxu0
      %v1203 = vadd.f32 %v1042, %v1202
      %v1204 = vpop.f32.mrf.mxu0
      %v1205 = vadd.f32 %v1044, %v1204
      %1206 = vmatprep.mubr.f32.mxu0 0.0
      %1207 = vmatmul.mubr.f32.gmra.mxu0 %v449
      %v1208 = vpop.f32.mrf.mxu0
      %v1209 = vadd.f32 %v1048, %v1208
      %v1210 = vpop.f32.mrf.mxu0
      %v1211 = vadd.f32 %v1050, %v1210
      %1212 = vmatprep.mubr.f32.mxu0 0.0
      %1213 = vmatmul.mubr.f32.gmra.mxu0 %v450
      %v1214 = vpop.f32.mrf.mxu0
      %v1215 = vadd.f32 %v1054, %v1214
      %v1216 = vpop.f32.mrf.mxu0
      %v1217 = vadd.f32 %v1056, %v1216
      %1218 = vmatprep.mubr.f32.mxu0 0.0
      %1219 = vmatmul.mubr.f32.gmra.mxu0 %v451
      %v1220 = vpop.f32.mrf.mxu0
      %v1221 = vadd.f32 %v1060, %v1220
      %v1222 = vpop.f32.mrf.mxu0
      %v1223 = vadd.f32 %v1062, %v1222
      %1224 = vmatprep.mubr.f32.mxu0 0.0
      %1225 = vmatmul.mubr.f32.gmra.mxu0 %v452
      %v1226 = vpop.f32.mrf.mxu0
      %v1227 = vadd.f32 %v1066, %v1226
      %v1228 = vpop.f32.mrf.mxu0
      %v1229 = vadd.f32 %v1068, %v1228
      %1230 = vmatprep.mubr.f32.mxu0 0.0
      %1231 = vmatmul.mubr.f32.gmra.mxu0 %v453
      %v1232 = vpop.f32.mrf.mxu0
      %v1233 = vadd.f32 %v1072, %v1232
      %v1234 = vpop.f32.mrf.mxu0
      %v1235 = vadd.f32 %v1074, %v1234
      %1236 = vmatprep.mubr.f32.mxu0 0.0
      %1237 = vmatmul.mubr.f32.gmra.mxu0 %v454
      %v1238 = vpop.f32.mrf.mxu0
      %v1239 = vadd.f32 %v1078, %v1238
      %v1240 = vpop.f32.mrf.mxu0
      %v1241 = vadd.f32 %v1080, %v1240
      %1242 = vdwg.mxu0
      %vm1275 = vcmask 1046528
      %v1276 = vrot.slane %v1149, 1
      %v1277 = vrot.slane %v1155, 1
      %v1278 = vsel %vm1275, %v1276, %v1277
      %v1279 = vrot.slane %v1151, 1
      %v1280 = vrot.slane %v1157, 1
      %v1281 = vsel %vm1275, %v1279, %v1280
      %v1282 = vrot.slane %v1161, 1
      %v1283 = vsel %vm1275, %v1277, %v1282
      %v1284 = vrot.slane %v1163, 1
      %v1285 = vsel %vm1275, %v1280, %v1284
      %v1286 = vrot.slane %v1167, 1
      %v1287 = vsel %vm1275, %v1282, %v1286
      %v1288 = vrot.slane %v1169, 1
      %v1289 = vsel %vm1275, %v1284, %v1288
      %v1290 = vrot.slane %v1173, 1
      %v1291 = vsel %vm1275, %v1286, %v1290
      %v1292 = vrot.slane %v1175, 1
      %v1293 = vsel %vm1275, %v1288, %v1292
      %v1294 = vrot.slane %v1179, 1
      %v1295 = vsel %vm1275, %v1290, %v1294
      %v1296 = vrot.slane %v1181, 1
      %v1297 = vsel %vm1275, %v1292, %v1296
      %v1298 = vrot.slane %v1185, 1
      %v1299 = vsel %vm1275, %v1294, %v1298
      %v1300 = vrot.slane %v1187, 1
      %v1301 = vsel %vm1275, %v1296, %v1300
      %v1302 = vrot.slane %v1191, 1
      %v1303 = vsel %vm1275, %v1298, %v1302
      %v1304 = vrot.slane %v1193, 1
      %v1305 = vsel %vm1275, %v1300, %v1304
      %v1306 = vrot.slane %v1197, 1
      %v1307 = vsel %vm1275, %v1302, %v1306
      %v1308 = vrot.slane %v1199, 1
      %v1309 = vsel %vm1275, %v1304, %v1308
      %v1310 = vrot.slane %v1203, 1
      %v1311 = vsel %vm1275, %v1306, %v1310
      %v1312 = vrot.slane %v1205, 1
      %v1313 = vsel %vm1275, %v1308, %v1312
      %v1314 = vrot.slane %v1209, 1
      %v1315 = vsel %vm1275, %v1310, %v1314
      %v1316 = vrot.slane %v1211, 1
      %v1317 = vsel %vm1275, %v1312, %v1316
      %v1318 = vrot.slane %v1215, 1
      %v1319 = vsel %vm1275, %v1314, %v1318
      %v1320 = vrot.slane %v1217, 1
      %v1321 = vsel %vm1275, %v1316, %v1320
      %v1322 = vrot.slane %v1221, 1
      %v1323 = vsel %vm1275, %v1318, %v1322
      %v1324 = vrot.slane %v1223, 1
      %v1325 = vsel %vm1275, %v1320, %v1324
      %v1326 = vrot.slane %v1227, 1
      %v1327 = vsel %vm1275, %v1322, %v1326
      %v1328 = vrot.slane %v1229, 1
      %v1329 = vsel %vm1275, %v1324, %v1328
      %v1330 = vrot.slane %v1233, 1
      %v1331 = vsel %vm1275, %v1326, %v1330
      %v1332 = vrot.slane %v1235, 1
      %v1333 = vsel %vm1275, %v1328, %v1332
      %v1334 = vrot.slane %v1239, 1
      %v1335 = vsel %vm1275, %v1330, %v1334
      %v1336 = vrot.slane %v1241, 1
      %v1337 = vsel %vm1275, %v1332, %v1336
      %v1372 = vsel %vm1275, %v1334, %v1276
      %v1373 = vsel %vm1275, %v1336, %v1279
      %v1374 = vadd.f32 %v763, %v1278
      %v1375 = vadd.f32 %v765, %v1281
      %v1376 = vadd.f32 %v769, %v1283
      %v1377 = vadd.f32 %v771, %v1285
      %v1378 = vadd.f32 %v775, %v1287
      %v1379 = vadd.f32 %v777, %v1289
      %v1380 = vadd.f32 %v781, %v1291
      %v1381 = vadd.f32 %v783, %v1293
      %v1382 = vadd.f32 %v787, %v1295
      %v1383 = vadd.f32 %v789, %v1297
      %v1384 = vadd.f32 %v793, %v1299
      %v1385 = vadd.f32 %v795, %v1301
      %v1386 = vadd.f32 %v799, %v1303
      %v1387 = vadd.f32 %v801, %v1305
      %v1388 = vadd.f32 %v805, %v1307
      %v1389 = vadd.f32 %v807, %v1309
      %v1390 = vadd.f32 %v811, %v1311
      %v1391 = vadd.f32 %v813, %v1313
      %v1392 = vadd.f32 %v817, %v1315
      %v1393 = vadd.f32 %v819, %v1317
      %v1394 = vadd.f32 %v823, %v1319
      %v1395 = vadd.f32 %v825, %v1321
      %v1396 = vadd.f32 %v829, %v1323
      %v1397 = vadd.f32 %v831, %v1325
      %v1398 = vadd.f32 %v835, %v1327
      %v1399 = vadd.f32 %v837, %v1329
      %v1400 = vadd.f32 %v841, %v1331
      %v1401 = vadd.f32 %v843, %v1333
      %v1402 = vadd.f32 %v847, %v1335
      %v1403 = vadd.f32 %v849, %v1337
      %v1404 = vadd.f32 %v853, %v1372
      %v1405 = vadd.f32 %v855, %v1373
      %v1406 = vld [vmem:[%s2 + $0x400] sm:$0xff]
      %v1407 = vld [vmem:[%s2 + $0x408] sm:$0xff]
      %v1408 = vld [vmem:[%s2 + $0x410] sm:$0xff]
      %v1409 = vld [vmem:[%s2 + $0x418] sm:$0xff]
      %v1410 = vld [vmem:[%s2 + $0x420] sm:$0xff]
      %v1411 = vld [vmem:[%s2 + $0x428] sm:$0xff]
      %v1412 = vld [vmem:[%s2 + $0x430] sm:$0xff]
      %v1413 = vld [vmem:[%s2 + $0x438] sm:$0xff]
      %v1414 = vld [vmem:[%s2 + $0x440] sm:$0xff]
      %v1415 = vld [vmem:[%s2 + $0x448] sm:$0xff]
      %v1416 = vld [vmem:[%s2 + $0x450] sm:$0xff]
      %v1417 = vld [vmem:[%s2 + $0x458] sm:$0xff]
      %v1418 = vld [vmem:[%s2 + $0x460] sm:$0xff]
      %v1419 = vld [vmem:[%s2 + $0x468] sm:$0xff]
      %v1420 = vld [vmem:[%s2 + $0x470] sm:$0xff]
      %v1421 = vld [vmem:[%s2 + $0x478] sm:$0xff]
      %v1422 = vld [vmem:[%s2 + $0x480] sm:$0xff]
      %v1423 = vld [vmem:[%s2 + $0x488] sm:$0xff]
      %v1424 = vld [vmem:[%s2 + $0x490] sm:$0xff]
      %v1425 = vld [vmem:[%s2 + $0x498] sm:$0xff]
      %v1426 = vld [vmem:[%s2 + $0x4a0] sm:$0xff]
      %v1427 = vld [vmem:[%s2 + $0x4a8] sm:$0xff]
      %v1428 = vld [vmem:[%s2 + $0x4b0] sm:$0xff]
      %v1429 = vld [vmem:[%s2 + $0x4b8] sm:$0xff]
      %v1430 = vld [vmem:[%s2 + $0x4c0] sm:$0xff]
      %v1431 = vld [vmem:[%s2 + $0x4c8] sm:$0xff]
      %v1432 = vld [vmem:[%s2 + $0x4d0] sm:$0xff]
      %v1433 = vld [vmem:[%s2 + $0x4d8] sm:$0xff]
      %v1434 = vld [vmem:[%s2 + $0x4e0] sm:$0xff]
      %v1435 = vld [vmem:[%s2 + $0x4e8] sm:$0xff]
      %v1436 = vld [vmem:[%s2 + $0x4f0] sm:$0xff]
      %v1437 = vld [vmem:[%s2 + $0x4f8] sm:$0xff]
      %1438 = vmatprep.subr.mxu0 %v1437
      %1439 = vmatpush1.msra.mxu0 %v1436
      %1440 = vmatprep.subr.mxu0 %v1435
      %1441 = vmatpush1.msra.mxu0 %v1434
      %1442 = vmatprep.subr.mxu0 %v1433
      %1443 = vmatpush1.msra.mxu0 %v1432
      %1444 = vmatprep.subr.mxu0 %v1431
      %1445 = vmatpush1.msra.mxu0 %v1430
      %1446 = vmatprep.subr.mxu0 %v1429
      %1447 = vmatpush1.msra.mxu0 %v1428
      %1448 = vmatprep.subr.mxu0 %v1427
      %1449 = vmatpush1.msra.mxu0 %v1426
      %1450 = vmatprep.subr.mxu0 %v1425
      %1451 = vmatpush1.msra.mxu0 %v1424
      %1452 = vmatprep.subr.mxu0 %v1423
      %1453 = vmatpush1.msra.mxu0 %v1422
      %1454 = vmatprep.subr.mxu0 %v1421
      %1455 = vmatpush1.msra.mxu0 %v1420
      %1456 = vmatprep.subr.mxu0 %v1419
      %1457 = vmatpush1.msra.mxu0 %v1418
      %1458 = vmatprep.subr.mxu0 %v1417
      %1459 = vmatpush1.msra.mxu0 %v1416
      %1460 = vmatprep.subr.mxu0 %v1415
      %1461 = vmatpush1.msra.mxu0 %v1414
      %1462 = vmatprep.subr.mxu0 %v1413
      %1463 = vmatpush1.msra.mxu0 %v1412
      %1464 = vmatprep.subr.mxu0 %v1411
      %1465 = vmatpush1.msra.mxu0 %v1410
      %1466 = vmatprep.subr.mxu0 %v1409
      %1467 = vmatpush1.msra.mxu0 %v1408
      %1468 = vmatprep.subr.mxu0 %v1407
      %1469 = vmatpush1.msra.mxu0 %v1406
      %1470 = vmatprep.subr.mxu0 0.0
      %1471 = vmatpush2.msra.mxu0 0.0
      %1472 = vmatprep.subr.mxu0 0.0
      %1473 = vmatpush2.msra.mxu0 0.0
      %1474 = vmatprep.subr.mxu0 0.0
      %1475 = vmatpush2.msra.mxu0 0.0
      %1476 = vmatprep.subr.mxu0 0.0
      %1477 = vmatpush2.msra.mxu0 0.0
      %1478 = vmatprep.subr.mxu0 0.0
      %1479 = vmatpush2.msra.mxu0 0.0
      %1480 = vmatprep.subr.mxu0 0.0
      %1481 = vmatpush2.msra.mxu0 0.0
      %1482 = vmatprep.subr.mxu0 0.0
      %1483 = vmatpush2.msra.mxu0 0.0
      %1484 = vmatprep.subr.mxu0 0.0
      %1485 = vmatpush2.msra.mxu0 0.0
      %1486 = vmatprep.subr.mxu0 0.0
      %1487 = vmatpush2.msra.mxu0 0.0
      %1488 = vmatprep.subr.mxu0 0.0
      %1489 = vmatpush2.msra.mxu0 0.0
      %1490 = vmatprep.subr.mxu0 0.0
      %1491 = vmatpush2.msra.mxu0 0.0
      %1492 = vmatprep.subr.mxu0 0.0
      %1493 = vmatpush2.msra.mxu0 0.0
      %1494 = vmatprep.subr.mxu0 0.0
      %1495 = vmatpush2.msra.mxu0 0.0
      %1496 = vmatprep.subr.mxu0 0.0
      %1497 = vmatpush2.msra.mxu0 0.0
      %1498 = vmatprep.subr.mxu0 0.0
      %1499 = vmatpush2.msra.mxu0 0.0
      %1500 = vmatprep.subr.mxu0 0.0
      %1501 = vmatpush2.msra.mxu0 0.0
      %1502 = vmatprep.mubr.f32.mxu0 0.0
      %1503 = vmatmul.mubr.f32.gmra.mxu0 %v439
      %v1504 = vpop.f32.mrf.mxu0
      %v1505 = vadd.f32 0.0, %v1504
      %v1506 = vpop.f32.mrf.mxu0
      %v1507 = vadd.f32 0.0, %v1506
      %1508 = vmatprep.mubr.f32.mxu0 0.0
      %1509 = vmatmul.mubr.f32.gmra.mxu0 %v440
      %v1510 = vpop.f32.mrf.mxu0
      %v1511 = vadd.f32 0.0, %v1510
      %v1512 = vpop.f32.mrf.mxu0
      %v1513 = vadd.f32 0.0, %v1512
      %1514 = vmatprep.mubr.f32.mxu0 0.0
      %1515 = vmatmul.mubr.f32.gmra.mxu0 %v441
      %v1516 = vpop.f32.mrf.mxu0
      %v1517 = vadd.f32 0.0, %v1516
      %v1518 = vpop.f32.mrf.mxu0
      %v1519 = vadd.f32 0.0, %v1518
      %1520 = vmatprep.mubr.f32.mxu0 0.0
      %1521 = vmatmul.mubr.f32.gmra.mxu0 %v442
      %v1522 = vpop.f32.mrf.mxu0
      %v1523 = vadd.f32 0.0, %v1522
      %v1524 = vpop.f32.mrf.mxu0
      %v1525 = vadd.f32 0.0, %v1524
      %1526 = vmatprep.mubr.f32.mxu0 0.0
      %1527 = vmatmul.mubr.f32.gmra.mxu0 %v443
      %v1528 = vpop.f32.mrf.mxu0
      %v1529 = vadd.f32 0.0, %v1528
      %v1530 = vpop.f32.mrf.mxu0
      %v1531 = vadd.f32 0.0, %v1530
      %1532 = vmatprep.mubr.f32.mxu0 0.0
      %1533 = vmatmul.mubr.f32.gmra.mxu0 %v444
      %v1534 = vpop.f32.mrf.mxu0
      %v1535 = vadd.f32 0.0, %v1534
      %v1536 = vpop.f32.mrf.mxu0
      %v1537 = vadd.f32 0.0, %v1536
      %1538 = vmatprep.mubr.f32.mxu0 0.0
      %1539 = vmatmul.mubr.f32.gmra.mxu0 %v445
      %v1540 = vpop.f32.mrf.mxu0
      %v1541 = vadd.f32 0.0, %v1540
      %v1542 = vpop.f32.mrf.mxu0
      %v1543 = vadd.f32 0.0, %v1542
      %1544 = vmatprep.mubr.f32.mxu0 0.0
      %1545 = vmatmul.mubr.f32.gmra.mxu0 %v446
      %v1546 = vpop.f32.mrf.mxu0
      %v1547 = vadd.f32 0.0, %v1546
      %v1548 = vpop.f32.mrf.mxu0
      %v1549 = vadd.f32 0.0, %v1548
      %1550 = vmatprep.mubr.f32.mxu0 0.0
      %1551 = vmatmul.mubr.f32.gmra.mxu0 %v447
      %v1552 = vpop.f32.mrf.mxu0
      %v1553 = vadd.f32 0.0, %v1552
      %v1554 = vpop.f32.mrf.mxu0
      %v1555 = vadd.f32 0.0, %v1554
      %1556 = vmatprep.mubr.f32.mxu0 0.0
      %1557 = vmatmul.mubr.f32.gmra.mxu0 %v448
      %v1558 = vpop.f32.mrf.mxu0
      %v1559 = vadd.f32 0.0, %v1558
      %v1560 = vpop.f32.mrf.mxu0
      %v1561 = vadd.f32 0.0, %v1560
      %1562 = vmatprep.mubr.f32.mxu0 0.0
      %1563 = vmatmul.mubr.f32.gmra.mxu0 %v449
      %v1564 = vpop.f32.mrf.mxu0
      %v1565 = vadd.f32 0.0, %v1564
      %v1566 = vpop.f32.mrf.mxu0
      %v1567 = vadd.f32 0.0, %v1566
      %1568 = vmatprep.mubr.f32.mxu0 0.0
      %1569 = vmatmul.mubr.f32.gmra.mxu0 %v450
      %v1570 = vpop.f32.mrf.mxu0
      %v1571 = vadd.f32 0.0, %v1570
      %v1572 = vpop.f32.mrf.mxu0
      %v1573 = vadd.f32 0.0, %v1572
      %1574 = vmatprep.mubr.f32.mxu0 0.0
      %1575 = vmatmul.mubr.f32.gmra.mxu0 %v451
      %v1576 = vpop.f32.mrf.mxu0
      %v1577 = vadd.f32 0.0, %v1576
      %v1578 = vpop.f32.mrf.mxu0
      %v1579 = vadd.f32 0.0, %v1578
      %1580 = vmatprep.mubr.f32.mxu0 0.0
      %1581 = vmatmul.mubr.f32.gmra.mxu0 %v452
      %v1582 = vpop.f32.mrf.mxu0
      %v1583 = vadd.f32 0.0, %v1582
      %v1584 = vpop.f32.mrf.mxu0
      %v1585 = vadd.f32 0.0, %v1584
      %1586 = vmatprep.mubr.f32.mxu0 0.0
      %1587 = vmatmul.mubr.f32.gmra.mxu0 %v453
      %v1588 = vpop.f32.mrf.mxu0
      %v1589 = vadd.f32 0.0, %v1588
      %v1590 = vpop.f32.mrf.mxu0
      %v1591 = vadd.f32 0.0, %v1590
      %1592 = vmatprep.mubr.f32.mxu0 0.0
      %1593 = vmatmul.mubr.f32.gmra.mxu0 %v454
      %v1594 = vpop.f32.mrf.mxu0
      %v1595 = vadd.f32 0.0, %v1594
      %v1596 = vpop.f32.mrf.mxu0
      %v1597 = vadd.f32 0.0, %v1596
      %1598 = vdwg.mxu0
      %vm1631 = vcmask 1045504
      %v1632 = vrot.slane %v1505, 2
      %v1633 = vrot.slane %v1511, 2
      %v1634 = vsel %vm1631, %v1632, %v1633
      %v1635 = vrot.slane %v1507, 2
      %v1636 = vrot.slane %v1513, 2
      %v1637 = vsel %vm1631, %v1635, %v1636
      %v1638 = vrot.slane %v1517, 2
      %v1639 = vsel %vm1631, %v1633, %v1638
      %v1640 = vrot.slane %v1519, 2
      %v1641 = vsel %vm1631, %v1636, %v1640
      %v1642 = vrot.slane %v1523, 2
      %v1643 = vsel %vm1631, %v1638, %v1642
      %v1644 = vrot.slane %v1525, 2
      %v1645 = vsel %vm1631, %v1640, %v1644
      %v1646 = vrot.slane %v1529, 2
      %v1647 = vsel %vm1631, %v1642, %v1646
      %v1648 = vrot.slane %v1531, 2
      %v1649 = vsel %vm1631, %v1644, %v1648
      %v1650 = vrot.slane %v1535, 2
      %v1651 = vsel %vm1631, %v1646, %v1650
      %v1652 = vrot.slane %v1537, 2
      %v1653 = vsel %vm1631, %v1648, %v1652
      %v1654 = vrot.slane %v1541, 2
      %v1655 = vsel %vm1631, %v1650, %v1654
      %v1656 = vrot.slane %v1543, 2
      %v1657 = vsel %vm1631, %v1652, %v1656
      %v1658 = vrot.slane %v1547, 2
      %v1659 = vsel %vm1631, %v1654, %v1658
      %v1660 = vrot.slane %v1549, 2
      %v1661 = vsel %vm1631, %v1656, %v1660
      %v1662 = vrot.slane %v1553, 2
      %v1663 = vsel %vm1631, %v1658, %v1662
      %v1664 = vrot.slane %v1555, 2
      %v1665 = vsel %vm1631, %v1660, %v1664
      %v1666 = vrot.slane %v1559, 2
      %v1667 = vsel %vm1631, %v1662, %v1666
      %v1668 = vrot.slane %v1561, 2
      %v1669 = vsel %vm1631, %v1664, %v1668
      %v1670 = vrot.slane %v1565, 2
      %v1671 = vsel %vm1631, %v1666, %v1670
      %v1672 = vrot.slane %v1567, 2
      %v1673 = vsel %vm1631, %v1668, %v1672
      %v1674 = vrot.slane %v1571, 2
      %v1675 = vsel %vm1631, %v1670, %v1674
      %v1676 = vrot.slane %v1573, 2
      %v1677 = vsel %vm1631, %v1672, %v1676
      %v1678 = vrot.slane %v1577, 2
      %v1679 = vsel %vm1631, %v1674, %v1678
      %v1680 = vrot.slane %v1579, 2
      %v1681 = vsel %vm1631, %v1676, %v1680
      %v1682 = vrot.slane %v1583, 2
      %v1683 = vsel %vm1631, %v1678, %v1682
      %v1684 = vrot.slane %v1585, 2
      %v1685 = vsel %vm1631, %v1680, %v1684
      %v1686 = vrot.slane %v1589, 2
      %v1687 = vsel %vm1631, %v1682, %v1686
      %v1688 = vrot.slane %v1591, 2
      %v1689 = vsel %vm1631, %v1684, %v1688
      %v1690 = vrot.slane %v1595, 2
      %v1691 = vsel %vm1631, %v1686, %v1690
      %v1692 = vrot.slane %v1597, 2
      %v1693 = vsel %vm1631, %v1688, %v1692
      %v1728 = vsel %vm1631, %v1690, %v1632
      %v1729 = vsel %vm1631, %v1692, %v1635
      %v1730 = vadd.f32 %v1374, %v1634
      %v1731 = vadd.f32 %v1375, %v1637
      %v1732 = vadd.f32 %v1376, %v1639
      %v1733 = vadd.f32 %v1377, %v1641
      %v1734 = vadd.f32 %v1378, %v1643
      %v1735 = vadd.f32 %v1379, %v1645
      %v1736 = vadd.f32 %v1380, %v1647
      %v1737 = vadd.f32 %v1381, %v1649
      %v1738 = vadd.f32 %v1382, %v1651
      %v1739 = vadd.f32 %v1383, %v1653
      %v1740 = vadd.f32 %v1384, %v1655
      %v1741 = vadd.f32 %v1385, %v1657
      %v1742 = vadd.f32 %v1386, %v1659
      %v1743 = vadd.f32 %v1387, %v1661
      %v1744 = vadd.f32 %v1388, %v1663
      %v1745 = vadd.f32 %v1389, %v1665
      %v1746 = vadd.f32 %v1390, %v1667
      %v1747 = vadd.f32 %v1391, %v1669
      %v1748 = vadd.f32 %v1392, %v1671
      %v1749 = vadd.f32 %v1393, %v1673
      %v1750 = vadd.f32 %v1394, %v1675
      %v1751 = vadd.f32 %v1395, %v1677
      %v1752 = vadd.f32 %v1396, %v1679
      %v1753 = vadd.f32 %v1397, %v1681
      %v1754 = vadd.f32 %v1398, %v1683
      %v1755 = vadd.f32 %v1399, %v1685
      %v1756 = vadd.f32 %v1400, %v1687
      %v1757 = vadd.f32 %v1401, %v1689
      %v1758 = vadd.f32 %v1402, %v1691
      %v1759 = vadd.f32 %v1403, %v1693
      %v1760 = vadd.f32 %v1404, %v1728
      %v1761 = vadd.f32 %v1405, %v1729
      %1762 = vmatprep.subr.mxu0 %v888
      %1763 = vmatpush1.msra.mxu0 %v887
      %1764 = vmatprep.subr.mxu0 %v886
      %1765 = vmatpush1.msra.mxu0 %v885
      %1766 = vmatprep.subr.mxu0 %v884
      %1767 = vmatpush1.msra.mxu0 %v883
      %1768 = vmatprep.subr.mxu0 %v882
      %1769 = vmatpush1.msra.mxu0 %v881
      %1770 = vmatprep.subr.mxu0 %v880
      %1771 = vmatpush1.msra.mxu0 %v879
      %1772 = vmatprep.subr.mxu0 %v878
      %1773 = vmatpush1.msra.mxu0 %v877
      %1774 = vmatprep.subr.mxu0 %v876
      %1775 = vmatpush1.msra.mxu0 %v875
      %1776 = vmatprep.subr.mxu0 %v874
      %1777 = vmatpush1.msra.mxu0 %v873
      %1778 = vmatprep.subr.mxu0 %v872
      %1779 = vmatpush1.msra.mxu0 %v871
      %1780 = vmatprep.subr.mxu0 %v870
      %1781 = vmatpush1.msra.mxu0 %v869
      %1782 = vmatprep.subr.mxu0 %v868
      %1783 = vmatpush1.msra.mxu0 %v867
      %1784 = vmatprep.subr.mxu0 %v866
      %1785 = vmatpush1.msra.mxu0 %v865
      %1786 = vmatprep.subr.mxu0 %v864
      %1787 = vmatpush1.msra.mxu0 %v863
      %1788 = vmatprep.subr.mxu0 %v862
      %1789 = vmatpush1.msra.mxu0 %v861
      %1790 = vmatprep.subr.mxu0 %v860
      %1791 = vmatpush1.msra.mxu0 %v859
      %1792 = vmatprep.subr.mxu0 %v858
      %1793 = vmatpush1.msra.mxu0 %v857
      %1794 = vmatprep.subr.mxu0 0.0
      %1795 = vmatpush2.msra.mxu0 0.0
      %1796 = vmatprep.subr.mxu0 0.0
      %1797 = vmatpush2.msra.mxu0 0.0
      %1798 = vmatprep.subr.mxu0 0.0
      %1799 = vmatpush2.msra.mxu0 0.0
      %1800 = vmatprep.subr.mxu0 0.0
      %1801 = vmatpush2.msra.mxu0 0.0
      %1802 = vmatprep.subr.mxu0 0.0
      %1803 = vmatpush2.msra.mxu0 0.0
      %1804 = vmatprep.subr.mxu0 0.0
      %1805 = vmatpush2.msra.mxu0 0.0
      %1806 = vmatprep.subr.mxu0 0.0
      %1807 = vmatpush2.msra.mxu0 0.0
      %1808 = vmatprep.subr.mxu0 0.0
      %1809 = vmatpush2.msra.mxu0 0.0
      %1810 = vmatprep.subr.mxu0 0.0
      %1811 = vmatpush2.msra.mxu0 0.0
      %1812 = vmatprep.subr.mxu0 0.0
      %1813 = vmatpush2.msra.mxu0 0.0
      %1814 = vmatprep.subr.mxu0 0.0
      %1815 = vmatpush2.msra.mxu0 0.0
      %1816 = vmatprep.subr.mxu0 0.0
      %1817 = vmatpush2.msra.mxu0 0.0
      %1818 = vmatprep.subr.mxu0 0.0
      %1819 = vmatpush2.msra.mxu0 0.0
      %1820 = vmatprep.subr.mxu0 0.0
      %1821 = vmatpush2.msra.mxu0 0.0
      %1822 = vmatprep.subr.mxu0 0.0
      %1823 = vmatpush2.msra.mxu0 0.0
      %1824 = vmatprep.subr.mxu0 0.0
      %1825 = vmatpush2.msra.mxu0 0.0
      %1826 = vmatprep.mubr.f32.mxu0 0.0
      %1827 = vmatmul.mubr.f32.gmra.mxu0 %v455
      %v1828 = vpop.f32.mrf.mxu0
      %v1829 = vadd.f32 0.0, %v1828
      %v1830 = vpop.f32.mrf.mxu0
      %v1831 = vadd.f32 0.0, %v1830
      %1832 = vmatprep.mubr.f32.mxu0 0.0
      %1833 = vmatmul.mubr.f32.gmra.mxu0 %v456
      %v1834 = vpop.f32.mrf.mxu0
      %v1835 = vadd.f32 0.0, %v1834
      %v1836 = vpop.f32.mrf.mxu0
      %v1837 = vadd.f32 0.0, %v1836
      %1838 = vmatprep.mubr.f32.mxu0 0.0
      %1839 = vmatmul.mubr.f32.gmra.mxu0 %v457
      %v1840 = vpop.f32.mrf.mxu0
      %v1841 = vadd.f32 0.0, %v1840
      %v1842 = vpop.f32.mrf.mxu0
      %v1843 = vadd.f32 0.0, %v1842
      %1844 = vmatprep.mubr.f32.mxu0 0.0
      %1845 = vmatmul.mubr.f32.gmra.mxu0 %v458
      %v1846 = vpop.f32.mrf.mxu0
      %v1847 = vadd.f32 0.0, %v1846
      %v1848 = vpop.f32.mrf.mxu0
      %v1849 = vadd.f32 0.0, %v1848
      %1850 = vmatprep.mubr.f32.mxu0 0.0
      %1851 = vmatmul.mubr.f32.gmra.mxu0 %v459
      %v1852 = vpop.f32.mrf.mxu0
      %v1853 = vadd.f32 0.0, %v1852
      %v1854 = vpop.f32.mrf.mxu0
      %v1855 = vadd.f32 0.0, %v1854
      %1856 = vmatprep.mubr.f32.mxu0 0.0
      %1857 = vmatmul.mubr.f32.gmra.mxu0 %v460
      %v1858 = vpop.f32.mrf.mxu0
      %v1859 = vadd.f32 0.0, %v1858
      %v1860 = vpop.f32.mrf.mxu0
      %v1861 = vadd.f32 0.0, %v1860
      %1862 = vmatprep.mubr.f32.mxu0 0.0
      %1863 = vmatmul.mubr.f32.gmra.mxu0 %v461
      %v1864 = vpop.f32.mrf.mxu0
      %v1865 = vadd.f32 0.0, %v1864
      %v1866 = vpop.f32.mrf.mxu0
      %v1867 = vadd.f32 0.0, %v1866
      %1868 = vmatprep.mubr.f32.mxu0 0.0
      %1869 = vmatmul.mubr.f32.gmra.mxu0 %v462
      %v1870 = vpop.f32.mrf.mxu0
      %v1871 = vadd.f32 0.0, %v1870
      %v1872 = vpop.f32.mrf.mxu0
      %v1873 = vadd.f32 0.0, %v1872
      %1874 = vmatprep.mubr.f32.mxu0 0.0
      %1875 = vmatmul.mubr.f32.gmra.mxu0 %v463
      %v1876 = vpop.f32.mrf.mxu0
      %v1877 = vadd.f32 0.0, %v1876
      %v1878 = vpop.f32.mrf.mxu0
      %v1879 = vadd.f32 0.0, %v1878
      %1880 = vmatprep.mubr.f32.mxu0 0.0
      %1881 = vmatmul.mubr.f32.gmra.mxu0 %v464
      %v1882 = vpop.f32.mrf.mxu0
      %v1883 = vadd.f32 0.0, %v1882
      %v1884 = vpop.f32.mrf.mxu0
      %v1885 = vadd.f32 0.0, %v1884
      %1886 = vmatprep.mubr.f32.mxu0 0.0
      %1887 = vmatmul.mubr.f32.gmra.mxu0 %v465
      %v1888 = vpop.f32.mrf.mxu0
      %v1889 = vadd.f32 0.0, %v1888
      %v1890 = vpop.f32.mrf.mxu0
      %v1891 = vadd.f32 0.0, %v1890
      %1892 = vmatprep.mubr.f32.mxu0 0.0
      %1893 = vmatmul.mubr.f32.gmra.mxu0 %v466
      %v1894 = vpop.f32.mrf.mxu0
      %v1895 = vadd.f32 0.0, %v1894
      %v1896 = vpop.f32.mrf.mxu0
      %v1897 = vadd.f32 0.0, %v1896
      %1898 = vmatprep.mubr.f32.mxu0 0.0
      %1899 = vmatmul.mubr.f32.gmra.mxu0 %v467
      %v1900 = vpop.f32.mrf.mxu0
      %v1901 = vadd.f32 0.0, %v1900
      %v1902 = vpop.f32.mrf.mxu0
      %v1903 = vadd.f32 0.0, %v1902
      %1904 = vmatprep.mubr.f32.mxu0 0.0
      %1905 = vmatmul.mubr.f32.gmra.mxu0 %v468
      %v1906 = vpop.f32.mrf.mxu0
      %v1907 = vadd.f32 0.0, %v1906
      %v1908 = vpop.f32.mrf.mxu0
      %v1909 = vadd.f32 0.0, %v1908
      %1910 = vmatprep.mubr.f32.mxu0 0.0
      %1911 = vmatmul.mubr.f32.gmra.mxu0 %v469
      %v1912 = vpop.f32.mrf.mxu0
      %v1913 = vadd.f32 0.0, %v1912
      %v1914 = vpop.f32.mrf.mxu0
      %v1915 = vadd.f32 0.0, %v1914
      %1916 = vmatprep.mubr.f32.mxu0 0.0
      %1917 = vmatmul.mubr.f32.gmra.mxu0 %v470
      %v1918 = vpop.f32.mrf.mxu0
      %v1919 = vadd.f32 0.0, %v1918
      %v1920 = vpop.f32.mrf.mxu0
      %v1921 = vadd.f32 0.0, %v1920
      %1922 = vdwg.mxu0
      %1923 = vmatprep.subr.mxu0 %v534
      %1924 = vmatpush1.msra.mxu0 %v533
      %1925 = vmatprep.subr.mxu0 %v532
      %1926 = vmatpush1.msra.mxu0 %v531
      %1927 = vmatprep.subr.mxu0 %v530
      %1928 = vmatpush1.msra.mxu0 %v529
      %1929 = vmatprep.subr.mxu0 %v528
      %1930 = vmatpush1.msra.mxu0 %v527
      %1931 = vmatprep.subr.mxu0 %v526
      %1932 = vmatpush1.msra.mxu0 %v525
      %1933 = vmatprep.subr.mxu0 %v524
      %1934 = vmatpush1.msra.mxu0 %v523
      %1935 = vmatprep.subr.mxu0 %v522
      %1936 = vmatpush1.msra.mxu0 %v521
      %1937 = vmatprep.subr.mxu0 %v520
      %1938 = vmatpush1.msra.mxu0 %v519
      %1939 = vmatprep.subr.mxu0 %v518
      %1940 = vmatpush1.msra.mxu0 %v517
      %1941 = vmatprep.subr.mxu0 %v516
      %1942 = vmatpush1.msra.mxu0 %v515
      %1943 = vmatprep.subr.mxu0 %v514
      %1944 = vmatpush1.msra.mxu0 %v513
      %1945 = vmatprep.subr.mxu0 %v512
      %1946 = vmatpush1.msra.mxu0 %v511
      %1947 = vmatprep.subr.mxu0 %v510
      %1948 = vmatpush1.msra.mxu0 %v509
      %1949 = vmatprep.subr.mxu0 %v508
      %1950 = vmatpush1.msra.mxu0 %v507
      %1951 = vmatprep.subr.mxu0 %v506
      %1952 = vmatpush1.msra.mxu0 %v505
      %1953 = vmatprep.subr.mxu0 %v504
      %1954 = vmatpush1.msra.mxu0 %v503
      %1955 = vmatprep.subr.mxu0 0.0
      %1956 = vmatpush2.msra.mxu0 0.0
      %1957 = vmatprep.subr.mxu0 0.0
      %1958 = vmatpush2.msra.mxu0 0.0
      %1959 = vmatprep.subr.mxu0 0.0
      %1960 = vmatpush2.msra.mxu0 0.0
      %1961 = vmatprep.subr.mxu0 0.0
      %1962 = vmatpush2.msra.mxu0 0.0
      %1963 = vmatprep.subr.mxu0 0.0
      %1964 = vmatpush2.msra.mxu0 0.0
      %1965 = vmatprep.subr.mxu0 0.0
      %1966 = vmatpush2.msra.mxu0 0.0
      %1967 = vmatprep.subr.mxu0 0.0
      %1968 = vmatpush2.msra.mxu0 0.0
      %1969 = vmatprep.subr.mxu0 0.0
      %1970 = vmatpush2.msra.mxu0 0.0
      %1971 = vmatprep.subr.mxu0 0.0
      %1972 = vmatpush2.msra.mxu0 0.0
      %1973 = vmatprep.subr.mxu0 0.0
      %1974 = vmatpush2.msra.mxu0 0.0
      %1975 = vmatprep.subr.mxu0 0.0
      %1976 = vmatpush2.msra.mxu0 0.0
      %1977 = vmatprep.subr.mxu0 0.0
      %1978 = vmatpush2.msra.mxu0 0.0
      %1979 = vmatprep.subr.mxu0 0.0
      %1980 = vmatpush2.msra.mxu0 0.0
      %1981 = vmatprep.subr.mxu0 0.0
      %1982 = vmatpush2.msra.mxu0 0.0
      %1983 = vmatprep.subr.mxu0 0.0
      %1984 = vmatpush2.msra.mxu0 0.0
      %1985 = vmatprep.subr.mxu0 0.0
      %1986 = vmatpush2.msra.mxu0 0.0
      %1987 = vmatprep.mubr.f32.mxu0 0.0
      %1988 = vmatmul.mubr.f32.gmra.mxu0 %v439
      %v1989 = vpop.f32.mrf.mxu0
      %v1990 = vadd.f32 %v1829, %v1989
      %v1991 = vpop.f32.mrf.mxu0
      %v1992 = vadd.f32 %v1831, %v1991
      %1993 = vmatprep.mubr.f32.mxu0 0.0
      %1994 = vmatmul.mubr.f32.gmra.mxu0 %v440
      %v1995 = vpop.f32.mrf.mxu0
      %v1996 = vadd.f32 %v1835, %v1995
      %v1997 = vpop.f32.mrf.mxu0
      %v1998 = vadd.f32 %v1837, %v1997
      %1999 = vmatprep.mubr.f32.mxu0 0.0
      %2000 = vmatmul.mubr.f32.gmra.mxu0 %v441
      %v2001 = vpop.f32.mrf.mxu0
      %v2002 = vadd.f32 %v1841, %v2001
      %v2003 = vpop.f32.mrf.mxu0
      %v2004 = vadd.f32 %v1843, %v2003
      %2005 = vmatprep.mubr.f32.mxu0 0.0
      %2006 = vmatmul.mubr.f32.gmra.mxu0 %v442
      %v2007 = vpop.f32.mrf.mxu0
      %v2008 = vadd.f32 %v1847, %v2007
      %v2009 = vpop.f32.mrf.mxu0
      %v2010 = vadd.f32 %v1849, %v2009
      %2011 = vmatprep.mubr.f32.mxu0 0.0
      %2012 = vmatmul.mubr.f32.gmra.mxu0 %v443
      %v2013 = vpop.f32.mrf.mxu0
      %v2014 = vadd.f32 %v1853, %v2013
      %v2015 = vpop.f32.mrf.mxu0
      %v2016 = vadd.f32 %v1855, %v2015
      %2017 = vmatprep.mubr.f32.mxu0 0.0
      %2018 = vmatmul.mubr.f32.gmra.mxu0 %v444
      %v2019 = vpop.f32.mrf.mxu0
      %v2020 = vadd.f32 %v1859, %v2019
      %v2021 = vpop.f32.mrf.mxu0
      %v2022 = vadd.f32 %v1861, %v2021
      %2023 = vmatprep.mubr.f32.mxu0 0.0
      %2024 = vmatmul.mubr.f32.gmra.mxu0 %v445
      %v2025 = vpop.f32.mrf.mxu0
      %v2026 = vadd.f32 %v1865, %v2025
      %v2027 = vpop.f32.mrf.mxu0
      %v2028 = vadd.f32 %v1867, %v2027
      %2029 = vmatprep.mubr.f32.mxu0 0.0
      %2030 = vmatmul.mubr.f32.gmra.mxu0 %v446
      %v2031 = vpop.f32.mrf.mxu0
      %v2032 = vadd.f32 %v1871, %v2031
      %v2033 = vpop.f32.mrf.mxu0
      %v2034 = vadd.f32 %v1873, %v2033
      %2035 = vmatprep.mubr.f32.mxu0 0.0
      %2036 = vmatmul.mubr.f32.gmra.mxu0 %v447
      %v2037 = vpop.f32.mrf.mxu0
      %v2038 = vadd.f32 %v1877, %v2037
      %v2039 = vpop.f32.mrf.mxu0
      %v2040 = vadd.f32 %v1879, %v2039
      %2041 = vmatprep.mubr.f32.mxu0 0.0
      %2042 = vmatmul.mubr.f32.gmra.mxu0 %v448
      %v2043 = vpop.f32.mrf.mxu0
      %v2044 = vadd.f32 %v1883, %v2043
      %v2045 = vpop.f32.mrf.mxu0
      %v2046 = vadd.f32 %v1885, %v2045
      %2047 = vmatprep.mubr.f32.mxu0 0.0
      %2048 = vmatmul.mubr.f32.gmra.mxu0 %v449
      %v2049 = vpop.f32.mrf.mxu0
      %v2050 = vadd.f32 %v1889, %v2049
      %v2051 = vpop.f32.mrf.mxu0
      %v2052 = vadd.f32 %v1891, %v2051
      %2053 = vmatprep.mubr.f32.mxu0 0.0
      %2054 = vmatmul.mubr.f32.gmra.mxu0 %v450
      %v2055 = vpop.f32.mrf.mxu0
      %v2056 = vadd.f32 %v1895, %v2055
      %v2057 = vpop.f32.mrf.mxu0
      %v2058 = vadd.f32 %v1897, %v2057
      %2059 = vmatprep.mubr.f32.mxu0 0.0
      %2060 = vmatmul.mubr.f32.gmra.mxu0 %v451
      %v2061 = vpop.f32.mrf.mxu0
      %v2062 = vadd.f32 %v1901, %v2061
      %v2063 = vpop.f32.mrf.mxu0
      %v2064 = vadd.f32 %v1903, %v2063
      %2065 = vmatprep.mubr.f32.mxu0 0.0
      %2066 = vmatmul.mubr.f32.gmra.mxu0 %v452
      %v2067 = vpop.f32.mrf.mxu0
      %v2068 = vadd.f32 %v1907, %v2067
      %v2069 = vpop.f32.mrf.mxu0
      %v2070 = vadd.f32 %v1909, %v2069
      %2071 = vmatprep.mubr.f32.mxu0 0.0
      %2072 = vmatmul.mubr.f32.gmra.mxu0 %v453
      %v2073 = vpop.f32.mrf.mxu0
      %v2074 = vadd.f32 %v1913, %v2073
      %v2075 = vpop.f32.mrf.mxu0
      %v2076 = vadd.f32 %v1915, %v2075
      %2077 = vmatprep.mubr.f32.mxu0 0.0
      %2078 = vmatmul.mubr.f32.gmra.mxu0 %v454
      %v2079 = vpop.f32.mrf.mxu0
      %v2080 = vadd.f32 %v1919, %v2079
      %v2081 = vpop.f32.mrf.mxu0
      %v2082 = vadd.f32 %v1921, %v2081
      %2083 = vdwg.mxu0
      %v2116 = vrot.slane %v1990, 1
      %v2117 = vrot.slane %v1996, 1
      %v2118 = vsel %vm1275, %v2116, %v2117
      %v2119 = vrot.slane %v1992, 1
      %v2120 = vrot.slane %v1998, 1
      %v2121 = vsel %vm1275, %v2119, %v2120
      %v2122 = vrot.slane %v2002, 1
      %v2123 = vsel %vm1275, %v2117, %v2122
      %v2124 = vrot.slane %v2004, 1
      %v2125 = vsel %vm1275, %v2120, %v2124
      %v2126 = vrot.slane %v2008, 1
      %v2127 = vsel %vm1275, %v2122, %v2126
      %v2128 = vrot.slane %v2010, 1
      %v2129 = vsel %vm1275, %v2124, %v2128
      %v2130 = vrot.slane %v2014, 1
      %v2131 = vsel %vm1275, %v2126, %v2130
      %v2132 = vrot.slane %v2016, 1
      %v2133 = vsel %vm1275, %v2128, %v2132
      %v2134 = vrot.slane %v2020, 1
      %v2135 = vsel %vm1275, %v2130, %v2134
      %v2136 = vrot.slane %v2022, 1
      %v2137 = vsel %vm1275, %v2132, %v2136
      %v2138 = vrot.slane %v2026, 1
      %v2139 = vsel %vm1275, %v2134, %v2138
      %v2140 = vrot.slane %v2028, 1
      %v2141 = vsel %vm1275, %v2136, %v2140
      %v2142 = vrot.slane %v2032, 1
      %v2143 = vsel %vm1275, %v2138, %v2142
      %v2144 = vrot.slane %v2034, 1
      %v2145 = vsel %vm1275, %v2140, %v2144
      %v2146 = vrot.slane %v2038, 1
      %v2147 = vsel %vm1275, %v2142, %v2146
      %v2148 = vrot.slane %v2040, 1
      %v2149 = vsel %vm1275, %v2144, %v2148
      %v2150 = vrot.slane %v2044, 1
      %v2151 = vsel %vm1275, %v2146, %v2150
      %v2152 = vrot.slane %v2046, 1
      %v2153 = vsel %vm1275, %v2148, %v2152
      %v2154 = vrot.slane %v2050, 1
      %v2155 = vsel %vm1275, %v2150, %v2154
      %v2156 = vrot.slane %v2052, 1
      %v2157 = vsel %vm1275, %v2152, %v2156
      %v2158 = vrot.slane %v2056, 1
      %v2159 = vsel %vm1275, %v2154, %v2158
      %v2160 = vrot.slane %v2058, 1
      %v2161 = vsel %vm1275, %v2156, %v2160
      %v2162 = vrot.slane %v2062, 1
      %v2163 = vsel %vm1275, %v2158, %v2162
      %v2164 = vrot.slane %v2064, 1
      %v2165 = vsel %vm1275, %v2160, %v2164
      %v2166 = vrot.slane %v2068, 1
      %v2167 = vsel %vm1275, %v2162, %v2166
      %v2168 = vrot.slane %v2070, 1
      %v2169 = vsel %vm1275, %v2164, %v2168
      %v2170 = vrot.slane %v2074, 1
      %v2171 = vsel %vm1275, %v2166, %v2170
      %v2172 = vrot.slane %v2076, 1
      %v2173 = vsel %vm1275, %v2168, %v2172
      %v2174 = vrot.slane %v2080, 1
      %v2175 = vsel %vm1275, %v2170, %v2174
      %v2176 = vrot.slane %v2082, 1
      %v2177 = vsel %vm1275, %v2172, %v2176
      %v2212 = vsel %vm1275, %v2174, %v2116
      %v2213 = vsel %vm1275, %v2176, %v2119
      %2214 = vmatprep.subr.mxu0 %v502
      %2215 = vmatpush1.msra.mxu0 %v501
      %2216 = vmatprep.subr.mxu0 %v500
      %2217 = vmatpush1.msra.mxu0 %v499
      %2218 = vmatprep.subr.mxu0 %v498
      %2219 = vmatpush1.msra.mxu0 %v497
      %2220 = vmatprep.subr.mxu0 %v496
      %2221 = vmatpush1.msra.mxu0 %v495
      %2222 = vmatprep.subr.mxu0 %v494
      %2223 = vmatpush1.msra.mxu0 %v493
      %2224 = vmatprep.subr.mxu0 %v492
      %2225 = vmatpush1.msra.mxu0 %v491
      %2226 = vmatprep.subr.mxu0 %v490
      %2227 = vmatpush1.msra.mxu0 %v489
      %2228 = vmatprep.subr.mxu0 %v488
      %2229 = vmatpush1.msra.mxu0 %v487
      %2230 = vmatprep.subr.mxu0 %v486
      %2231 = vmatpush1.msra.mxu0 %v485
      %2232 = vmatprep.subr.mxu0 %v484
      %2233 = vmatpush1.msra.mxu0 %v483
      %2234 = vmatprep.subr.mxu0 %v482
      %2235 = vmatpush1.msra.mxu0 %v481
      %2236 = vmatprep.subr.mxu0 %v480
      %2237 = vmatpush1.msra.mxu0 %v479
      %2238 = vmatprep.subr.mxu0 %v478
      %2239 = vmatpush1.msra.mxu0 %v477
      %2240 = vmatprep.subr.mxu0 %v476
      %2241 = vmatpush1.msra.mxu0 %v475
      %2242 = vmatprep.subr.mxu0 %v474
      %2243 = vmatpush1.msra.mxu0 %v473
      %2244 = vmatprep.subr.mxu0 %v472
      %2245 = vmatpush1.msra.mxu0 %v471
      %2246 = vmatprep.subr.mxu0 0.0
      %2247 = vmatpush2.msra.mxu0 0.0
      %2248 = vmatprep.subr.mxu0 0.0
      %2249 = vmatpush2.msra.mxu0 0.0
      %2250 = vmatprep.subr.mxu0 0.0
      %2251 = vmatpush2.msra.mxu0 0.0
      %2252 = vmatprep.subr.mxu0 0.0
      %2253 = vmatpush2.msra.mxu0 0.0
      %2254 = vmatprep.subr.mxu0 0.0
      %2255 = vmatpush2.msra.mxu0 0.0
      %2256 = vmatprep.subr.mxu0 0.0
      %2257 = vmatpush2.msra.mxu0 0.0
      %2258 = vmatprep.subr.mxu0 0.0
      %2259 = vmatpush2.msra.mxu0 0.0
      %2260 = vmatprep.subr.mxu0 0.0
      %2261 = vmatpush2.msra.mxu0 0.0
      %2262 = vmatprep.subr.mxu0 0.0
      %2263 = vmatpush2.msra.mxu0 0.0
      %2264 = vmatprep.subr.mxu0 0.0
      %2265 = vmatpush2.msra.mxu0 0.0
      %2266 = vmatprep.subr.mxu0 0.0
      %2267 = vmatpush2.msra.mxu0 0.0
      %2268 = vmatprep.subr.mxu0 0.0
      %2269 = vmatpush2.msra.mxu0 0.0
      %2270 = vmatprep.subr.mxu0 0.0
      %2271 = vmatpush2.msra.mxu0 0.0
      %2272 = vmatprep.subr.mxu0 0.0
      %2273 = vmatpush2.msra.mxu0 0.0
      %2274 = vmatprep.subr.mxu0 0.0
      %2275 = vmatpush2.msra.mxu0 0.0
      %2276 = vmatprep.subr.mxu0 0.0
      %2277 = vmatpush2.msra.mxu0 0.0
      %2278 = vmatprep.mubr.f32.mxu0 0.0
      %2279 = vmatmul.mubr.f32.gmra.mxu0 %v455
      %v2280 = vpop.f32.mrf.mxu0
      %v2281 = vadd.f32 %v2118, %v2280
      %v2282 = vpop.f32.mrf.mxu0
      %v2283 = vadd.f32 %v2121, %v2282
      %2284 = vmatprep.mubr.f32.mxu0 0.0
      %2285 = vmatmul.mubr.f32.gmra.mxu0 %v456
      %v2286 = vpop.f32.mrf.mxu0
      %v2287 = vadd.f32 %v2123, %v2286
      %v2288 = vpop.f32.mrf.mxu0
      %v2289 = vadd.f32 %v2125, %v2288
      %2290 = vmatprep.mubr.f32.mxu0 0.0
      %2291 = vmatmul.mubr.f32.gmra.mxu0 %v457
      %v2292 = vpop.f32.mrf.mxu0
      %v2293 = vadd.f32 %v2127, %v2292
      %v2294 = vpop.f32.mrf.mxu0
      %v2295 = vadd.f32 %v2129, %v2294
      %2296 = vmatprep.mubr.f32.mxu0 0.0
      %2297 = vmatmul.mubr.f32.gmra.mxu0 %v458
      %v2298 = vpop.f32.mrf.mxu0
      %v2299 = vadd.f32 %v2131, %v2298
      %v2300 = vpop.f32.mrf.mxu0
      %v2301 = vadd.f32 %v2133, %v2300
      %2302 = vmatprep.mubr.f32.mxu0 0.0
      %2303 = vmatmul.mubr.f32.gmra.mxu0 %v459
      %v2304 = vpop.f32.mrf.mxu0
      %v2305 = vadd.f32 %v2135, %v2304
      %v2306 = vpop.f32.mrf.mxu0
      %v2307 = vadd.f32 %v2137, %v2306
      %2308 = vmatprep.mubr.f32.mxu0 0.0
      %2309 = vmatmul.mubr.f32.gmra.mxu0 %v460
      %v2310 = vpop.f32.mrf.mxu0
      %v2311 = vadd.f32 %v2139, %v2310
      %v2312 = vpop.f32.mrf.mxu0
      %v2313 = vadd.f32 %v2141, %v2312
      %2314 = vmatprep.mubr.f32.mxu0 0.0
      %2315 = vmatmul.mubr.f32.gmra.mxu0 %v461
      %v2316 = vpop.f32.mrf.mxu0
      %v2317 = vadd.f32 %v2143, %v2316
      %v2318 = vpop.f32.mrf.mxu0
      %v2319 = vadd.f32 %v2145, %v2318
      %2320 = vmatprep.mubr.f32.mxu0 0.0
      %2321 = vmatmul.mubr.f32.gmra.mxu0 %v462
      %v2322 = vpop.f32.mrf.mxu0
      %v2323 = vadd.f32 %v2147, %v2322
      %v2324 = vpop.f32.mrf.mxu0
      %v2325 = vadd.f32 %v2149, %v2324
      %2326 = vmatprep.mubr.f32.mxu0 0.0
      %2327 = vmatmul.mubr.f32.gmra.mxu0 %v463
      %v2328 = vpop.f32.mrf.mxu0
      %v2329 = vadd.f32 %v2151, %v2328
      %v2330 = vpop.f32.mrf.mxu0
      %v2331 = vadd.f32 %v2153, %v2330
      %2332 = vmatprep.mubr.f32.mxu0 0.0
      %2333 = vmatmul.mubr.f32.gmra.mxu0 %v464
      %v2334 = vpop.f32.mrf.mxu0
      %v2335 = vadd.f32 %v2155, %v2334
      %v2336 = vpop.f32.mrf.mxu0
      %v2337 = vadd.f32 %v2157, %v2336
      %2338 = vmatprep.mubr.f32.mxu0 0.0
      %2339 = vmatmul.mubr.f32.gmra.mxu0 %v465
      %v2340 = vpop.f32.mrf.mxu0
      %v2341 = vadd.f32 %v2159, %v2340
      %v2342 = vpop.f32.mrf.mxu0
      %v2343 = vadd.f32 %v2161, %v2342
      %2344 = vmatprep.mubr.f32.mxu0 0.0
      %2345 = vmatmul.mubr.f32.gmra.mxu0 %v466
      %v2346 = vpop.f32.mrf.mxu0
      %v2347 = vadd.f32 %v2163, %v2346
      %v2348 = vpop.f32.mrf.mxu0
      %v2349 = vadd.f32 %v2165, %v2348
      %2350 = vmatprep.mubr.f32.mxu0 0.0
      %2351 = vmatmul.mubr.f32.gmra.mxu0 %v467
      %v2352 = vpop.f32.mrf.mxu0
      %v2353 = vadd.f32 %v2167, %v2352
      %v2354 = vpop.f32.mrf.mxu0
      %v2355 = vadd.f32 %v2169, %v2354
      %2356 = vmatprep.mubr.f32.mxu0 0.0
      %2357 = vmatmul.mubr.f32.gmra.mxu0 %v468
      %v2358 = vpop.f32.mrf.mxu0
      %v2359 = vadd.f32 %v2171, %v2358
      %v2360 = vpop.f32.mrf.mxu0
      %v2361 = vadd.f32 %v2173, %v2360
      %2362 = vmatprep.mubr.f32.mxu0 0.0
      %2363 = vmatmul.mubr.f32.gmra.mxu0 %v469
      %v2364 = vpop.f32.mrf.mxu0
      %v2365 = vadd.f32 %v2175, %v2364
      %v2366 = vpop.f32.mrf.mxu0
      %v2367 = vadd.f32 %v2177, %v2366
      %2368 = vmatprep.mubr.f32.mxu0 0.0
      %2369 = vmatmul.mubr.f32.gmra.mxu0 %v470
      %v2370 = vpop.f32.mrf.mxu0
      %v2371 = vadd.f32 %v2212, %v2370
      %v2372 = vpop.f32.mrf.mxu0
      %v2373 = vadd.f32 %v2213, %v2372
      %2374 = vdwg.mxu0
      %2375 = vmatprep.subr.mxu0 %v1437
      %2376 = vmatpush1.msra.mxu0 %v1436
      %2377 = vmatprep.subr.mxu0 %v1435
      %2378 = vmatpush1.msra.mxu0 %v1434
      %2379 = vmatprep.subr.mxu0 %v1433
      %2380 = vmatpush1.msra.mxu0 %v1432
      %2381 = vmatprep.subr.mxu0 %v1431
      %2382 = vmatpush1.msra.mxu0 %v1430
      %2383 = vmatprep.subr.mxu0 %v1429
      %2384 = vmatpush1.msra.mxu0 %v1428
      %2385 = vmatprep.subr.mxu0 %v1427
      %2386 = vmatpush1.msra.mxu0 %v1426
      %2387 = vmatprep.subr.mxu0 %v1425
      %2388 = vmatpush1.msra.mxu0 %v1424
      %2389 = vmatprep.subr.mxu0 %v1423
      %2390 = vmatpush1.msra.mxu0 %v1422
      %2391 = vmatprep.subr.mxu0 %v1421
      %2392 = vmatpush1.msra.mxu0 %v1420
      %2393 = vmatprep.subr.mxu0 %v1419
      %2394 = vmatpush1.msra.mxu0 %v1418
      %2395 = vmatprep.subr.mxu0 %v1417
      %2396 = vmatpush1.msra.mxu0 %v1416
      %2397 = vmatprep.subr.mxu0 %v1415
      %2398 = vmatpush1.msra.mxu0 %v1414
      %2399 = vmatprep.subr.mxu0 %v1413
      %2400 = vmatpush1.msra.mxu0 %v1412
      %2401 = vmatprep.subr.mxu0 %v1411
      %2402 = vmatpush1.msra.mxu0 %v1410
      %2403 = vmatprep.subr.mxu0 %v1409
      %2404 = vmatpush1.msra.mxu0 %v1408
      %2405 = vmatprep.subr.mxu0 %v1407
      %2406 = vmatpush1.msra.mxu0 %v1406
      %2407 = vmatprep.subr.mxu0 0.0
      %2408 = vmatpush2.msra.mxu0 0.0
      %2409 = vmatprep.subr.mxu0 0.0
      %2410 = vmatpush2.msra.mxu0 0.0
      %2411 = vmatprep.subr.mxu0 0.0
      %2412 = vmatpush2.msra.mxu0 0.0
      %2413 = vmatprep.subr.mxu0 0.0
      %2414 = vmatpush2.msra.mxu0 0.0
      %2415 = vmatprep.subr.mxu0 0.0
      %2416 = vmatpush2.msra.mxu0 0.0
      %2417 = vmatprep.subr.mxu0 0.0
      %2418 = vmatpush2.msra.mxu0 0.0
      %2419 = vmatprep.subr.mxu0 0.0
      %2420 = vmatpush2.msra.mxu0 0.0
      %2421 = vmatprep.subr.mxu0 0.0
      %2422 = vmatpush2.msra.mxu0 0.0
      %2423 = vmatprep.subr.mxu0 0.0
      %2424 = vmatpush2.msra.mxu0 0.0
      %2425 = vmatprep.subr.mxu0 0.0
      %2426 = vmatpush2.msra.mxu0 0.0
      %2427 = vmatprep.subr.mxu0 0.0
      %2428 = vmatpush2.msra.mxu0 0.0
      %2429 = vmatprep.subr.mxu0 0.0
      %2430 = vmatpush2.msra.mxu0 0.0
      %2431 = vmatprep.subr.mxu0 0.0
      %2432 = vmatpush2.msra.mxu0 0.0
      %2433 = vmatprep.subr.mxu0 0.0
      %2434 = vmatpush2.msra.mxu0 0.0
      %2435 = vmatprep.subr.mxu0 0.0
      %2436 = vmatpush2.msra.mxu0 0.0
      %2437 = vmatprep.subr.mxu0 0.0
      %2438 = vmatpush2.msra.mxu0 0.0
      %2439 = vmatprep.mubr.f32.mxu0 0.0
      %2440 = vmatmul.mubr.f32.gmra.mxu0 %v455
      %v2441 = vpop.f32.mrf.mxu0
      %v2442 = vadd.f32 0.0, %v2441
      %v2443 = vpop.f32.mrf.mxu0
      %v2444 = vadd.f32 0.0, %v2443
      %2445 = vmatprep.mubr.f32.mxu0 0.0
      %2446 = vmatmul.mubr.f32.gmra.mxu0 %v456
      %v2447 = vpop.f32.mrf.mxu0
      %v2448 = vadd.f32 0.0, %v2447
      %v2449 = vpop.f32.mrf.mxu0
      %v2450 = vadd.f32 0.0, %v2449
      %2451 = vmatprep.mubr.f32.mxu0 0.0
      %2452 = vmatmul.mubr.f32.gmra.mxu0 %v457
      %v2453 = vpop.f32.mrf.mxu0
      %v2454 = vadd.f32 0.0, %v2453
      %v2455 = vpop.f32.mrf.mxu0
      %v2456 = vadd.f32 0.0, %v2455
      %2457 = vmatprep.mubr.f32.mxu0 0.0
      %2458 = vmatmul.mubr.f32.gmra.mxu0 %v458
      %v2459 = vpop.f32.mrf.mxu0
      %v2460 = vadd.f32 0.0, %v2459
      %v2461 = vpop.f32.mrf.mxu0
      %v2462 = vadd.f32 0.0, %v2461
      %2463 = vmatprep.mubr.f32.mxu0 0.0
      %2464 = vmatmul.mubr.f32.gmra.mxu0 %v459
      %v2465 = vpop.f32.mrf.mxu0
      %v2466 = vadd.f32 0.0, %v2465
      %v2467 = vpop.f32.mrf.mxu0
      %v2468 = vadd.f32 0.0, %v2467
      %2469 = vmatprep.mubr.f32.mxu0 0.0
      %2470 = vmatmul.mubr.f32.gmra.mxu0 %v460
      %v2471 = vpop.f32.mrf.mxu0
      %v2472 = vadd.f32 0.0, %v2471
      %v2473 = vpop.f32.mrf.mxu0
      %v2474 = vadd.f32 0.0, %v2473
      %2475 = vmatprep.mubr.f32.mxu0 0.0
      %2476 = vmatmul.mubr.f32.gmra.mxu0 %v461
      %v2477 = vpop.f32.mrf.mxu0
      %v2478 = vadd.f32 0.0, %v2477
      %v2479 = vpop.f32.mrf.mxu0
      %v2480 = vadd.f32 0.0, %v2479
      %2481 = vmatprep.mubr.f32.mxu0 0.0
      %2482 = vmatmul.mubr.f32.gmra.mxu0 %v462
      %v2483 = vpop.f32.mrf.mxu0
      %v2484 = vadd.f32 0.0, %v2483
      %v2485 = vpop.f32.mrf.mxu0
      %v2486 = vadd.f32 0.0, %v2485
      %2487 = vmatprep.mubr.f32.mxu0 0.0
      %2488 = vmatmul.mubr.f32.gmra.mxu0 %v463
      %v2489 = vpop.f32.mrf.mxu0
      %v2490 = vadd.f32 0.0, %v2489
      %v2491 = vpop.f32.mrf.mxu0
      %v2492 = vadd.f32 0.0, %v2491
      %2493 = vmatprep.mubr.f32.mxu0 0.0
      %2494 = vmatmul.mubr.f32.gmra.mxu0 %v464
      %v2495 = vpop.f32.mrf.mxu0
      %v2496 = vadd.f32 0.0, %v2495
      %v2497 = vpop.f32.mrf.mxu0
      %v2498 = vadd.f32 0.0, %v2497
      %2499 = vmatprep.mubr.f32.mxu0 0.0
      %2500 = vmatmul.mubr.f32.gmra.mxu0 %v465
      %v2501 = vpop.f32.mrf.mxu0
      %v2502 = vadd.f32 0.0, %v2501
      %v2503 = vpop.f32.mrf.mxu0
      %v2504 = vadd.f32 0.0, %v2503
      %2505 = vmatprep.mubr.f32.mxu0 0.0
      %2506 = vmatmul.mubr.f32.gmra.mxu0 %v466
      %v2507 = vpop.f32.mrf.mxu0
      %v2508 = vadd.f32 0.0, %v2507
      %v2509 = vpop.f32.mrf.mxu0
      %v2510 = vadd.f32 0.0, %v2509
      %2511 = vmatprep.mubr.f32.mxu0 0.0
      %2512 = vmatmul.mubr.f32.gmra.mxu0 %v467
      %v2513 = vpop.f32.mrf.mxu0
      %v2514 = vadd.f32 0.0, %v2513
      %v2515 = vpop.f32.mrf.mxu0
      %v2516 = vadd.f32 0.0, %v2515
      %2517 = vmatprep.mubr.f32.mxu0 0.0
      %2518 = vmatmul.mubr.f32.gmra.mxu0 %v468
      %v2519 = vpop.f32.mrf.mxu0
      %v2520 = vadd.f32 0.0, %v2519
      %v2521 = vpop.f32.mrf.mxu0
      %v2522 = vadd.f32 0.0, %v2521
      %2523 = vmatprep.mubr.f32.mxu0 0.0
      %2524 = vmatmul.mubr.f32.gmra.mxu0 %v469
      %v2525 = vpop.f32.mrf.mxu0
      %v2526 = vadd.f32 0.0, %v2525
      %v2527 = vpop.f32.mrf.mxu0
      %v2528 = vadd.f32 0.0, %v2527
      %2529 = vmatprep.mubr.f32.mxu0 0.0
      %2530 = vmatmul.mubr.f32.gmra.mxu0 %v470
      %v2531 = vpop.f32.mrf.mxu0
      %v2532 = vadd.f32 0.0, %v2531
      %v2533 = vpop.f32.mrf.mxu0
      %v2534 = vadd.f32 0.0, %v2533
      %2535 = vdwg.mxu0
      %2536 = vmatprep.subr.mxu0 %v920
      %2537 = vmatpush1.msra.mxu0 %v919
      %2538 = vmatprep.subr.mxu0 %v918
      %2539 = vmatpush1.msra.mxu0 %v917
      %2540 = vmatprep.subr.mxu0 %v916
      %2541 = vmatpush1.msra.mxu0 %v915
      %2542 = vmatprep.subr.mxu0 %v914
      %2543 = vmatpush1.msra.mxu0 %v913
      %2544 = vmatprep.subr.mxu0 %v912
      %2545 = vmatpush1.msra.mxu0 %v911
      %2546 = vmatprep.subr.mxu0 %v910
      %2547 = vmatpush1.msra.mxu0 %v909
      %2548 = vmatprep.subr.mxu0 %v908
      %2549 = vmatpush1.msra.mxu0 %v907
      %2550 = vmatprep.subr.mxu0 %v906
      %2551 = vmatpush1.msra.mxu0 %v905
      %2552 = vmatprep.subr.mxu0 %v904
      %2553 = vmatpush1.msra.mxu0 %v903
      %2554 = vmatprep.subr.mxu0 %v902
      %2555 = vmatpush1.msra.mxu0 %v901
      %2556 = vmatprep.subr.mxu0 %v900
      %2557 = vmatpush1.msra.mxu0 %v899
      %2558 = vmatprep.subr.mxu0 %v898
      %2559 = vmatpush1.msra.mxu0 %v897
      %2560 = vmatprep.subr.mxu0 %v896
      %2561 = vmatpush1.msra.mxu0 %v895
      %2562 = vmatprep.subr.mxu0 %v894
      %2563 = vmatpush1.msra.mxu0 %v893
      %2564 = vmatprep.subr.mxu0 %v892
      %2565 = vmatpush1.msra.mxu0 %v891
      %2566 = vmatprep.subr.mxu0 %v890
      %2567 = vmatpush1.msra.mxu0 %v889
      %2568 = vmatprep.subr.mxu0 0.0
      %2569 = vmatpush2.msra.mxu0 0.0
      %2570 = vmatprep.subr.mxu0 0.0
      %2571 = vmatpush2.msra.mxu0 0.0
      %2572 = vmatprep.subr.mxu0 0.0
      %2573 = vmatpush2.msra.mxu0 0.0
      %2574 = vmatprep.subr.mxu0 0.0
      %2575 = vmatpush2.msra.mxu0 0.0
      %2576 = vmatprep.subr.mxu0 0.0
      %2577 = vmatpush2.msra.mxu0 0.0
      %2578 = vmatprep.subr.mxu0 0.0
      %2579 = vmatpush2.msra.mxu0 0.0
      %2580 = vmatprep.subr.mxu0 0.0
      %2581 = vmatpush2.msra.mxu0 0.0
      %2582 = vmatprep.subr.mxu0 0.0
      %2583 = vmatpush2.msra.mxu0 0.0
      %2584 = vmatprep.subr.mxu0 0.0
      %2585 = vmatpush2.msra.mxu0 0.0
      %2586 = vmatprep.subr.mxu0 0.0
      %2587 = vmatpush2.msra.mxu0 0.0
      %2588 = vmatprep.subr.mxu0 0.0
      %2589 = vmatpush2.msra.mxu0 0.0
      %2590 = vmatprep.subr.mxu0 0.0
      %2591 = vmatpush2.msra.mxu0 0.0
      %2592 = vmatprep.subr.mxu0 0.0
      %2593 = vmatpush2.msra.mxu0 0.0
      %2594 = vmatprep.subr.mxu0 0.0
      %2595 = vmatpush2.msra.mxu0 0.0
      %2596 = vmatprep.subr.mxu0 0.0
      %2597 = vmatpush2.msra.mxu0 0.0
      %2598 = vmatprep.subr.mxu0 0.0
      %2599 = vmatpush2.msra.mxu0 0.0
      %2600 = vmatprep.mubr.f32.mxu0 0.0
      %2601 = vmatmul.mubr.f32.gmra.mxu0 %v439
      %v2602 = vpop.f32.mrf.mxu0
      %v2603 = vadd.f32 %v2442, %v2602
      %v2604 = vpop.f32.mrf.mxu0
      %v2605 = vadd.f32 %v2444, %v2604
      %2606 = vmatprep.mubr.f32.mxu0 0.0
      %2607 = vmatmul.mubr.f32.gmra.mxu0 %v440
      %v2608 = vpop.f32.mrf.mxu0
      %v2609 = vadd.f32 %v2448, %v2608
      %v2610 = vpop.f32.mrf.mxu0
      %v2611 = vadd.f32 %v2450, %v2610
      %2612 = vmatprep.mubr.f32.mxu0 0.0
      %2613 = vmatmul.mubr.f32.gmra.mxu0 %v441
      %v2614 = vpop.f32.mrf.mxu0
      %v2615 = vadd.f32 %v2454, %v2614
      %v2616 = vpop.f32.mrf.mxu0
      %v2617 = vadd.f32 %v2456, %v2616
      %2618 = vmatprep.mubr.f32.mxu0 0.0
      %2619 = vmatmul.mubr.f32.gmra.mxu0 %v442
      %v2620 = vpop.f32.mrf.mxu0
      %v2621 = vadd.f32 %v2460, %v2620
      %v2622 = vpop.f32.mrf.mxu0
      %v2623 = vadd.f32 %v2462, %v2622
      %2624 = vmatprep.mubr.f32.mxu0 0.0
      %2625 = vmatmul.mubr.f32.gmra.mxu0 %v443
      %v2626 = vpop.f32.mrf.mxu0
      %v2627 = vadd.f32 %v2466, %v2626
      %v2628 = vpop.f32.mrf.mxu0
      %v2629 = vadd.f32 %v2468, %v2628
      %2630 = vmatprep.mubr.f32.mxu0 0.0
      %2631 = vmatmul.mubr.f32.gmra.mxu0 %v444
      %v2632 = vpop.f32.mrf.mxu0
      %v2633 = vadd.f32 %v2472, %v2632
      %v2634 = vpop.f32.mrf.mxu0
      %v2635 = vadd.f32 %v2474, %v2634
      %2636 = vmatprep.mubr.f32.mxu0 0.0
      %2637 = vmatmul.mubr.f32.gmra.mxu0 %v445
      %v2638 = vpop.f32.mrf.mxu0
      %v2639 = vadd.f32 %v2478, %v2638
      %v2640 = vpop.f32.mrf.mxu0
      %v2641 = vadd.f32 %v2480, %v2640
      %2642 = vmatprep.mubr.f32.mxu0 0.0
      %2643 = vmatmul.mubr.f32.gmra.mxu0 %v446
      %v2644 = vpop.f32.mrf.mxu0
      %v2645 = vadd.f32 %v2484, %v2644
      %v2646 = vpop.f32.mrf.mxu0
      %v2647 = vadd.f32 %v2486, %v2646
      %2648 = vmatprep.mubr.f32.mxu0 0.0
      %2649 = vmatmul.mubr.f32.gmra.mxu0 %v447
      %v2650 = vpop.f32.mrf.mxu0
      %v2651 = vadd.f32 %v2490, %v2650
      %v2652 = vpop.f32.mrf.mxu0
      %v2653 = vadd.f32 %v2492, %v2652
      %2654 = vmatprep.mubr.f32.mxu0 0.0
      %2655 = vmatmul.mubr.f32.gmra.mxu0 %v448
      %v2656 = vpop.f32.mrf.mxu0
      %v2657 = vadd.f32 %v2496, %v2656
      %v2658 = vpop.f32.mrf.mxu0
      %v2659 = vadd.f32 %v2498, %v2658
      %2660 = vmatprep.mubr.f32.mxu0 0.0
      %2661 = vmatmul.mubr.f32.gmra.mxu0 %v449
      %v2662 = vpop.f32.mrf.mxu0
      %v2663 = vadd.f32 %v2502, %v2662
      %v2664 = vpop.f32.mrf.mxu0
      %v2665 = vadd.f32 %v2504, %v2664
      %2666 = vmatprep.mubr.f32.mxu0 0.0
      %2667 = vmatmul.mubr.f32.gmra.mxu0 %v450
      %v2668 = vpop.f32.mrf.mxu0
      %v2669 = vadd.f32 %v2508, %v2668
      %v2670 = vpop.f32.mrf.mxu0
      %v2671 = vadd.f32 %v2510, %v2670
      %2672 = vmatprep.mubr.f32.mxu0 0.0
      %2673 = vmatmul.mubr.f32.gmra.mxu0 %v451
      %v2674 = vpop.f32.mrf.mxu0
      %v2675 = vadd.f32 %v2514, %v2674
      %v2676 = vpop.f32.mrf.mxu0
      %v2677 = vadd.f32 %v2516, %v2676
      %2678 = vmatprep.mubr.f32.mxu0 0.0
      %2679 = vmatmul.mubr.f32.gmra.mxu0 %v452
      %v2680 = vpop.f32.mrf.mxu0
      %v2681 = vadd.f32 %v2520, %v2680
      %v2682 = vpop.f32.mrf.mxu0
      %v2683 = vadd.f32 %v2522, %v2682
      %2684 = vmatprep.mubr.f32.mxu0 0.0
      %2685 = vmatmul.mubr.f32.gmra.mxu0 %v453
      %v2686 = vpop.f32.mrf.mxu0
      %v2687 = vadd.f32 %v2526, %v2686
      %v2688 = vpop.f32.mrf.mxu0
      %v2689 = vadd.f32 %v2528, %v2688
      %2690 = vmatprep.mubr.f32.mxu0 0.0
      %2691 = vmatmul.mubr.f32.gmra.mxu0 %v454
      %v2692 = vpop.f32.mrf.mxu0
      %v2693 = vadd.f32 %v2532, %v2692
      %v2694 = vpop.f32.mrf.mxu0
      %v2695 = vadd.f32 %v2534, %v2694
      %2696 = vdwg.mxu0
      %v2729 = vrot.slane %v2603, 2
      %v2730 = vrot.slane %v2609, 2
      %v2731 = vsel %vm1631, %v2729, %v2730
      %v2732 = vrot.slane %v2605, 2
      %v2733 = vrot.slane %v2611, 2
      %v2734 = vsel %vm1631, %v2732, %v2733
      %v2735 = vrot.slane %v2615, 2
      %v2736 = vsel %vm1631, %v2730, %v2735
      %v2737 = vrot.slane %v2617, 2
      %v2738 = vsel %vm1631, %v2733, %v2737
      %v2739 = vrot.slane %v2621, 2
      %v2740 = vsel %vm1631, %v2735, %v2739
      %v2741 = vrot.slane %v2623, 2
      %v2742 = vsel %vm1631, %v2737, %v2741
      %v2743 = vrot.slane %v2627, 2
      %v2744 = vsel %vm1631, %v2739, %v2743
      %v2745 = vrot.slane %v2629, 2
      %v2746 = vsel %vm1631, %v2741, %v2745
      %v2747 = vrot.slane %v2633, 2
      %v2748 = vsel %vm1631, %v2743, %v2747
      %v2749 = vrot.slane %v2635, 2
      %v2750 = vsel %vm1631, %v2745, %v2749
      %v2751 = vrot.slane %v2639, 2
      %v2752 = vsel %vm1631, %v2747, %v2751
      %v2753 = vrot.slane %v2641, 2
      %v2754 = vsel %vm1631, %v2749, %v2753
      %v2755 = vrot.slane %v2645, 2
      %v2756 = vsel %vm1631, %v2751, %v2755
      %v2757 = vrot.slane %v2647, 2
      %v2758 = vsel %vm1631, %v2753, %v2757
      %v2759 = vrot.slane %v2651, 2
      %v2760 = vsel %vm1631, %v2755, %v2759
      %v2761 = vrot.slane %v2653, 2
      %v2762 = vsel %vm1631, %v2757, %v2761
      %v2763 = vrot.slane %v2657, 2
      %v2764 = vsel %vm1631, %v2759, %v2763
      %v2765 = vrot.slane %v2659, 2
      %v2766 = vsel %vm1631, %v2761, %v2765
      %v2767 = vrot.slane %v2663, 2
      %v2768 = vsel %vm1631, %v2763, %v2767
      %v2769 = vrot.slane %v2665, 2
      %v2770 = vsel %vm1631, %v2765, %v2769
      %v2771 = vrot.slane %v2669, 2
      %v2772 = vsel %vm1631, %v2767, %v2771
      %v2773 = vrot.slane %v2671, 2
      %v2774 = vsel %vm1631, %v2769, %v2773
      %v2775 = vrot.slane %v2675, 2
      %v2776 = vsel %vm1631, %v2771, %v2775
      %v2777 = vrot.slane %v2677, 2
      %v2778 = vsel %vm1631, %v2773, %v2777
      %v2779 = vrot.slane %v2681, 2
      %v2780 = vsel %vm1631, %v2775, %v2779
      %v2781 = vrot.slane %v2683, 2
      %v2782 = vsel %vm1631, %v2777, %v2781
      %v2783 = vrot.slane %v2687, 2
      %v2784 = vsel %vm1631, %v2779, %v2783
      %v2785 = vrot.slane %v2689, 2
      %v2786 = vsel %vm1631, %v2781, %v2785
      %v2787 = vrot.slane %v2693, 2
      %v2788 = vsel %vm1631, %v2783, %v2787
      %v2789 = vrot.slane %v2695, 2
      %v2790 = vsel %vm1631, %v2785, %v2789
      %v2825 = vsel %vm1631, %v2787, %v2729
      %v2826 = vsel %vm1631, %v2789, %v2732
      %v2827 = vadd.f32 %v2281, %v2731
      %v2828 = vadd.f32 %v2283, %v2734
      %v2829 = vadd.f32 %v2287, %v2736
      %v2830 = vadd.f32 %v2289, %v2738
      %v2831 = vadd.f32 %v2293, %v2740
      %v2832 = vadd.f32 %v2295, %v2742
      %v2833 = vadd.f32 %v2299, %v2744
      %v2834 = vadd.f32 %v2301, %v2746
      %v2835 = vadd.f32 %v2305, %v2748
      %v2836 = vadd.f32 %v2307, %v2750
      %v2837 = vadd.f32 %v2311, %v2752
      %v2838 = vadd.f32 %v2313, %v2754
      %v2839 = vadd.f32 %v2317, %v2756
      %v2840 = vadd.f32 %v2319, %v2758
      %v2841 = vadd.f32 %v2323, %v2760
      %v2842 = vadd.f32 %v2325, %v2762
      %v2843 = vadd.f32 %v2329, %v2764
      %v2844 = vadd.f32 %v2331, %v2766
      %v2845 = vadd.f32 %v2335, %v2768
      %v2846 = vadd.f32 %v2337, %v2770
      %v2847 = vadd.f32 %v2341, %v2772
      %v2848 = vadd.f32 %v2343, %v2774
      %v2849 = vadd.f32 %v2347, %v2776
      %v2850 = vadd.f32 %v2349, %v2778
      %v2851 = vadd.f32 %v2353, %v2780
      %v2852 = vadd.f32 %v2355, %v2782
      %v2853 = vadd.f32 %v2359, %v2784
      %v2854 = vadd.f32 %v2361, %v2786
      %v2855 = vadd.f32 %v2365, %v2788
      %v2856 = vadd.f32 %v2367, %v2790
      %v2857 = vadd.f32 %v2371, %v2825
      %v2858 = vadd.f32 %v2373, %v2826
      %v2859 = vmax.f32 %v1730, %v2827
      %v2860 = vmax.f32 %v1731, %v2828
      %v2861 = vmax.f32 %v1732, %v2829
      %v2862 = vmax.f32 %v1733, %v2830
      %v2863 = vmax.f32 %v1734, %v2831
      %v2864 = vmax.f32 %v1735, %v2832
      %v2865 = vmax.f32 %v1736, %v2833
      %v2866 = vmax.f32 %v1737, %v2834
      %v2867 = vmax.f32 %v1738, %v2835
      %v2868 = vmax.f32 %v1739, %v2836
      %v2869 = vmax.f32 %v1740, %v2837
      %v2870 = vmax.f32 %v1741, %v2838
      %v2871 = vmax.f32 %v1742, %v2839
      %v2872 = vmax.f32 %v1743, %v2840
      %v2873 = vmax.f32 %v1744, %v2841
      %v2874 = vmax.f32 %v1745, %v2842
      %v2875 = vmax.f32 %v1746, %v2843
      %v2876 = vmax.f32 %v1747, %v2844
      %v2877 = vmax.f32 %v1748, %v2845
      %v2878 = vmax.f32 %v1749, %v2846
      %v2879 = vmax.f32 %v1750, %v2847
      %v2880 = vmax.f32 %v1751, %v2848
      %v2881 = vmax.f32 %v1752, %v2849
      %v2882 = vmax.f32 %v1753, %v2850
      %v2883 = vmax.f32 %v1754, %v2851
      %v2884 = vmax.f32 %v1755, %v2852
      %v2885 = vmax.f32 %v1756, %v2853
      %v2886 = vmax.f32 %v1757, %v2854
      %v2887 = vmax.f32 %v1758, %v2855
      %v2888 = vmax.f32 %v1759, %v2856
      %v2889 = vmax.f32 %v1760, %v2857
      %v2890 = vmax.f32 %v1761, %v2858
      %v2891 = vmax.f32 %v2859, %v2860
      %v2892 = vmax.f32 %v2861, %v2862
      %v2893 = vmax.f32 %v2863, %v2864
      %v2894 = vmax.f32 %v2865, %v2866
      %v2895 = vmax.f32 %v2867, %v2868
      %v2896 = vmax.f32 %v2869, %v2870
      %v2897 = vmax.f32 %v2871, %v2872
      %v2898 = vmax.f32 %v2873, %v2874
      %v2899 = vmax.f32 %v2875, %v2876
      %v2900 = vmax.f32 %v2877, %v2878
      %v2901 = vmax.f32 %v2879, %v2880
      %v2902 = vmax.f32 %v2881, %v2882
      %v2903 = vmax.f32 %v2883, %v2884
      %v2904 = vmax.f32 %v2885, %v2886
      %v2905 = vmax.f32 %v2887, %v2888
      %v2906 = vmax.f32 %v2889, %v2890
      %v2907 = vld [vmem:[%s3] sm:$0x1]
      %v2909 = vlaneseq
      %v2910 = vshrl.u32 %v2909, 7
      %v2911 = vsub.s32 0, %v2910
      %v2912 = vrot.slane %v2907, %v2911
      %v2914 = vadd.f32 %v2891, %v2912
      %v2915 = vadd.f32 %v2892, %v2912
      %v2916 = vadd.f32 %v2893, %v2912
      %v2917 = vadd.f32 %v2894, %v2912
      %v2918 = vadd.f32 %v2895, %v2912
      %v2919 = vadd.f32 %v2896, %v2912
      %v2920 = vadd.f32 %v2897, %v2912
      %v2921 = vadd.f32 %v2898, %v2912
      %v2922 = vadd.f32 %v2899, %v2912
      %v2923 = vadd.f32 %v2900, %v2912
      %v2924 = vadd.f32 %v2901, %v2912
      %v2925 = vadd.f32 %v2902, %v2912
      %v2926 = vadd.f32 %v2903, %v2912
      %v2927 = vadd.f32 %v2904, %v2912
      %v2928 = vadd.f32 %v2905, %v2912
      %v2929 = vadd.f32 %v2906, %v2912
      %v2930 = vmax.f32 %v2914, 0.0
      %v2931 = vmax.f32 %v2915, 0.0
      %v2932 = vmax.f32 %v2916, 0.0
      %v2933 = vmax.f32 %v2917, 0.0
      %v2934 = vmax.f32 %v2918, 0.0
      %v2935 = vmax.f32 %v2919, 0.0
      %v2936 = vmax.f32 %v2920, 0.0
      %v2937 = vmax.f32 %v2921, 0.0
      %v2938 = vmax.f32 %v2922, 0.0
      %v2939 = vmax.f32 %v2923, 0.0
      %v2940 = vmax.f32 %v2924, 0.0
      %v2941 = vmax.f32 %v2925, 0.0
      %v2942 = vmax.f32 %v2926, 0.0
      %v2943 = vmax.f32 %v2927, 0.0
      %v2944 = vmax.f32 %v2928, 0.0
      %v2945 = vmax.f32 %v2929, 0.0
      %v2946 = vld [vmem:[%s4] sm:$0xff]
      %v2947 = vld [vmem:[%s4 + $0x8] sm:$0xff]
      %v2948 = vld [vmem:[%s4 + $0x10] sm:$0xff]
      %v2949 = vld [vmem:[%s4 + $0x18] sm:$0xff]
      %v2950 = vld [vmem:[%s4 + $0x20] sm:$0xff]
      %v2951 = vld [vmem:[%s4 + $0x28] sm:$0xff]
      %v2952 = vld [vmem:[%s4 + $0x30] sm:$0xff]
      %v2953 = vld [vmem:[%s4 + $0x38] sm:$0xff]
      %v2954 = vld [vmem:[%s4 + $0x40] sm:$0xff]
      %v2955 = vld [vmem:[%s4 + $0x48] sm:$0xff]
      %v2956 = vld [vmem:[%s4 + $0x50] sm:$0xff]
      %v2957 = vld [vmem:[%s4 + $0x58] sm:$0xff]
      %v2958 = vld [vmem:[%s4 + $0x60] sm:$0xff]
      %v2959 = vld [vmem:[%s4 + $0x68] sm:$0xff]
      %v2960 = vld [vmem:[%s4 + $0x70] sm:$0xff]
      %v2961 = vld [vmem:[%s4 + $0x78] sm:$0xff]
      %v2962 = vld [vmem:[%s4 + $0x80] sm:$0xff]
      %v2963 = vld [vmem:[%s4 + $0x88] sm:$0xff]
      %v2964 = vld [vmem:[%s4 + $0x90] sm:$0xff]
      %v2965 = vld [vmem:[%s4 + $0x98] sm:$0xff]
      %v2966 = vld [vmem:[%s4 + $0xa0] sm:$0xff]
      %v2967 = vld [vmem:[%s4 + $0xa8] sm:$0xff]
      %v2968 = vld [vmem:[%s4 + $0xb0] sm:$0xff]
      %v2969 = vld [vmem:[%s4 + $0xb8] sm:$0xff]
      %v2970 = vld [vmem:[%s4 + $0xc0] sm:$0xff]
      %v2971 = vld [vmem:[%s4 + $0xc8] sm:$0xff]
      %v2972 = vld [vmem:[%s4 + $0xd0] sm:$0xff]
      %v2973 = vld [vmem:[%s4 + $0xd8] sm:$0xff]
      %v2974 = vld [vmem:[%s4 + $0xe0] sm:$0xff]
      %v2975 = vld [vmem:[%s4 + $0xe8] sm:$0xff]
      %v2976 = vld [vmem:[%s4 + $0xf0] sm:$0xff]
      %v2977 = vld [vmem:[%s4 + $0xf8] sm:$0xff]
      %v2978 = vld [vmem:[%s4 + $0x100] sm:$0xff]
      %v2979 = vld [vmem:[%s4 + $0x108] sm:$0xff]
      %v2980 = vld [vmem:[%s4 + $0x110] sm:$0xff]
      %v2981 = vld [vmem:[%s4 + $0x118] sm:$0xff]
      %v2982 = vld [vmem:[%s4 + $0x120] sm:$0xff]
      %v2983 = vld [vmem:[%s4 + $0x128] sm:$0xff]
      %v2984 = vld [vmem:[%s4 + $0x130] sm:$0xff]
      %v2985 = vld [vmem:[%s4 + $0x138] sm:$0xff]
      %v2986 = vld [vmem:[%s4 + $0x140] sm:$0xff]
      %v2987 = vld [vmem:[%s4 + $0x148] sm:$0xff]
      %v2988 = vld [vmem:[%s4 + $0x150] sm:$0xff]
      %v2989 = vld [vmem:[%s4 + $0x158] sm:$0xff]
      %v2990 = vld [vmem:[%s4 + $0x160] sm:$0xff]
      %v2991 = vld [vmem:[%s4 + $0x168] sm:$0xff]
      %v2992 = vld [vmem:[%s4 + $0x170] sm:$0xff]
      %v2993 = vld [vmem:[%s4 + $0x178] sm:$0xff]
      %v2994 = vld [vmem:[%s4 + $0x180] sm:$0xff]
      %v2995 = vld [vmem:[%s4 + $0x188] sm:$0xff]
      %v2996 = vld [vmem:[%s4 + $0x190] sm:$0xff]
      %v2997 = vld [vmem:[%s4 + $0x198] sm:$0xff]
      %v2998 = vld [vmem:[%s4 + $0x1a0] sm:$0xff]
      %v2999 = vld [vmem:[%s4 + $0x1a8] sm:$0xff]
      %v3000 = vld [vmem:[%s4 + $0x1b0] sm:$0xff]
      %v3001 = vld [vmem:[%s4 + $0x1b8] sm:$0xff]
      %v3002 = vld [vmem:[%s4 + $0x1c0] sm:$0xff]
      %v3003 = vld [vmem:[%s4 + $0x1c8] sm:$0xff]
      %v3004 = vld [vmem:[%s4 + $0x1d0] sm:$0xff]
      %v3005 = vld [vmem:[%s4 + $0x1d8] sm:$0xff]
      %v3006 = vld [vmem:[%s4 + $0x1e0] sm:$0xff]
      %v3007 = vld [vmem:[%s4 + $0x1e8] sm:$0xff]
      %v3008 = vld [vmem:[%s4 + $0x1f0] sm:$0xff]
      %v3009 = vld [vmem:[%s4 + $0x1f8] sm:$0xff]
      %3010 = vmatprep.subr.mxu0 %v3009
      %3011 = vmatpush1.msra.mxu0 %v3008
      %3012 = vmatprep.subr.mxu0 %v3007
      %3013 = vmatpush1.msra.mxu0 %v3006
      %3014 = vmatprep.subr.mxu0 %v3005
      %3015 = vmatpush1.msra.mxu0 %v3004
      %3016 = vmatprep.subr.mxu0 %v3003
      %3017 = vmatpush1.msra.mxu0 %v3002
      %3018 = vmatprep.subr.mxu0 %v3001
      %3019 = vmatpush1.msra.mxu0 %v3000
      %3020 = vmatprep.subr.mxu0 %v2999
      %3021 = vmatpush1.msra.mxu0 %v2998
      %3022 = vmatprep.subr.mxu0 %v2997
      %3023 = vmatpush1.msra.mxu0 %v2996
      %3024 = vmatprep.subr.mxu0 %v2995
      %3025 = vmatpush1.msra.mxu0 %v2994
      %3026 = vmatprep.subr.mxu0 %v2993
      %3027 = vmatpush1.msra.mxu0 %v2992
      %3028 = vmatprep.subr.mxu0 %v2991
      %3029 = vmatpush1.msra.mxu0 %v2990
      %3030 = vmatprep.subr.mxu0 %v2989
      %3031 = vmatpush1.msra.mxu0 %v2988
      %3032 = vmatprep.subr.mxu0 %v2987
      %3033 = vmatpush1.msra.mxu0 %v2986
      %3034 = vmatprep.subr.mxu0 %v2985
      %3035 = vmatpush1.msra.mxu0 %v2984
      %3036 = vmatprep.subr.mxu0 %v2983
      %3037 = vmatpush1.msra.mxu0 %v2982
      %3038 = vmatprep.subr.mxu0 %v2981
      %3039 = vmatpush1.msra.mxu0 %v2980
      %3040 = vmatprep.subr.mxu0 %v2979
      %3041 = vmatpush1.msra.mxu0 %v2978
      %3042 = vmatprep.subr.mxu0 0.0
      %3043 = vmatpush2.msra.mxu0 0.0
      %3044 = vmatprep.subr.mxu0 0.0
      %3045 = vmatpush2.msra.mxu0 0.0
      %3046 = vmatprep.subr.mxu0 0.0
      %3047 = vmatpush2.msra.mxu0 0.0
      %3048 = vmatprep.subr.mxu0 0.0
      %3049 = vmatpush2.msra.mxu0 0.0
      %3050 = vmatprep.subr.mxu0 0.0
      %3051 = vmatpush2.msra.mxu0 0.0
      %3052 = vmatprep.subr.mxu0 0.0
      %3053 = vmatpush2.msra.mxu0 0.0
      %3054 = vmatprep.subr.mxu0 0.0
      %3055 = vmatpush2.msra.mxu0 0.0
      %3056 = vmatprep.subr.mxu0 0.0
      %3057 = vmatpush2.msra.mxu0 0.0
      %3058 = vmatprep.subr.mxu0 0.0
      %3059 = vmatpush2.msra.mxu0 0.0
      %3060 = vmatprep.subr.mxu0 0.0
      %3061 = vmatpush2.msra.mxu0 0.0
      %3062 = vmatprep.subr.mxu0 0.0
      %3063 = vmatpush2.msra.mxu0 0.0
      %3064 = vmatprep.subr.mxu0 0.0
      %3065 = vmatpush2.msra.mxu0 0.0
      %3066 = vmatprep.subr.mxu0 0.0
      %3067 = vmatpush2.msra.mxu0 0.0
      %3068 = vmatprep.subr.mxu0 0.0
      %3069 = vmatpush2.msra.mxu0 0.0
      %3070 = vmatprep.subr.mxu0 0.0
      %3071 = vmatpush2.msra.mxu0 0.0
      %3072 = vmatprep.subr.mxu0 0.0
      %3073 = vmatpush2.msra.mxu0 0.0
      %3074 = vmatprep.mubr.f32.mxu0 0.0
      %3075 = vmatmul.mubr.f32.gmra.mxu0 %v2930
      %v3076 = vpop.f32.mrf.mxu0
      %v3077 = vadd.f32 0.0, %v3076
      %v3078 = vpop.f32.mrf.mxu0
      %v3079 = vadd.f32 0.0, %v3078
      %3080 = vmatprep.mubr.f32.mxu0 0.0
      %3081 = vmatmul.mubr.f32.gmra.mxu0 %v2931
      %v3082 = vpop.f32.mrf.mxu0
      %v3083 = vadd.f32 0.0, %v3082
      %v3084 = vpop.f32.mrf.mxu0
      %v3085 = vadd.f32 0.0, %v3084
      %3086 = vmatprep.mubr.f32.mxu0 0.0
      %3087 = vmatmul.mubr.f32.gmra.mxu0 %v2932
      %v3088 = vpop.f32.mrf.mxu0
      %v3089 = vadd.f32 0.0, %v3088
      %v3090 = vpop.f32.mrf.mxu0
      %v3091 = vadd.f32 0.0, %v3090
      %3092 = vmatprep.mubr.f32.mxu0 0.0
      %3093 = vmatmul.mubr.f32.gmra.mxu0 %v2933
      %v3094 = vpop.f32.mrf.mxu0
      %v3095 = vadd.f32 0.0, %v3094
      %v3096 = vpop.f32.mrf.mxu0
      %v3097 = vadd.f32 0.0, %v3096
      %3098 = vmatprep.mubr.f32.mxu0 0.0
      %3099 = vmatmul.mubr.f32.gmra.mxu0 %v2934
      %v3100 = vpop.f32.mrf.mxu0
      %v3101 = vadd.f32 0.0, %v3100
      %v3102 = vpop.f32.mrf.mxu0
      %v3103 = vadd.f32 0.0, %v3102
      %3104 = vmatprep.mubr.f32.mxu0 0.0
      %3105 = vmatmul.mubr.f32.gmra.mxu0 %v2935
      %v3106 = vpop.f32.mrf.mxu0
      %v3107 = vadd.f32 0.0, %v3106
      %v3108 = vpop.f32.mrf.mxu0
      %v3109 = vadd.f32 0.0, %v3108
      %3110 = vmatprep.mubr.f32.mxu0 0.0
      %3111 = vmatmul.mubr.f32.gmra.mxu0 %v2936
      %v3112 = vpop.f32.mrf.mxu0
      %v3113 = vadd.f32 0.0, %v3112
      %v3114 = vpop.f32.mrf.mxu0
      %v3115 = vadd.f32 0.0, %v3114
      %3116 = vmatprep.mubr.f32.mxu0 0.0
      %3117 = vmatmul.mubr.f32.gmra.mxu0 %v2937
      %v3118 = vpop.f32.mrf.mxu0
      %v3119 = vadd.f32 0.0, %v3118
      %v3120 = vpop.f32.mrf.mxu0
      %v3121 = vadd.f32 0.0, %v3120
      %3122 = vmatprep.mubr.f32.mxu0 0.0
      %3123 = vmatmul.mubr.f32.gmra.mxu0 %v2938
      %v3124 = vpop.f32.mrf.mxu0
      %v3125 = vadd.f32 0.0, %v3124
      %v3126 = vpop.f32.mrf.mxu0
      %v3127 = vadd.f32 0.0, %v3126
      %3128 = vmatprep.mubr.f32.mxu0 0.0
      %3129 = vmatmul.mubr.f32.gmra.mxu0 %v2939
      %v3130 = vpop.f32.mrf.mxu0
      %v3131 = vadd.f32 0.0, %v3130
      %v3132 = vpop.f32.mrf.mxu0
      %v3133 = vadd.f32 0.0, %v3132
      %3134 = vmatprep.mubr.f32.mxu0 0.0
      %3135 = vmatmul.mubr.f32.gmra.mxu0 %v2940
      %v3136 = vpop.f32.mrf.mxu0
      %v3137 = vadd.f32 0.0, %v3136
      %v3138 = vpop.f32.mrf.mxu0
      %v3139 = vadd.f32 0.0, %v3138
      %3140 = vmatprep.mubr.f32.mxu0 0.0
      %3141 = vmatmul.mubr.f32.gmra.mxu0 %v2941
      %v3142 = vpop.f32.mrf.mxu0
      %v3143 = vadd.f32 0.0, %v3142
      %v3144 = vpop.f32.mrf.mxu0
      %v3145 = vadd.f32 0.0, %v3144
      %3146 = vmatprep.mubr.f32.mxu0 0.0
      %3147 = vmatmul.mubr.f32.gmra.mxu0 %v2942
      %v3148 = vpop.f32.mrf.mxu0
      %v3149 = vadd.f32 0.0, %v3148
      %v3150 = vpop.f32.mrf.mxu0
      %v3151 = vadd.f32 0.0, %v3150
      %3152 = vmatprep.mubr.f32.mxu0 0.0
      %3153 = vmatmul.mubr.f32.gmra.mxu0 %v2943
      %v3154 = vpop.f32.mrf.mxu0
      %v3155 = vadd.f32 0.0, %v3154
      %v3156 = vpop.f32.mrf.mxu0
      %v3157 = vadd.f32 0.0, %v3156
      %3158 = vmatprep.mubr.f32.mxu0 0.0
      %3159 = vmatmul.mubr.f32.gmra.mxu0 %v2944
      %v3160 = vpop.f32.mrf.mxu0
      %v3161 = vadd.f32 0.0, %v3160
      %v3162 = vpop.f32.mrf.mxu0
      %v3163 = vadd.f32 0.0, %v3162
      %3164 = vmatprep.mubr.f32.mxu0 0.0
      %3165 = vmatmul.mubr.f32.gmra.mxu0 %v2945
      %v3166 = vpop.f32.mrf.mxu0
      %v3167 = vadd.f32 0.0, %v3166
      %v3168 = vpop.f32.mrf.mxu0
      %v3169 = vadd.f32 0.0, %v3168
      %3170 = vdwg.mxu0
      %v3203 = vrot.slane %v3077, 1
      %v3204 = vrot.slane %v3083, 1
      %v3205 = vsel %vm1275, %v3203, %v3204
      %v3206 = vrot.slane %v3079, 1
      %v3207 = vrot.slane %v3085, 1
      %v3208 = vsel %vm1275, %v3206, %v3207
      %v3209 = vrot.slane %v3089, 1
      %v3210 = vsel %vm1275, %v3204, %v3209
      %v3211 = vrot.slane %v3091, 1
      %v3212 = vsel %vm1275, %v3207, %v3211
      %v3213 = vrot.slane %v3095, 1
      %v3214 = vsel %vm1275, %v3209, %v3213
      %v3215 = vrot.slane %v3097, 1
      %v3216 = vsel %vm1275, %v3211, %v3215
      %v3217 = vrot.slane %v3101, 1
      %v3218 = vsel %vm1275, %v3213, %v3217
      %v3219 = vrot.slane %v3103, 1
      %v3220 = vsel %vm1275, %v3215, %v3219
      %v3221 = vrot.slane %v3107, 1
      %v3222 = vsel %vm1275, %v3217, %v3221
      %v3223 = vrot.slane %v3109, 1
      %v3224 = vsel %vm1275, %v3219, %v3223
      %v3225 = vrot.slane %v3113, 1
      %v3226 = vsel %vm1275, %v3221, %v3225
      %v3227 = vrot.slane %v3115, 1
      %v3228 = vsel %vm1275, %v3223, %v3227
      %v3229 = vrot.slane %v3119, 1
      %v3230 = vsel %vm1275, %v3225, %v3229
      %v3231 = vrot.slane %v3121, 1
      %v3232 = vsel %vm1275, %v3227, %v3231
      %v3233 = vrot.slane %v3125, 1
      %v3234 = vsel %vm1275, %v3229, %v3233
      %v3235 = vrot.slane %v3127, 1
      %v3236 = vsel %vm1275, %v3231, %v3235
      %v3237 = vrot.slane %v3131, 1
      %v3238 = vsel %vm1275, %v3233, %v3237
      %v3239 = vrot.slane %v3133, 1
      %v3240 = vsel %vm1275, %v3235, %v3239
      %v3241 = vrot.slane %v3137, 1
      %v3242 = vsel %vm1275, %v3237, %v3241
      %v3243 = vrot.slane %v3139, 1
      %v3244 = vsel %vm1275, %v3239, %v3243
      %v3245 = vrot.slane %v3143, 1
      %v3246 = vsel %vm1275, %v3241, %v3245
      %v3247 = vrot.slane %v3145, 1
      %v3248 = vsel %vm1275, %v3243, %v3247
      %v3249 = vrot.slane %v3149, 1
      %v3250 = vsel %vm1275, %v3245, %v3249
      %v3251 = vrot.slane %v3151, 1
      %v3252 = vsel %vm1275, %v3247, %v3251
      %v3253 = vrot.slane %v3155, 1
      %v3254 = vsel %vm1275, %v3249, %v3253
      %v3255 = vrot.slane %v3157, 1
      %v3256 = vsel %vm1275, %v3251, %v3255
      %v3257 = vrot.slane %v3161, 1
      %v3258 = vsel %vm1275, %v3253, %v3257
      %v3259 = vrot.slane %v3163, 1
      %v3260 = vsel %vm1275, %v3255, %v3259
      %v3261 = vrot.slane %v3167, 1
      %v3262 = vsel %vm1275, %v3257, %v3261
      %v3263 = vrot.slane %v3169, 1
      %v3264 = vsel %vm1275, %v3259, %v3263
      %v3299 = vsel %vm1275, %v3261, %v3203
      %v3300 = vsel %vm1275, %v3263, %v3206
      %3301 = vmatprep.subr.mxu0 %v2977
      %3302 = vmatpush1.msra.mxu0 %v2976
      %3303 = vmatprep.subr.mxu0 %v2975
      %3304 = vmatpush1.msra.mxu0 %v2974
      %3305 = vmatprep.subr.mxu0 %v2973
      %3306 = vmatpush1.msra.mxu0 %v2972
      %3307 = vmatprep.subr.mxu0 %v2971
      %3308 = vmatpush1.msra.mxu0 %v2970
      %3309 = vmatprep.subr.mxu0 %v2969
      %3310 = vmatpush1.msra.mxu0 %v2968
      %3311 = vmatprep.subr.mxu0 %v2967
      %3312 = vmatpush1.msra.mxu0 %v2966
      %3313 = vmatprep.subr.mxu0 %v2965
      %3314 = vmatpush1.msra.mxu0 %v2964
      %3315 = vmatprep.subr.mxu0 %v2963
      %3316 = vmatpush1.msra.mxu0 %v2962
      %3317 = vmatprep.subr.mxu0 %v2961
      %3318 = vmatpush1.msra.mxu0 %v2960
      %3319 = vmatprep.subr.mxu0 %v2959
      %3320 = vmatpush1.msra.mxu0 %v2958
      %3321 = vmatprep.subr.mxu0 %v2957
      %3322 = vmatpush1.msra.mxu0 %v2956
      %3323 = vmatprep.subr.mxu0 %v2955
      %3324 = vmatpush1.msra.mxu0 %v2954
      %3325 = vmatprep.subr.mxu0 %v2953
      %3326 = vmatpush1.msra.mxu0 %v2952
      %3327 = vmatprep.subr.mxu0 %v2951
      %3328 = vmatpush1.msra.mxu0 %v2950
      %3329 = vmatprep.subr.mxu0 %v2949
      %3330 = vmatpush1.msra.mxu0 %v2948
      %3331 = vmatprep.subr.mxu0 %v2947
      %3332 = vmatpush1.msra.mxu0 %v2946
      %3333 = vmatprep.subr.mxu0 0.0
      %3334 = vmatpush2.msra.mxu0 0.0
      %3335 = vmatprep.subr.mxu0 0.0
      %3336 = vmatpush2.msra.mxu0 0.0
      %3337 = vmatprep.subr.mxu0 0.0
      %3338 = vmatpush2.msra.mxu0 0.0
      %3339 = vmatprep.subr.mxu0 0.0
      %3340 = vmatpush2.msra.mxu0 0.0
      %3341 = vmatprep.subr.mxu0 0.0
      %3342 = vmatpush2.msra.mxu0 0.0
      %3343 = vmatprep.subr.mxu0 0.0
      %3344 = vmatpush2.msra.mxu0 0.0
      %3345 = vmatprep.subr.mxu0 0.0
      %3346 = vmatpush2.msra.mxu0 0.0
      %3347 = vmatprep.subr.mxu0 0.0
      %3348 = vmatpush2.msra.mxu0 0.0
      %3349 = vmatprep.subr.mxu0 0.0
      %3350 = vmatpush2.msra.mxu0 0.0
      %3351 = vmatprep.subr.mxu0 0.0
      %3352 = vmatpush2.msra.mxu0 0.0
      %3353 = vmatprep.subr.mxu0 0.0
      %3354 = vmatpush2.msra.mxu0 0.0
      %3355 = vmatprep.subr.mxu0 0.0
      %3356 = vmatpush2.msra.mxu0 0.0
      %3357 = vmatprep.subr.mxu0 0.0
      %3358 = vmatpush2.msra.mxu0 0.0
      %3359 = vmatprep.subr.mxu0 0.0
      %3360 = vmatpush2.msra.mxu0 0.0
      %3361 = vmatprep.subr.mxu0 0.0
      %3362 = vmatpush2.msra.mxu0 0.0
      %3363 = vmatprep.subr.mxu0 0.0
      %3364 = vmatpush2.msra.mxu0 0.0
      %3365 = vmatprep.mubr.f32.mxu0 0.0
      %3366 = vmatmul.mubr.f32.gmra.mxu0 %v2930
      %v3367 = vpop.f32.mrf.mxu0
      %v3368 = vadd.f32 %v3205, %v3367
      %v3369 = vpop.f32.mrf.mxu0
      %v3370 = vadd.f32 %v3208, %v3369
      %3371 = vmatprep.mubr.f32.mxu0 0.0
      %3372 = vmatmul.mubr.f32.gmra.mxu0 %v2931
      %v3373 = vpop.f32.mrf.mxu0
      %v3374 = vadd.f32 %v3210, %v3373
      %v3375 = vpop.f32.mrf.mxu0
      %v3376 = vadd.f32 %v3212, %v3375
      %3377 = vmatprep.mubr.f32.mxu0 0.0
      %3378 = vmatmul.mubr.f32.gmra.mxu0 %v2932
      %v3379 = vpop.f32.mrf.mxu0
      %v3380 = vadd.f32 %v3214, %v3379
      %v3381 = vpop.f32.mrf.mxu0
      %v3382 = vadd.f32 %v3216, %v3381
      %3383 = vmatprep.mubr.f32.mxu0 0.0
      %3384 = vmatmul.mubr.f32.gmra.mxu0 %v2933
      %v3385 = vpop.f32.mrf.mxu0
      %v3386 = vadd.f32 %v3218, %v3385
      %v3387 = vpop.f32.mrf.mxu0
      %v3388 = vadd.f32 %v3220, %v3387
      %3389 = vmatprep.mubr.f32.mxu0 0.0
      %3390 = vmatmul.mubr.f32.gmra.mxu0 %v2934
      %v3391 = vpop.f32.mrf.mxu0
      %v3392 = vadd.f32 %v3222, %v3391
      %v3393 = vpop.f32.mrf.mxu0
      %v3394 = vadd.f32 %v3224, %v3393
      %3395 = vmatprep.mubr.f32.mxu0 0.0
      %3396 = vmatmul.mubr.f32.gmra.mxu0 %v2935
      %v3397 = vpop.f32.mrf.mxu0
      %v3398 = vadd.f32 %v3226, %v3397
      %v3399 = vpop.f32.mrf.mxu0
      %v3400 = vadd.f32 %v3228, %v3399
      %3401 = vmatprep.mubr.f32.mxu0 0.0
      %3402 = vmatmul.mubr.f32.gmra.mxu0 %v2936
      %v3403 = vpop.f32.mrf.mxu0
      %v3404 = vadd.f32 %v3230, %v3403
      %v3405 = vpop.f32.mrf.mxu0
      %v3406 = vadd.f32 %v3232, %v3405
      %3407 = vmatprep.mubr.f32.mxu0 0.0
      %3408 = vmatmul.mubr.f32.gmra.mxu0 %v2937
      %v3409 = vpop.f32.mrf.mxu0
      %v3410 = vadd.f32 %v3234, %v3409
      %v3411 = vpop.f32.mrf.mxu0
      %v3412 = vadd.f32 %v3236, %v3411
      %3413 = vmatprep.mubr.f32.mxu0 0.0
      %3414 = vmatmul.mubr.f32.gmra.mxu0 %v2938
      %v3415 = vpop.f32.mrf.mxu0
      %v3416 = vadd.f32 %v3238, %v3415
      %v3417 = vpop.f32.mrf.mxu0
      %v3418 = vadd.f32 %v3240, %v3417
      %3419 = vmatprep.mubr.f32.mxu0 0.0
      %3420 = vmatmul.mubr.f32.gmra.mxu0 %v2939
      %v3421 = vpop.f32.mrf.mxu0
      %v3422 = vadd.f32 %v3242, %v3421
      %v3423 = vpop.f32.mrf.mxu0
      %v3424 = vadd.f32 %v3244, %v3423
      %3425 = vmatprep.mubr.f32.mxu0 0.0
      %3426 = vmatmul.mubr.f32.gmra.mxu0 %v2940
      %v3427 = vpop.f32.mrf.mxu0
      %v3428 = vadd.f32 %v3246, %v3427
      %v3429 = vpop.f32.mrf.mxu0
      %v3430 = vadd.f32 %v3248, %v3429
      %3431 = vmatprep.mubr.f32.mxu0 0.0
      %3432 = vmatmul.mubr.f32.gmra.mxu0 %v2941
      %v3433 = vpop.f32.mrf.mxu0
      %v3434 = vadd.f32 %v3250, %v3433
      %v3435 = vpop.f32.mrf.mxu0
      %v3436 = vadd.f32 %v3252, %v3435
      %3437 = vmatprep.mubr.f32.mxu0 0.0
      %3438 = vmatmul.mubr.f32.gmra.mxu0 %v2942
      %v3439 = vpop.f32.mrf.mxu0
      %v3440 = vadd.f32 %v3254, %v3439
      %v3441 = vpop.f32.mrf.mxu0
      %v3442 = vadd.f32 %v3256, %v3441
      %3443 = vmatprep.mubr.f32.mxu0 0.0
      %3444 = vmatmul.mubr.f32.gmra.mxu0 %v2943
      %v3445 = vpop.f32.mrf.mxu0
      %v3446 = vadd.f32 %v3258, %v3445
      %v3447 = vpop.f32.mrf.mxu0
      %v3448 = vadd.f32 %v3260, %v3447
      %3449 = vmatprep.mubr.f32.mxu0 0.0
      %3450 = vmatmul.mubr.f32.gmra.mxu0 %v2944
      %v3451 = vpop.f32.mrf.mxu0
      %v3452 = vadd.f32 %v3262, %v3451
      %v3453 = vpop.f32.mrf.mxu0
      %v3454 = vadd.f32 %v3264, %v3453
      %3455 = vmatprep.mubr.f32.mxu0 0.0
      %3456 = vmatmul.mubr.f32.gmra.mxu0 %v2945
      %v3457 = vpop.f32.mrf.mxu0
      %v3458 = vadd.f32 %v3299, %v3457
      %v3459 = vpop.f32.mrf.mxu0
      %v3460 = vadd.f32 %v3300, %v3459
      %3461 = vdwg.mxu0
      %v3462 = vld [vmem:[%s4 + $0x200] sm:$0xff]
      %v3463 = vld [vmem:[%s4 + $0x208] sm:$0xff]
      %v3464 = vld [vmem:[%s4 + $0x210] sm:$0xff]
      %v3465 = vld [vmem:[%s4 + $0x218] sm:$0xff]
      %v3466 = vld [vmem:[%s4 + $0x220] sm:$0xff]
      %v3467 = vld [vmem:[%s4 + $0x228] sm:$0xff]
      %v3468 = vld [vmem:[%s4 + $0x230] sm:$0xff]
      %v3469 = vld [vmem:[%s4 + $0x238] sm:$0xff]
      %v3470 = vld [vmem:[%s4 + $0x240] sm:$0xff]
      %v3471 = vld [vmem:[%s4 + $0x248] sm:$0xff]
      %v3472 = vld [vmem:[%s4 + $0x250] sm:$0xff]
      %v3473 = vld [vmem:[%s4 + $0x258] sm:$0xff]
      %v3474 = vld [vmem:[%s4 + $0x260] sm:$0xff]
      %v3475 = vld [vmem:[%s4 + $0x268] sm:$0xff]
      %v3476 = vld [vmem:[%s4 + $0x270] sm:$0xff]
      %v3477 = vld [vmem:[%s4 + $0x278] sm:$0xff]
      %v3478 = vld [vmem:[%s4 + $0x280] sm:$0xff]
      %v3479 = vld [vmem:[%s4 + $0x288] sm:$0xff]
      %v3480 = vld [vmem:[%s4 + $0x290] sm:$0xff]
      %v3481 = vld [vmem:[%s4 + $0x298] sm:$0xff]
      %v3482 = vld [vmem:[%s4 + $0x2a0] sm:$0xff]
      %v3483 = vld [vmem:[%s4 + $0x2a8] sm:$0xff]
      %v3484 = vld [vmem:[%s4 + $0x2b0] sm:$0xff]
      %v3485 = vld [vmem:[%s4 + $0x2b8] sm:$0xff]
      %v3486 = vld [vmem:[%s4 + $0x2c0] sm:$0xff]
      %v3487 = vld [vmem:[%s4 + $0x2c8] sm:$0xff]
      %v3488 = vld [vmem:[%s4 + $0x2d0] sm:$0xff]
      %v3489 = vld [vmem:[%s4 + $0x2d8] sm:$0xff]
      %v3490 = vld [vmem:[%s4 + $0x2e0] sm:$0xff]
      %v3491 = vld [vmem:[%s4 + $0x2e8] sm:$0xff]
      %v3492 = vld [vmem:[%s4 + $0x2f0] sm:$0xff]
      %v3493 = vld [vmem:[%s4 + $0x2f8] sm:$0xff]
      %3494 = vmatprep.subr.mxu0 %v3493
      %3495 = vmatpush1.msra.mxu0 %v3492
      %3496 = vmatprep.subr.mxu0 %v3491
      %3497 = vmatpush1.msra.mxu0 %v3490
      %3498 = vmatprep.subr.mxu0 %v3489
      %3499 = vmatpush1.msra.mxu0 %v3488
      %3500 = vmatprep.subr.mxu0 %v3487
      %3501 = vmatpush1.msra.mxu0 %v3486
      %3502 = vmatprep.subr.mxu0 %v3485
      %3503 = vmatpush1.msra.mxu0 %v3484
      %3504 = vmatprep.subr.mxu0 %v3483
      %3505 = vmatpush1.msra.mxu0 %v3482
      %3506 = vmatprep.subr.mxu0 %v3481
      %3507 = vmatpush1.msra.mxu0 %v3480
      %3508 = vmatprep.subr.mxu0 %v3479
      %3509 = vmatpush1.msra.mxu0 %v3478
      %3510 = vmatprep.subr.mxu0 %v3477
      %3511 = vmatpush1.msra.mxu0 %v3476
      %3512 = vmatprep.subr.mxu0 %v3475
      %3513 = vmatpush1.msra.mxu0 %v3474
      %3514 = vmatprep.subr.mxu0 %v3473
      %3515 = vmatpush1.msra.mxu0 %v3472
      %3516 = vmatprep.subr.mxu0 %v3471
      %3517 = vmatpush1.msra.mxu0 %v3470
      %3518 = vmatprep.subr.mxu0 %v3469
      %3519 = vmatpush1.msra.mxu0 %v3468
      %3520 = vmatprep.subr.mxu0 %v3467
      %3521 = vmatpush1.msra.mxu0 %v3466
      %3522 = vmatprep.subr.mxu0 %v3465
      %3523 = vmatpush1.msra.mxu0 %v3464
      %3524 = vmatprep.subr.mxu0 %v3463
      %3525 = vmatpush1.msra.mxu0 %v3462
      %3526 = vmatprep.subr.mxu0 0.0
      %3527 = vmatpush2.msra.mxu0 0.0
      %3528 = vmatprep.subr.mxu0 0.0
      %3529 = vmatpush2.msra.mxu0 0.0
      %3530 = vmatprep.subr.mxu0 0.0
      %3531 = vmatpush2.msra.mxu0 0.0
      %3532 = vmatprep.subr.mxu0 0.0
      %3533 = vmatpush2.msra.mxu0 0.0
      %3534 = vmatprep.subr.mxu0 0.0
      %3535 = vmatpush2.msra.mxu0 0.0
      %3536 = vmatprep.subr.mxu0 0.0
      %3537 = vmatpush2.msra.mxu0 0.0
      %3538 = vmatprep.subr.mxu0 0.0
      %3539 = vmatpush2.msra.mxu0 0.0
      %3540 = vmatprep.subr.mxu0 0.0
      %3541 = vmatpush2.msra.mxu0 0.0
      %3542 = vmatprep.subr.mxu0 0.0
      %3543 = vmatpush2.msra.mxu0 0.0
      %3544 = vmatprep.subr.mxu0 0.0
      %3545 = vmatpush2.msra.mxu0 0.0
      %3546 = vmatprep.subr.mxu0 0.0
      %3547 = vmatpush2.msra.mxu0 0.0
      %3548 = vmatprep.subr.mxu0 0.0
      %3549 = vmatpush2.msra.mxu0 0.0
      %3550 = vmatprep.subr.mxu0 0.0
      %3551 = vmatpush2.msra.mxu0 0.0
      %3552 = vmatprep.subr.mxu0 0.0
      %3553 = vmatpush2.msra.mxu0 0.0
      %3554 = vmatprep.subr.mxu0 0.0
      %3555 = vmatpush2.msra.mxu0 0.0
      %3556 = vmatprep.subr.mxu0 0.0
      %3557 = vmatpush2.msra.mxu0 0.0
      %3558 = vmatprep.mubr.f32.mxu0 0.0
      %3559 = vmatmul.mubr.f32.gmra.mxu0 %v2930
      %v3560 = vpop.f32.mrf.mxu0
      %v3561 = vadd.f32 0.0, %v3560
      %v3562 = vpop.f32.mrf.mxu0
      %v3563 = vadd.f32 0.0, %v3562
      %3564 = vmatprep.mubr.f32.mxu0 0.0
      %3565 = vmatmul.mubr.f32.gmra.mxu0 %v2931
      %v3566 = vpop.f32.mrf.mxu0
      %v3567 = vadd.f32 0.0, %v3566
      %v3568 = vpop.f32.mrf.mxu0
      %v3569 = vadd.f32 0.0, %v3568
      %3570 = vmatprep.mubr.f32.mxu0 0.0
      %3571 = vmatmul.mubr.f32.gmra.mxu0 %v2932
      %v3572 = vpop.f32.mrf.mxu0
      %v3573 = vadd.f32 0.0, %v3572
      %v3574 = vpop.f32.mrf.mxu0
      %v3575 = vadd.f32 0.0, %v3574
      %3576 = vmatprep.mubr.f32.mxu0 0.0
      %3577 = vmatmul.mubr.f32.gmra.mxu0 %v2933
      %v3578 = vpop.f32.mrf.mxu0
      %v3579 = vadd.f32 0.0, %v3578
      %v3580 = vpop.f32.mrf.mxu0
      %v3581 = vadd.f32 0.0, %v3580
      %3582 = vmatprep.mubr.f32.mxu0 0.0
      %3583 = vmatmul.mubr.f32.gmra.mxu0 %v2934
      %v3584 = vpop.f32.mrf.mxu0
      %v3585 = vadd.f32 0.0, %v3584
      %v3586 = vpop.f32.mrf.mxu0
      %v3587 = vadd.f32 0.0, %v3586
      %3588 = vmatprep.mubr.f32.mxu0 0.0
      %3589 = vmatmul.mubr.f32.gmra.mxu0 %v2935
      %v3590 = vpop.f32.mrf.mxu0
      %v3591 = vadd.f32 0.0, %v3590
      %v3592 = vpop.f32.mrf.mxu0
      %v3593 = vadd.f32 0.0, %v3592
      %3594 = vmatprep.mubr.f32.mxu0 0.0
      %3595 = vmatmul.mubr.f32.gmra.mxu0 %v2936
      %v3596 = vpop.f32.mrf.mxu0
      %v3597 = vadd.f32 0.0, %v3596
      %v3598 = vpop.f32.mrf.mxu0
      %v3599 = vadd.f32 0.0, %v3598
      %3600 = vmatprep.mubr.f32.mxu0 0.0
      %3601 = vmatmul.mubr.f32.gmra.mxu0 %v2937
      %v3602 = vpop.f32.mrf.mxu0
      %v3603 = vadd.f32 0.0, %v3602
      %v3604 = vpop.f32.mrf.mxu0
      %v3605 = vadd.f32 0.0, %v3604
      %3606 = vmatprep.mubr.f32.mxu0 0.0
      %3607 = vmatmul.mubr.f32.gmra.mxu0 %v2938
      %v3608 = vpop.f32.mrf.mxu0
      %v3609 = vadd.f32 0.0, %v3608
      %v3610 = vpop.f32.mrf.mxu0
      %v3611 = vadd.f32 0.0, %v3610
      %3612 = vmatprep.mubr.f32.mxu0 0.0
      %3613 = vmatmul.mubr.f32.gmra.mxu0 %v2939
      %v3614 = vpop.f32.mrf.mxu0
      %v3615 = vadd.f32 0.0, %v3614
      %v3616 = vpop.f32.mrf.mxu0
      %v3617 = vadd.f32 0.0, %v3616
      %3618 = vmatprep.mubr.f32.mxu0 0.0
      %3619 = vmatmul.mubr.f32.gmra.mxu0 %v2940
      %v3620 = vpop.f32.mrf.mxu0
      %v3621 = vadd.f32 0.0, %v3620
      %v3622 = vpop.f32.mrf.mxu0
      %v3623 = vadd.f32 0.0, %v3622
      %3624 = vmatprep.mubr.f32.mxu0 0.0
      %3625 = vmatmul.mubr.f32.gmra.mxu0 %v2941
      %v3626 = vpop.f32.mrf.mxu0
      %v3627 = vadd.f32 0.0, %v3626
      %v3628 = vpop.f32.mrf.mxu0
      %v3629 = vadd.f32 0.0, %v3628
      %3630 = vmatprep.mubr.f32.mxu0 0.0
      %3631 = vmatmul.mubr.f32.gmra.mxu0 %v2942
      %v3632 = vpop.f32.mrf.mxu0
      %v3633 = vadd.f32 0.0, %v3632
      %v3634 = vpop.f32.mrf.mxu0
      %v3635 = vadd.f32 0.0, %v3634
      %3636 = vmatprep.mubr.f32.mxu0 0.0
      %3637 = vmatmul.mubr.f32.gmra.mxu0 %v2943
      %v3638 = vpop.f32.mrf.mxu0
      %v3639 = vadd.f32 0.0, %v3638
      %v3640 = vpop.f32.mrf.mxu0
      %v3641 = vadd.f32 0.0, %v3640
      %3642 = vmatprep.mubr.f32.mxu0 0.0
      %3643 = vmatmul.mubr.f32.gmra.mxu0 %v2944
      %v3644 = vpop.f32.mrf.mxu0
      %v3645 = vadd.f32 0.0, %v3644
      %v3646 = vpop.f32.mrf.mxu0
      %v3647 = vadd.f32 0.0, %v3646
      %3648 = vmatprep.mubr.f32.mxu0 0.0
      %3649 = vmatmul.mubr.f32.gmra.mxu0 %v2945
      %v3650 = vpop.f32.mrf.mxu0
      %v3651 = vadd.f32 0.0, %v3650
      %v3652 = vpop.f32.mrf.mxu0
      %v3653 = vadd.f32 0.0, %v3652
      %3654 = vdwg.mxu0
      %v3687 = vrot.slane %v3561, 2
      %v3688 = vrot.slane %v3567, 2
      %v3689 = vsel %vm1631, %v3687, %v3688
      %v3690 = vrot.slane %v3563, 2
      %v3691 = vrot.slane %v3569, 2
      %v3692 = vsel %vm1631, %v3690, %v3691
      %v3693 = vrot.slane %v3573, 2
      %v3694 = vsel %vm1631, %v3688, %v3693
      %v3695 = vrot.slane %v3575, 2
      %v3696 = vsel %vm1631, %v3691, %v3695
      %v3697 = vrot.slane %v3579, 2
      %v3698 = vsel %vm1631, %v3693, %v3697
      %v3699 = vrot.slane %v3581, 2
      %v3700 = vsel %vm1631, %v3695, %v3699
      %v3701 = vrot.slane %v3585, 2
      %v3702 = vsel %vm1631, %v3697, %v3701
      %v3703 = vrot.slane %v3587, 2
      %v3704 = vsel %vm1631, %v3699, %v3703
      %v3705 = vrot.slane %v3591, 2
      %v3706 = vsel %vm1631, %v3701, %v3705
      %v3707 = vrot.slane %v3593, 2
      %v3708 = vsel %vm1631, %v3703, %v3707
      %v3709 = vrot.slane %v3597, 2
      %v3710 = vsel %vm1631, %v3705, %v3709
      %v3711 = vrot.slane %v3599, 2
      %v3712 = vsel %vm1631, %v3707, %v3711
      %v3713 = vrot.slane %v3603, 2
      %v3714 = vsel %vm1631, %v3709, %v3713
      %v3715 = vrot.slane %v3605, 2
      %v3716 = vsel %vm1631, %v3711, %v3715
      %v3717 = vrot.slane %v3609, 2
      %v3718 = vsel %vm1631, %v3713, %v3717
      %v3719 = vrot.slane %v3611, 2
      %v3720 = vsel %vm1631, %v3715, %v3719
      %v3721 = vrot.slane %v3615, 2
      %v3722 = vsel %vm1631, %v3717, %v3721
      %v3723 = vrot.slane %v3617, 2
      %v3724 = vsel %vm1631, %v3719, %v3723
      %v3725 = vrot.slane %v3621, 2
      %v3726 = vsel %vm1631, %v3721, %v3725
      %v3727 = vrot.slane %v3623, 2
      %v3728 = vsel %vm1631, %v3723, %v3727
      %v3729 = vrot.slane %v3627, 2
      %v3730 = vsel %vm1631, %v3725, %v3729
      %v3731 = vrot.slane %v3629, 2
      %v3732 = vsel %vm1631, %v3727, %v3731
      %v3733 = vrot.slane %v3633, 2
      %v3734 = vsel %vm1631, %v3729, %v3733
      %v3735 = vrot.slane %v3635, 2
      %v3736 = vsel %vm1631, %v3731, %v3735
      %v3737 = vrot.slane %v3639, 2
      %v3738 = vsel %vm1631, %v3733, %v3737
      %v3739 = vrot.slane %v3641, 2
      %v3740 = vsel %vm1631, %v3735, %v3739
      %v3741 = vrot.slane %v3645, 2
      %v3742 = vsel %vm1631, %v3737, %v3741
      %v3743 = vrot.slane %v3647, 2
      %v3744 = vsel %vm1631, %v3739, %v3743
      %v3745 = vrot.slane %v3651, 2
      %v3746 = vsel %vm1631, %v3741, %v3745
      %v3747 = vrot.slane %v3653, 2
      %v3748 = vsel %vm1631, %v3743, %v3747
      %v3783 = vsel %vm1631, %v3745, %v3687
      %v3784 = vsel %vm1631, %v3747, %v3690
      %v3785 = vadd.f32 %v3368, %v3689
      %v3786 = vadd.f32 %v3370, %v3692
      %v3787 = vadd.f32 %v3374, %v3694
      %v3788 = vadd.f32 %v3376, %v3696
      %v3789 = vadd.f32 %v3380, %v3698
      %v3790 = vadd.f32 %v3382, %v3700
      %v3791 = vadd.f32 %v3386, %v3702
      %v3792 = vadd.f32 %v3388, %v3704
      %v3793 = vadd.f32 %v3392, %v3706
      %v3794 = vadd.f32 %v3394, %v3708
      %v3795 = vadd.f32 %v3398, %v3710
      %v3796 = vadd.f32 %v3400, %v3712
      %v3797 = vadd.f32 %v3404, %v3714
      %v3798 = vadd.f32 %v3406, %v3716
      %v3799 = vadd.f32 %v3410, %v3718
      %v3800 = vadd.f32 %v3412, %v3720
      %v3801 = vadd.f32 %v3416, %v3722
      %v3802 = vadd.f32 %v3418, %v3724
      %v3803 = vadd.f32 %v3422, %v3726
      %v3804 = vadd.f32 %v3424, %v3728
      %v3805 = vadd.f32 %v3428, %v3730
      %v3806 = vadd.f32 %v3430, %v3732
      %v3807 = vadd.f32 %v3434, %v3734
      %v3808 = vadd.f32 %v3436, %v3736
      %v3809 = vadd.f32 %v3440, %v3738
      %v3810 = vadd.f32 %v3442, %v3740
      %v3811 = vadd.f32 %v3446, %v3742
      %v3812 = vadd.f32 %v3448, %v3744
      %v3813 = vadd.f32 %v3452, %v3746
      %v3814 = vadd.f32 %v3454, %v3748
      %v3815 = vadd.f32 %v3458, %v3783
      %v3816 = vadd.f32 %v3460, %v3784
      %v3817 = vld [vmem:[%s4 + $0x300] sm:$0xff]
      %v3818 = vld [vmem:[%s4 + $0x308] sm:$0xff]
      %v3819 = vld [vmem:[%s4 + $0x310] sm:$0xff]
      %v3820 = vld [vmem:[%s4 + $0x318] sm:$0xff]
      %v3821 = vld [vmem:[%s4 + $0x320] sm:$0xff]
      %v3822 = vld [vmem:[%s4 + $0x328] sm:$0xff]
      %v3823 = vld [vmem:[%s4 + $0x330] sm:$0xff]
      %v3824 = vld [vmem:[%s4 + $0x338] sm:$0xff]
      %v3825 = vld [vmem:[%s4 + $0x340] sm:$0xff]
      %v3826 = vld [vmem:[%s4 + $0x348] sm:$0xff]
      %v3827 = vld [vmem:[%s4 + $0x350] sm:$0xff]
      %v3828 = vld [vmem:[%s4 + $0x358] sm:$0xff]
      %v3829 = vld [vmem:[%s4 + $0x360] sm:$0xff]
      %v3830 = vld [vmem:[%s4 + $0x368] sm:$0xff]
      %v3831 = vld [vmem:[%s4 + $0x370] sm:$0xff]
      %v3832 = vld [vmem:[%s4 + $0x378] sm:$0xff]
      %v3833 = vld [vmem:[%s4 + $0x380] sm:$0xff]
      %v3834 = vld [vmem:[%s4 + $0x388] sm:$0xff]
      %v3835 = vld [vmem:[%s4 + $0x390] sm:$0xff]
      %v3836 = vld [vmem:[%s4 + $0x398] sm:$0xff]
      %v3837 = vld [vmem:[%s4 + $0x3a0] sm:$0xff]
      %v3838 = vld [vmem:[%s4 + $0x3a8] sm:$0xff]
      %v3839 = vld [vmem:[%s4 + $0x3b0] sm:$0xff]
      %v3840 = vld [vmem:[%s4 + $0x3b8] sm:$0xff]
      %v3841 = vld [vmem:[%s4 + $0x3c0] sm:$0xff]
      %v3842 = vld [vmem:[%s4 + $0x3c8] sm:$0xff]
      %v3843 = vld [vmem:[%s4 + $0x3d0] sm:$0xff]
      %v3844 = vld [vmem:[%s4 + $0x3d8] sm:$0xff]
      %v3845 = vld [vmem:[%s4 + $0x3e0] sm:$0xff]
      %v3846 = vld [vmem:[%s4 + $0x3e8] sm:$0xff]
      %v3847 = vld [vmem:[%s4 + $0x3f0] sm:$0xff]
      %v3848 = vld [vmem:[%s4 + $0x3f8] sm:$0xff]
      %3849 = vmatprep.subr.mxu0 %v3848
      %3850 = vmatpush1.msra.mxu0 %v3847
      %3851 = vmatprep.subr.mxu0 %v3846
      %3852 = vmatpush1.msra.mxu0 %v3845
      %3853 = vmatprep.subr.mxu0 %v3844
      %3854 = vmatpush1.msra.mxu0 %v3843
      %3855 = vmatprep.subr.mxu0 %v3842
      %3856 = vmatpush1.msra.mxu0 %v3841
      %3857 = vmatprep.subr.mxu0 %v3840
      %3858 = vmatpush1.msra.mxu0 %v3839
      %3859 = vmatprep.subr.mxu0 %v3838
      %3860 = vmatpush1.msra.mxu0 %v3837
      %3861 = vmatprep.subr.mxu0 %v3836
      %3862 = vmatpush1.msra.mxu0 %v3835
      %3863 = vmatprep.subr.mxu0 %v3834
      %3864 = vmatpush1.msra.mxu0 %v3833
      %3865 = vmatprep.subr.mxu0 %v3832
      %3866 = vmatpush1.msra.mxu0 %v3831
      %3867 = vmatprep.subr.mxu0 %v3830
      %3868 = vmatpush1.msra.mxu0 %v3829
      %3869 = vmatprep.subr.mxu0 %v3828
      %3870 = vmatpush1.msra.mxu0 %v3827
      %3871 = vmatprep.subr.mxu0 %v3826
      %3872 = vmatpush1.msra.mxu0 %v3825
      %3873 = vmatprep.subr.mxu0 %v3824
      %3874 = vmatpush1.msra.mxu0 %v3823
      %3875 = vmatprep.subr.mxu0 %v3822
      %3876 = vmatpush1.msra.mxu0 %v3821
      %3877 = vmatprep.subr.mxu0 %v3820
      %3878 = vmatpush1.msra.mxu0 %v3819
      %3879 = vmatprep.subr.mxu0 %v3818
      %3880 = vmatpush1.msra.mxu0 %v3817
      %3881 = vmatprep.subr.mxu0 0.0
      %3882 = vmatpush2.msra.mxu0 0.0
      %3883 = vmatprep.subr.mxu0 0.0
      %3884 = vmatpush2.msra.mxu0 0.0
      %3885 = vmatprep.subr.mxu0 0.0
      %3886 = vmatpush2.msra.mxu0 0.0
      %3887 = vmatprep.subr.mxu0 0.0
      %3888 = vmatpush2.msra.mxu0 0.0
      %3889 = vmatprep.subr.mxu0 0.0
      %3890 = vmatpush2.msra.mxu0 0.0
      %3891 = vmatprep.subr.mxu0 0.0
      %3892 = vmatpush2.msra.mxu0 0.0
      %3893 = vmatprep.subr.mxu0 0.0
      %3894 = vmatpush2.msra.mxu0 0.0
      %3895 = vmatprep.subr.mxu0 0.0
      %3896 = vmatpush2.msra.mxu0 0.0
      %3897 = vmatprep.subr.mxu0 0.0
      %3898 = vmatpush2.msra.mxu0 0.0
      %3899 = vmatprep.subr.mxu0 0.0
      %3900 = vmatpush2.msra.mxu0 0.0
      %3901 = vmatprep.subr.mxu0 0.0
      %3902 = vmatpush2.msra.mxu0 0.0
      %3903 = vmatprep.subr.mxu0 0.0
      %3904 = vmatpush2.msra.mxu0 0.0
      %3905 = vmatprep.subr.mxu0 0.0
      %3906 = vmatpush2.msra.mxu0 0.0
      %3907 = vmatprep.subr.mxu0 0.0
      %3908 = vmatpush2.msra.mxu0 0.0
      %3909 = vmatprep.subr.mxu0 0.0
      %3910 = vmatpush2.msra.mxu0 0.0
      %3911 = vmatprep.subr.mxu0 0.0
      %3912 = vmatpush2.msra.mxu0 0.0
      %3913 = vmatprep.mubr.f32.mxu0 0.0
      %3914 = vmatmul.mubr.f32.gmra.mxu0 %v2930
      %v3915 = vpop.f32.mrf.mxu0
      %v3916 = vadd.f32 0.0, %v3915
      %v3917 = vpop.f32.mrf.mxu0
      %v3918 = vadd.f32 0.0, %v3917
      %3919 = vmatprep.mubr.f32.mxu0 0.0
      %3920 = vmatmul.mubr.f32.gmra.mxu0 %v2931
      %v3921 = vpop.f32.mrf.mxu0
      %v3922 = vadd.f32 0.0, %v3921
      %v3923 = vpop.f32.mrf.mxu0
      %v3924 = vadd.f32 0.0, %v3923
      %3925 = vmatprep.mubr.f32.mxu0 0.0
      %3926 = vmatmul.mubr.f32.gmra.mxu0 %v2932
      %v3927 = vpop.f32.mrf.mxu0
      %v3928 = vadd.f32 0.0, %v3927
      %v3929 = vpop.f32.mrf.mxu0
      %v3930 = vadd.f32 0.0, %v3929
      %3931 = vmatprep.mubr.f32.mxu0 0.0
      %3932 = vmatmul.mubr.f32.gmra.mxu0 %v2933
      %v3933 = vpop.f32.mrf.mxu0
      %v3934 = vadd.f32 0.0, %v3933
      %v3935 = vpop.f32.mrf.mxu0
      %v3936 = vadd.f32 0.0, %v3935
      %3937 = vmatprep.mubr.f32.mxu0 0.0
      %3938 = vmatmul.mubr.f32.gmra.mxu0 %v2934
      %v3939 = vpop.f32.mrf.mxu0
      %v3940 = vadd.f32 0.0, %v3939
      %v3941 = vpop.f32.mrf.mxu0
      %v3942 = vadd.f32 0.0, %v3941
      %3943 = vmatprep.mubr.f32.mxu0 0.0
      %3944 = vmatmul.mubr.f32.gmra.mxu0 %v2935
      %v3945 = vpop.f32.mrf.mxu0
      %v3946 = vadd.f32 0.0, %v3945
      %v3947 = vpop.f32.mrf.mxu0
      %v3948 = vadd.f32 0.0, %v3947
      %3949 = vmatprep.mubr.f32.mxu0 0.0
      %3950 = vmatmul.mubr.f32.gmra.mxu0 %v2936
      %v3951 = vpop.f32.mrf.mxu0
      %v3952 = vadd.f32 0.0, %v3951
      %v3953 = vpop.f32.mrf.mxu0
      %v3954 = vadd.f32 0.0, %v3953
      %3955 = vmatprep.mubr.f32.mxu0 0.0
      %3956 = vmatmul.mubr.f32.gmra.mxu0 %v2937
      %v3957 = vpop.f32.mrf.mxu0
      %v3958 = vadd.f32 0.0, %v3957
      %v3959 = vpop.f32.mrf.mxu0
      %v3960 = vadd.f32 0.0, %v3959
      %3961 = vmatprep.mubr.f32.mxu0 0.0
      %3962 = vmatmul.mubr.f32.gmra.mxu0 %v2938
      %v3963 = vpop.f32.mrf.mxu0
      %v3964 = vadd.f32 0.0, %v3963
      %v3965 = vpop.f32.mrf.mxu0
      %v3966 = vadd.f32 0.0, %v3965
      %3967 = vmatprep.mubr.f32.mxu0 0.0
      %3968 = vmatmul.mubr.f32.gmra.mxu0 %v2939
      %v3969 = vpop.f32.mrf.mxu0
      %v3970 = vadd.f32 0.0, %v3969
      %v3971 = vpop.f32.mrf.mxu0
      %v3972 = vadd.f32 0.0, %v3971
      %3973 = vmatprep.mubr.f32.mxu0 0.0
      %3974 = vmatmul.mubr.f32.gmra.mxu0 %v2940
      %v3975 = vpop.f32.mrf.mxu0
      %v3976 = vadd.f32 0.0, %v3975
      %v3977 = vpop.f32.mrf.mxu0
      %v3978 = vadd.f32 0.0, %v3977
      %3979 = vmatprep.mubr.f32.mxu0 0.0
      %3980 = vmatmul.mubr.f32.gmra.mxu0 %v2941
      %v3981 = vpop.f32.mrf.mxu0
      %v3982 = vadd.f32 0.0, %v3981
      %v3983 = vpop.f32.mrf.mxu0
      %v3984 = vadd.f32 0.0, %v3983
      %3985 = vmatprep.mubr.f32.mxu0 0.0
      %3986 = vmatmul.mubr.f32.gmra.mxu0 %v2942
      %v3987 = vpop.f32.mrf.mxu0
      %v3988 = vadd.f32 0.0, %v3987
      %v3989 = vpop.f32.mrf.mxu0
      %v3990 = vadd.f32 0.0, %v3989
      %3991 = vmatprep.mubr.f32.mxu0 0.0
      %3992 = vmatmul.mubr.f32.gmra.mxu0 %v2943
      %v3993 = vpop.f32.mrf.mxu0
      %v3994 = vadd.f32 0.0, %v3993
      %v3995 = vpop.f32.mrf.mxu0
      %v3996 = vadd.f32 0.0, %v3995
      %3997 = vmatprep.mubr.f32.mxu0 0.0
      %3998 = vmatmul.mubr.f32.gmra.mxu0 %v2944
      %v3999 = vpop.f32.mrf.mxu0
      %v4000 = vadd.f32 0.0, %v3999
      %v4001 = vpop.f32.mrf.mxu0
      %v4002 = vadd.f32 0.0, %v4001
      %4003 = vmatprep.mubr.f32.mxu0 0.0
      %4004 = vmatmul.mubr.f32.gmra.mxu0 %v2945
      %v4005 = vpop.f32.mrf.mxu0
      %v4006 = vadd.f32 0.0, %v4005
      %v4007 = vpop.f32.mrf.mxu0
      %v4008 = vadd.f32 0.0, %v4007
      %4009 = vdwg.mxu0
      %vm4042 = vcmask 1044480
      %v4043 = vrot.slane %v3916, 3
      %v4044 = vrot.slane %v3922, 3
      %v4045 = vsel %vm4042, %v4043, %v4044
      %v4046 = vrot.slane %v3918, 3
      %v4047 = vrot.slane %v3924, 3
      %v4048 = vsel %vm4042, %v4046, %v4047
      %v4049 = vrot.slane %v3928, 3
      %v4050 = vsel %vm4042, %v4044, %v4049
      %v4051 = vrot.slane %v3930, 3
      %v4052 = vsel %vm4042, %v4047, %v4051
      %v4053 = vrot.slane %v3934, 3
      %v4054 = vsel %vm4042, %v4049, %v4053
      %v4055 = vrot.slane %v3936, 3
      %v4056 = vsel %vm4042, %v4051, %v4055
      %v4057 = vrot.slane %v3940, 3
      %v4058 = vsel %vm4042, %v4053, %v4057
      %v4059 = vrot.slane %v3942, 3
      %v4060 = vsel %vm4042, %v4055, %v4059
      %v4061 = vrot.slane %v3946, 3
      %v4062 = vsel %vm4042, %v4057, %v4061
      %v4063 = vrot.slane %v3948, 3
      %v4064 = vsel %vm4042, %v4059, %v4063
      %v4065 = vrot.slane %v3952, 3
      %v4066 = vsel %vm4042, %v4061, %v4065
      %v4067 = vrot.slane %v3954, 3
      %v4068 = vsel %vm4042, %v4063, %v4067
      %v4069 = vrot.slane %v3958, 3
      %v4070 = vsel %vm4042, %v4065, %v4069
      %v4071 = vrot.slane %v3960, 3
      %v4072 = vsel %vm4042, %v4067, %v4071
      %v4073 = vrot.slane %v3964, 3
      %v4074 = vsel %vm4042, %v4069, %v4073
      %v4075 = vrot.slane %v3966, 3
      %v4076 = vsel %vm4042, %v4071, %v4075
      %v4077 = vrot.slane %v3970, 3
      %v4078 = vsel %vm4042, %v4073, %v4077
      %v4079 = vrot.slane %v3972, 3
      %v4080 = vsel %vm4042, %v4075, %v4079
      %v4081 = vrot.slane %v3976, 3
      %v4082 = vsel %vm4042, %v4077, %v4081
      %v4083 = vrot.slane %v3978, 3
      %v4084 = vsel %vm4042, %v4079, %v4083
      %v4085 = vrot.slane %v3982, 3
      %v4086 = vsel %vm4042, %v4081, %v4085
      %v4087 = vrot.slane %v3984, 3
      %v4088 = vsel %vm4042, %v4083, %v4087
      %v4089 = vrot.slane %v3988, 3
      %v4090 = vsel %vm4042, %v4085, %v4089
      %v4091 = vrot.slane %v3990, 3
      %v4092 = vsel %vm4042, %v4087, %v4091
      %v4093 = vrot.slane %v3994, 3
      %v4094 = vsel %vm4042, %v4089, %v4093
      %v4095 = vrot.slane %v3996, 3
      %v4096 = vsel %vm4042, %v4091, %v4095
      %v4097 = vrot.slane %v4000, 3
      %v4098 = vsel %vm4042, %v4093, %v4097
      %v4099 = vrot.slane %v4002, 3
      %v4100 = vsel %vm4042, %v4095, %v4099
      %v4101 = vrot.slane %v4006, 3
      %v4102 = vsel %vm4042, %v4097, %v4101
      %v4103 = vrot.slane %v4008, 3
      %v4104 = vsel %vm4042, %v4099, %v4103
      %v4139 = vsel %vm4042, %v4101, %v4043
      %v4140 = vsel %vm4042, %v4103, %v4046
      %v4141 = vadd.f32 %v3785, %v4045
      %v4142 = vadd.f32 %v3786, %v4048
      %v4143 = vadd.f32 %v3787, %v4050
      %v4144 = vadd.f32 %v3788, %v4052
      %v4145 = vadd.f32 %v3789, %v4054
      %v4146 = vadd.f32 %v3790, %v4056
      %v4147 = vadd.f32 %v3791, %v4058
      %v4148 = vadd.f32 %v3792, %v4060
      %v4149 = vadd.f32 %v3793, %v4062
      %v4150 = vadd.f32 %v3794, %v4064
      %v4151 = vadd.f32 %v3795, %v4066
      %v4152 = vadd.f32 %v3796, %v4068
      %v4153 = vadd.f32 %v3797, %v4070
      %v4154 = vadd.f32 %v3798, %v4072
      %v4155 = vadd.f32 %v3799, %v4074
      %v4156 = vadd.f32 %v3800, %v4076
      %v4157 = vadd.f32 %v3801, %v4078
      %v4158 = vadd.f32 %v3802, %v4080
      %v4159 = vadd.f32 %v3803, %v4082
      %v4160 = vadd.f32 %v3804, %v4084
      %v4161 = vadd.f32 %v3805, %v4086
      %v4162 = vadd.f32 %v3806, %v4088
      %v4163 = vadd.f32 %v3807, %v4090
      %v4164 = vadd.f32 %v3808, %v4092
      %v4165 = vadd.f32 %v3809, %v4094
      %v4166 = vadd.f32 %v3810, %v4096
      %v4167 = vadd.f32 %v3811, %v4098
      %v4168 = vadd.f32 %v3812, %v4100
      %v4169 = vadd.f32 %v3813, %v4102
      %v4170 = vadd.f32 %v3814, %v4104
      %v4171 = vadd.f32 %v3815, %v4139
      %v4172 = vadd.f32 %v3816, %v4140
      %v4173 = vld [vmem:[%s4 + $0x400] sm:$0xff]
      %v4174 = vld [vmem:[%s4 + $0x408] sm:$0xff]
      %v4175 = vld [vmem:[%s4 + $0x410] sm:$0xff]
      %v4176 = vld [vmem:[%s4 + $0x418] sm:$0xff]
      %v4177 = vld [vmem:[%s4 + $0x420] sm:$0xff]
      %v4178 = vld [vmem:[%s4 + $0x428] sm:$0xff]
      %v4179 = vld [vmem:[%s4 + $0x430] sm:$0xff]
      %v4180 = vld [vmem:[%s4 + $0x438] sm:$0xff]
      %v4181 = vld [vmem:[%s4 + $0x440] sm:$0xff]
      %v4182 = vld [vmem:[%s4 + $0x448] sm:$0xff]
      %v4183 = vld [vmem:[%s4 + $0x450] sm:$0xff]
      %v4184 = vld [vmem:[%s4 + $0x458] sm:$0xff]
      %v4185 = vld [vmem:[%s4 + $0x460] sm:$0xff]
      %v4186 = vld [vmem:[%s4 + $0x468] sm:$0xff]
      %v4187 = vld [vmem:[%s4 + $0x470] sm:$0xff]
      %v4188 = vld [vmem:[%s4 + $0x478] sm:$0xff]
      %v4189 = vld [vmem:[%s4 + $0x480] sm:$0xff]
      %v4190 = vld [vmem:[%s4 + $0x488] sm:$0xff]
      %v4191 = vld [vmem:[%s4 + $0x490] sm:$0xff]
      %v4192 = vld [vmem:[%s4 + $0x498] sm:$0xff]
      %v4193 = vld [vmem:[%s4 + $0x4a0] sm:$0xff]
      %v4194 = vld [vmem:[%s4 + $0x4a8] sm:$0xff]
      %v4195 = vld [vmem:[%s4 + $0x4b0] sm:$0xff]
      %v4196 = vld [vmem:[%s4 + $0x4b8] sm:$0xff]
      %v4197 = vld [vmem:[%s4 + $0x4c0] sm:$0xff]
      %v4198 = vld [vmem:[%s4 + $0x4c8] sm:$0xff]
      %v4199 = vld [vmem:[%s4 + $0x4d0] sm:$0xff]
      %v4200 = vld [vmem:[%s4 + $0x4d8] sm:$0xff]
      %v4201 = vld [vmem:[%s4 + $0x4e0] sm:$0xff]
      %v4202 = vld [vmem:[%s4 + $0x4e8] sm:$0xff]
      %v4203 = vld [vmem:[%s4 + $0x4f0] sm:$0xff]
      %v4204 = vld [vmem:[%s4 + $0x4f8] sm:$0xff]
      %4205 = vmatprep.subr.mxu0 %v4204
      %4206 = vmatpush1.msra.mxu0 %v4203
      %4207 = vmatprep.subr.mxu0 %v4202
      %4208 = vmatpush1.msra.mxu0 %v4201
      %4209 = vmatprep.subr.mxu0 %v4200
      %4210 = vmatpush1.msra.mxu0 %v4199
      %4211 = vmatprep.subr.mxu0 %v4198
      %4212 = vmatpush1.msra.mxu0 %v4197
      %4213 = vmatprep.subr.mxu0 %v4196
      %4214 = vmatpush1.msra.mxu0 %v4195
      %4215 = vmatprep.subr.mxu0 %v4194
      %4216 = vmatpush1.msra.mxu0 %v4193
      %4217 = vmatprep.subr.mxu0 %v4192
      %4218 = vmatpush1.msra.mxu0 %v4191
      %4219 = vmatprep.subr.mxu0 %v4190
      %4220 = vmatpush1.msra.mxu0 %v4189
      %4221 = vmatprep.subr.mxu0 %v4188
      %4222 = vmatpush1.msra.mxu0 %v4187
      %4223 = vmatprep.subr.mxu0 %v4186
      %4224 = vmatpush1.msra.mxu0 %v4185
      %4225 = vmatprep.subr.mxu0 %v4184
      %4226 = vmatpush1.msra.mxu0 %v4183
      %4227 = vmatprep.subr.mxu0 %v4182
      %4228 = vmatpush1.msra.mxu0 %v4181
      %4229 = vmatprep.subr.mxu0 %v4180
      %4230 = vmatpush1.msra.mxu0 %v4179
      %4231 = vmatprep.subr.mxu0 %v4178
      %4232 = vmatpush1.msra.mxu0 %v4177
      %4233 = vmatprep.subr.mxu0 %v4176
      %4234 = vmatpush1.msra.mxu0 %v4175
      %4235 = vmatprep.subr.mxu0 %v4174
      %4236 = vmatpush1.msra.mxu0 %v4173
      %4237 = vmatprep.subr.mxu0 0.0
      %4238 = vmatpush2.msra.mxu0 0.0
      %4239 = vmatprep.subr.mxu0 0.0
      %4240 = vmatpush2.msra.mxu0 0.0
      %4241 = vmatprep.subr.mxu0 0.0
      %4242 = vmatpush2.msra.mxu0 0.0
      %4243 = vmatprep.subr.mxu0 0.0
      %4244 = vmatpush2.msra.mxu0 0.0
      %4245 = vmatprep.subr.mxu0 0.0
      %4246 = vmatpush2.msra.mxu0 0.0
      %4247 = vmatprep.subr.mxu0 0.0
      %4248 = vmatpush2.msra.mxu0 0.0
      %4249 = vmatprep.subr.mxu0 0.0
      %4250 = vmatpush2.msra.mxu0 0.0
      %4251 = vmatprep.subr.mxu0 0.0
      %4252 = vmatpush2.msra.mxu0 0.0
      %4253 = vmatprep.subr.mxu0 0.0
      %4254 = vmatpush2.msra.mxu0 0.0
      %4255 = vmatprep.subr.mxu0 0.0
      %4256 = vmatpush2.msra.mxu0 0.0
      %4257 = vmatprep.subr.mxu0 0.0
      %4258 = vmatpush2.msra.mxu0 0.0
      %4259 = vmatprep.subr.mxu0 0.0
      %4260 = vmatpush2.msra.mxu0 0.0
      %4261 = vmatprep.subr.mxu0 0.0
      %4262 = vmatpush2.msra.mxu0 0.0
      %4263 = vmatprep.subr.mxu0 0.0
      %4264 = vmatpush2.msra.mxu0 0.0
      %4265 = vmatprep.subr.mxu0 0.0
      %4266 = vmatpush2.msra.mxu0 0.0
      %4267 = vmatprep.subr.mxu0 0.0
      %4268 = vmatpush2.msra.mxu0 0.0
      %4269 = vmatprep.mubr.f32.mxu0 0.0
      %4270 = vmatmul.mubr.f32.gmra.mxu0 %v2930
      %v4271 = vpop.f32.mrf.mxu0
      %v4272 = vadd.f32 0.0, %v4271
      %v4273 = vpop.f32.mrf.mxu0
      %v4274 = vadd.f32 0.0, %v4273
      %4275 = vmatprep.mubr.f32.mxu0 0.0
      %4276 = vmatmul.mubr.f32.gmra.mxu0 %v2931
      %v4277 = vpop.f32.mrf.mxu0
      %v4278 = vadd.f32 0.0, %v4277
      %v4279 = vpop.f32.mrf.mxu0
      %v4280 = vadd.f32 0.0, %v4279
      %4281 = vmatprep.mubr.f32.mxu0 0.0
      %4282 = vmatmul.mubr.f32.gmra.mxu0 %v2932
      %v4283 = vpop.f32.mrf.mxu0
      %v4284 = vadd.f32 0.0, %v4283
      %v4285 = vpop.f32.mrf.mxu0
      %v4286 = vadd.f32 0.0, %v4285
      %4287 = vmatprep.mubr.f32.mxu0 0.0
      %4288 = vmatmul.mubr.f32.gmra.mxu0 %v2933
      %v4289 = vpop.f32.mrf.mxu0
      %v4290 = vadd.f32 0.0, %v4289
      %v4291 = vpop.f32.mrf.mxu0
      %v4292 = vadd.f32 0.0, %v4291
      %4293 = vmatprep.mubr.f32.mxu0 0.0
      %4294 = vmatmul.mubr.f32.gmra.mxu0 %v2934
      %v4295 = vpop.f32.mrf.mxu0
      %v4296 = vadd.f32 0.0, %v4295
      %v4297 = vpop.f32.mrf.mxu0
      %v4298 = vadd.f32 0.0, %v4297
      %4299 = vmatprep.mubr.f32.mxu0 0.0
      %4300 = vmatmul.mubr.f32.gmra.mxu0 %v2935
      %v4301 = vpop.f32.mrf.mxu0
      %v4302 = vadd.f32 0.0, %v4301
      %v4303 = vpop.f32.mrf.mxu0
      %v4304 = vadd.f32 0.0, %v4303
      %4305 = vmatprep.mubr.f32.mxu0 0.0
      %4306 = vmatmul.mubr.f32.gmra.mxu0 %v2936
      %v4307 = vpop.f32.mrf.mxu0
      %v4308 = vadd.f32 0.0, %v4307
      %v4309 = vpop.f32.mrf.mxu0
      %v4310 = vadd.f32 0.0, %v4309
      %4311 = vmatprep.mubr.f32.mxu0 0.0
      %4312 = vmatmul.mubr.f32.gmra.mxu0 %v2937
      %v4313 = vpop.f32.mrf.mxu0
      %v4314 = vadd.f32 0.0, %v4313
      %v4315 = vpop.f32.mrf.mxu0
      %v4316 = vadd.f32 0.0, %v4315
      %4317 = vmatprep.mubr.f32.mxu0 0.0
      %4318 = vmatmul.mubr.f32.gmra.mxu0 %v2938
      %v4319 = vpop.f32.mrf.mxu0
      %v4320 = vadd.f32 0.0, %v4319
      %v4321 = vpop.f32.mrf.mxu0
      %v4322 = vadd.f32 0.0, %v4321
      %4323 = vmatprep.mubr.f32.mxu0 0.0
      %4324 = vmatmul.mubr.f32.gmra.mxu0 %v2939
      %v4325 = vpop.f32.mrf.mxu0
      %v4326 = vadd.f32 0.0, %v4325
      %v4327 = vpop.f32.mrf.mxu0
      %v4328 = vadd.f32 0.0, %v4327
      %4329 = vmatprep.mubr.f32.mxu0 0.0
      %4330 = vmatmul.mubr.f32.gmra.mxu0 %v2940
      %v4331 = vpop.f32.mrf.mxu0
      %v4332 = vadd.f32 0.0, %v4331
      %v4333 = vpop.f32.mrf.mxu0
      %v4334 = vadd.f32 0.0, %v4333
      %4335 = vmatprep.mubr.f32.mxu0 0.0
      %4336 = vmatmul.mubr.f32.gmra.mxu0 %v2941
      %v4337 = vpop.f32.mrf.mxu0
      %v4338 = vadd.f32 0.0, %v4337
      %v4339 = vpop.f32.mrf.mxu0
      %v4340 = vadd.f32 0.0, %v4339
      %4341 = vmatprep.mubr.f32.mxu0 0.0
      %4342 = vmatmul.mubr.f32.gmra.mxu0 %v2942
      %v4343 = vpop.f32.mrf.mxu0
      %v4344 = vadd.f32 0.0, %v4343
      %v4345 = vpop.f32.mrf.mxu0
      %v4346 = vadd.f32 0.0, %v4345
      %4347 = vmatprep.mubr.f32.mxu0 0.0
      %4348 = vmatmul.mubr.f32.gmra.mxu0 %v2943
      %v4349 = vpop.f32.mrf.mxu0
      %v4350 = vadd.f32 0.0, %v4349
      %v4351 = vpop.f32.mrf.mxu0
      %v4352 = vadd.f32 0.0, %v4351
      %4353 = vmatprep.mubr.f32.mxu0 0.0
      %4354 = vmatmul.mubr.f32.gmra.mxu0 %v2944
      %v4355 = vpop.f32.mrf.mxu0
      %v4356 = vadd.f32 0.0, %v4355
      %v4357 = vpop.f32.mrf.mxu0
      %v4358 = vadd.f32 0.0, %v4357
      %4359 = vmatprep.mubr.f32.mxu0 0.0
      %4360 = vmatmul.mubr.f32.gmra.mxu0 %v2945
      %v4361 = vpop.f32.mrf.mxu0
      %v4362 = vadd.f32 0.0, %v4361
      %v4363 = vpop.f32.mrf.mxu0
      %v4364 = vadd.f32 0.0, %v4363
      %4365 = vdwg.mxu0
      %vm4398 = vcmask 1043456
      %v4399 = vrot.slane %v4272, 4
      %v4400 = vrot.slane %v4278, 4
      %v4401 = vsel %vm4398, %v4399, %v4400
      %v4402 = vrot.slane %v4274, 4
      %v4403 = vrot.slane %v4280, 4
      %v4404 = vsel %vm4398, %v4402, %v4403
      %v4405 = vrot.slane %v4284, 4
      %v4406 = vsel %vm4398, %v4400, %v4405
      %v4407 = vrot.slane %v4286, 4
      %v4408 = vsel %vm4398, %v4403, %v4407
      %v4409 = vrot.slane %v4290, 4
      %v4410 = vsel %vm4398, %v4405, %v4409
      %v4411 = vrot.slane %v4292, 4
      %v4412 = vsel %vm4398, %v4407, %v4411
      %v4413 = vrot.slane %v4296, 4
      %v4414 = vsel %vm4398, %v4409, %v4413
      %v4415 = vrot.slane %v4298, 4
      %v4416 = vsel %vm4398, %v4411, %v4415
      %v4417 = vrot.slane %v4302, 4
      %v4418 = vsel %vm4398, %v4413, %v4417
      %v4419 = vrot.slane %v4304, 4
      %v4420 = vsel %vm4398, %v4415, %v4419
      %v4421 = vrot.slane %v4308, 4
      %v4422 = vsel %vm4398, %v4417, %v4421
      %v4423 = vrot.slane %v4310, 4
      %v4424 = vsel %vm4398, %v4419, %v4423
      %v4425 = vrot.slane %v4314, 4
      %v4426 = vsel %vm4398, %v4421, %v4425
      %v4427 = vrot.slane %v4316, 4
      %v4428 = vsel %vm4398, %v4423, %v4427
      %v4429 = vrot.slane %v4320, 4
      %v4430 = vsel %vm4398, %v4425, %v4429
      %v4431 = vrot.slane %v4322, 4
      %v4432 = vsel %vm4398, %v4427, %v4431
      %v4433 = vrot.slane %v4326, 4
      %v4434 = vsel %vm4398, %v4429, %v4433
      %v4435 = vrot.slane %v4328, 4
      %v4436 = vsel %vm4398, %v4431, %v4435
      %v4437 = vrot.slane %v4332, 4
      %v4438 = vsel %vm4398, %v4433, %v4437
      %v4439 = vrot.slane %v4334, 4
      %v4440 = vsel %vm4398, %v4435, %v4439
      %v4441 = vrot.slane %v4338, 4
      %v4442 = vsel %vm4398, %v4437, %v4441
      %v4443 = vrot.slane %v4340, 4
      %v4444 = vsel %vm4398, %v4439, %v4443
      %v4445 = vrot.slane %v4344, 4
      %v4446 = vsel %vm4398, %v4441, %v4445
      %v4447 = vrot.slane %v4346, 4
      %v4448 = vsel %vm4398, %v4443, %v4447
      %v4449 = vrot.slane %v4350, 4
      %v4450 = vsel %vm4398, %v4445, %v4449
      %v4451 = vrot.slane %v4352, 4
      %v4452 = vsel %vm4398, %v4447, %v4451
      %v4453 = vrot.slane %v4356, 4
      %v4454 = vsel %vm4398, %v4449, %v4453
      %v4455 = vrot.slane %v4358, 4
      %v4456 = vsel %vm4398, %v4451, %v4455
      %v4457 = vrot.slane %v4362, 4
      %v4458 = vsel %vm4398, %v4453, %v4457
      %v4459 = vrot.slane %v4364, 4
      %v4460 = vsel %vm4398, %v4455, %v4459
      %v4495 = vsel %vm4398, %v4457, %v4399
      %v4496 = vsel %vm4398, %v4459, %v4402
      %v4497 = vadd.f32 %v4141, %v4401
      %v4498 = vadd.f32 %v4142, %v4404
      %v4499 = vadd.f32 %v4143, %v4406
      %v4500 = vadd.f32 %v4144, %v4408
      %v4501 = vadd.f32 %v4145, %v4410
      %v4502 = vadd.f32 %v4146, %v4412
      %v4503 = vadd.f32 %v4147, %v4414
      %v4504 = vadd.f32 %v4148, %v4416
      %v4505 = vadd.f32 %v4149, %v4418
      %v4506 = vadd.f32 %v4150, %v4420
      %v4507 = vadd.f32 %v4151, %v4422
      %v4508 = vadd.f32 %v4152, %v4424
      %v4509 = vadd.f32 %v4153, %v4426
      %v4510 = vadd.f32 %v4154, %v4428
      %v4511 = vadd.f32 %v4155, %v4430
      %v4512 = vadd.f32 %v4156, %v4432
      %v4513 = vadd.f32 %v4157, %v4434
      %v4514 = vadd.f32 %v4158, %v4436
      %v4515 = vadd.f32 %v4159, %v4438
      %v4516 = vadd.f32 %v4160, %v4440
      %v4517 = vadd.f32 %v4161, %v4442
      %v4518 = vadd.f32 %v4162, %v4444
      %v4519 = vadd.f32 %v4163, %v4446
      %v4520 = vadd.f32 %v4164, %v4448
      %v4521 = vadd.f32 %v4165, %v4450
      %v4522 = vadd.f32 %v4166, %v4452
      %v4523 = vadd.f32 %v4167, %v4454
      %v4524 = vadd.f32 %v4168, %v4456
      %v4525 = vadd.f32 %v4169, %v4458
      %v4526 = vadd.f32 %v4170, %v4460
      %v4527 = vadd.f32 %v4171, %v4495
      %v4528 = vadd.f32 %v4172, %v4496
      %v4561 = vrot.slane %v4497, 1
      %v4562 = vrot.slane %v4499, 1
      %v4563 = vsel %vm1275, %v4561, %v4562
      %v4564 = vrot.slane %v4498, 1
      %v4565 = vrot.slane %v4500, 1
      %v4566 = vsel %vm1275, %v4564, %v4565
      %v4567 = vrot.slane %v4501, 1
      %v4568 = vsel %vm1275, %v4562, %v4567
      %v4569 = vrot.slane %v4502, 1
      %v4570 = vsel %vm1275, %v4565, %v4569
      %v4571 = vrot.slane %v4503, 1
      %v4572 = vsel %vm1275, %v4567, %v4571
      %v4573 = vrot.slane %v4504, 1
      %v4574 = vsel %vm1275, %v4569, %v4573
      %v4575 = vrot.slane %v4505, 1
      %v4576 = vsel %vm1275, %v4571, %v4575
      %v4577 = vrot.slane %v4506, 1
      %v4578 = vsel %vm1275, %v4573, %v4577
      %v4579 = vrot.slane %v4507, 1
      %v4580 = vsel %vm1275, %v4575, %v4579
      %v4581 = vrot.slane %v4508, 1
      %v4582 = vsel %vm1275, %v4577, %v4581
      %v4583 = vrot.slane %v4509, 1
      %v4584 = vsel %vm1275, %v4579, %v4583
      %v4585 = vrot.slane %v4510, 1
      %v4586 = vsel %vm1275, %v4581, %v4585
      %v4587 = vrot.slane %v4511, 1
      %v4588 = vsel %vm1275, %v4583, %v4587
      %v4589 = vrot.slane %v4512, 1
      %v4590 = vsel %vm1275, %v4585, %v4589
      %v4591 = vrot.slane %v4513, 1
      %v4592 = vsel %vm1275, %v4587, %v4591
      %v4593 = vrot.slane %v4514, 1
      %v4594 = vsel %vm1275, %v4589, %v4593
      %v4595 = vrot.slane %v4515, 1
      %v4596 = vsel %vm1275, %v4591, %v4595
      %v4597 = vrot.slane %v4516, 1
      %v4598 = vsel %vm1275, %v4593, %v4597
      %v4599 = vrot.slane %v4517, 1
      %v4600 = vsel %vm1275, %v4595, %v4599
      %v4601 = vrot.slane %v4518, 1
      %v4602 = vsel %vm1275, %v4597, %v4601
      %v4603 = vrot.slane %v4519, 1
      %v4604 = vsel %vm1275, %v4599, %v4603
      %v4605 = vrot.slane %v4520, 1
      %v4606 = vsel %vm1275, %v4601, %v4605
      %v4607 = vrot.slane %v4521, 1
      %v4608 = vsel %vm1275, %v4603, %v4607
      %v4609 = vrot.slane %v4522, 1
      %v4610 = vsel %vm1275, %v4605, %v4609
      %v4611 = vrot.slane %v4523, 1
      %v4612 = vsel %vm1275, %v4607, %v4611
      %v4613 = vrot.slane %v4524, 1
      %v4614 = vsel %vm1275, %v4609, %v4613
      %v4615 = vrot.slane %v4525, 1
      %v4616 = vsel %vm1275, %v4611, %v4615
      %v4617 = vrot.slane %v4526, 1
      %v4618 = vsel %vm1275, %v4613, %v4617
      %v4619 = vrot.slane %v4527, 1
      %v4620 = vsel %vm1275, %v4615, %v4619
      %v4621 = vrot.slane %v4528, 1
      %v4622 = vsel %vm1275, %v4617, %v4621
      %v4657 = vsel %vm1275, %v4619, %v4561
      %v4658 = vsel %vm1275, %v4621, %v4564
      %v4659 = vmax.f32 %v4497, %v4563
      %v4660 = vmax.f32 %v4498, %v4566
      %v4661 = vmax.f32 %v4499, %v4568
      %v4662 = vmax.f32 %v4500, %v4570
      %v4663 = vmax.f32 %v4501, %v4572
      %v4664 = vmax.f32 %v4502, %v4574
      %v4665 = vmax.f32 %v4503, %v4576
      %v4666 = vmax.f32 %v4504, %v4578
      %v4667 = vmax.f32 %v4505, %v4580
      %v4668 = vmax.f32 %v4506, %v4582
      %v4669 = vmax.f32 %v4507, %v4584
      %v4670 = vmax.f32 %v4508, %v4586
      %v4671 = vmax.f32 %v4509, %v4588
      %v4672 = vmax.f32 %v4510, %v4590
      %v4673 = vmax.f32 %v4511, %v4592
      %v4674 = vmax.f32 %v4512, %v4594
      %v4675 = vmax.f32 %v4513, %v4596
      %v4676 = vmax.f32 %v4514, %v4598
      %v4677 = vmax.f32 %v4515, %v4600
      %v4678 = vmax.f32 %v4516, %v4602
      %v4679 = vmax.f32 %v4517, %v4604
      %v4680 = vmax.f32 %v4518, %v4606
      %v4681 = vmax.f32 %v4519, %v4608
      %v4682 = vmax.f32 %v4520, %v4610
      %v4683 = vmax.f32 %v4521, %v4612
      %v4684 = vmax.f32 %v4522, %v4614
      %v4685 = vmax.f32 %v4523, %v4616
      %v4686 = vmax.f32 %v4524, %v4618
      %v4687 = vmax.f32 %v4525, %v4620
      %v4688 = vmax.f32 %v4526, %v4622
      %v4689 = vmax.f32 %v4527, %v4657
      %v4690 = vmax.f32 %v4528, %v4658
      %v4691 = vmax.f32 %v4659, %v4660
      %v4692 = vmax.f32 %v4661, %v4662
      %v4693 = vmax.f32 %v4663, %v4664
      %v4694 = vmax.f32 %v4665, %v4666
      %v4695 = vmax.f32 %v4667, %v4668
      %v4696 = vmax.f32 %v4669, %v4670
      %v4697 = vmax.f32 %v4671, %v4672
      %v4698 = vmax.f32 %v4673, %v4674
      %v4699 = vmax.f32 %v4675, %v4676
      %v4700 = vmax.f32 %v4677, %v4678
      %v4701 = vmax.f32 %v4679, %v4680
      %v4702 = vmax.f32 %v4681, %v4682
      %v4703 = vmax.f32 %v4683, %v4684
      %v4704 = vmax.f32 %v4685, %v4686
      %v4705 = vmax.f32 %v4687, %v4688
      %v4706 = vmax.f32 %v4689, %v4690
      %v4707 = vld [vmem:[%s5] sm:$0x1]
      %v4709 = vlaneseq
      %v4710 = vshrl.u32 %v4709, 7
      %v4711 = vsub.s32 0, %v4710
      %v4712 = vrot.slane %v4707, %v4711
      %v4714 = vadd.f32 %v4691, %v4712
      %v4715 = vadd.f32 %v4692, %v4712
      %v4716 = vadd.f32 %v4693, %v4712
      %v4717 = vadd.f32 %v4694, %v4712
      %v4718 = vadd.f32 %v4695, %v4712
      %v4719 = vadd.f32 %v4696, %v4712
      %v4720 = vadd.f32 %v4697, %v4712
      %v4721 = vadd.f32 %v4698, %v4712
      %v4722 = vadd.f32 %v4699, %v4712
      %v4723 = vadd.f32 %v4700, %v4712
      %v4724 = vadd.f32 %v4701, %v4712
      %v4725 = vadd.f32 %v4702, %v4712
      %v4726 = vadd.f32 %v4703, %v4712
      %v4727 = vadd.f32 %v4704, %v4712
      %v4728 = vadd.f32 %v4705, %v4712
      %v4729 = vadd.f32 %v4706, %v4712
      %v4730 = vmax.f32 %v4714, 0.0
      %v4731 = vmax.f32 %v4715, 0.0
      %v4732 = vmax.f32 %v4716, 0.0
      %v4733 = vmax.f32 %v4717, 0.0
      %v4734 = vmax.f32 %v4718, 0.0
      %v4735 = vmax.f32 %v4719, 0.0
      %v4736 = vmax.f32 %v4720, 0.0
      %v4737 = vmax.f32 %v4721, 0.0
      %v4738 = vmax.f32 %v4722, 0.0
      %v4739 = vmax.f32 %v4723, 0.0
      %v4740 = vmax.f32 %v4724, 0.0
      %v4741 = vmax.f32 %v4725, 0.0
      %v4742 = vmax.f32 %v4726, 0.0
      %v4743 = vmax.f32 %v4727, 0.0
      %v4744 = vmax.f32 %v4728, 0.0
      %v4745 = vmax.f32 %v4729, 0.0
      %v4746 = vld [vmem:[%s6] sm:$0xff]
      %v4747 = vld [vmem:[%s6 + $0x8] sm:$0xff]
      %v4748 = vld [vmem:[%s6 + $0x10] sm:$0xff]
      %v4749 = vld [vmem:[%s6 + $0x18] sm:$0xff]
      %v4750 = vld [vmem:[%s6 + $0x20] sm:$0xff]
      %v4751 = vld [vmem:[%s6 + $0x28] sm:$0xff]
      %v4752 = vld [vmem:[%s6 + $0x30] sm:$0xff]
      %v4753 = vld [vmem:[%s6 + $0x38] sm:$0xff]
      %v4754 = vld [vmem:[%s6 + $0x40] sm:$0xff]
      %v4755 = vld [vmem:[%s6 + $0x48] sm:$0xff]
      %v4756 = vld [vmem:[%s6 + $0x50] sm:$0xff]
      %v4757 = vld [vmem:[%s6 + $0x58] sm:$0xff]
      %v4758 = vld [vmem:[%s6 + $0x60] sm:$0xff]
      %v4759 = vld [vmem:[%s6 + $0x68] sm:$0xff]
      %v4760 = vld [vmem:[%s6 + $0x70] sm:$0xff]
      %v4761 = vld [vmem:[%s6 + $0x78] sm:$0xff]
      %v4762 = vld [vmem:[%s6 + $0x80] sm:$0xff]
      %v4763 = vld [vmem:[%s6 + $0x88] sm:$0xff]
      %v4764 = vld [vmem:[%s6 + $0x90] sm:$0xff]
      %v4765 = vld [vmem:[%s6 + $0x98] sm:$0xff]
      %v4766 = vld [vmem:[%s6 + $0xa0] sm:$0xff]
      %v4767 = vld [vmem:[%s6 + $0xa8] sm:$0xff]
      %v4768 = vld [vmem:[%s6 + $0xb0] sm:$0xff]
      %v4769 = vld [vmem:[%s6 + $0xb8] sm:$0xff]
      %v4770 = vld [vmem:[%s6 + $0xc0] sm:$0xff]
      %v4771 = vld [vmem:[%s6 + $0xc8] sm:$0xff]
      %v4772 = vld [vmem:[%s6 + $0xd0] sm:$0xff]
      %v4773 = vld [vmem:[%s6 + $0xd8] sm:$0xff]
      %v4774 = vld [vmem:[%s6 + $0xe0] sm:$0xff]
      %v4775 = vld [vmem:[%s6 + $0xe8] sm:$0xff]
      %v4776 = vld [vmem:[%s6 + $0xf0] sm:$0xff]
      %v4777 = vld [vmem:[%s6 + $0xf8] sm:$0xff]
      %4778 = vmatprep.subr.mxu0 0.0
      %4779 = vmatpush1.msra.mxu0 %v4777
      %4780 = vmatprep.subr.mxu0 0.0
      %4781 = vmatpush1.msra.mxu0 %v4776
      %4782 = vmatprep.subr.mxu0 0.0
      %4783 = vmatpush1.msra.mxu0 %v4775
      %4784 = vmatprep.subr.mxu0 0.0
      %4785 = vmatpush1.msra.mxu0 %v4774
      %4786 = vmatprep.subr.mxu0 0.0
      %4787 = vmatpush1.msra.mxu0 %v4773
      %4788 = vmatprep.subr.mxu0 0.0
      %4789 = vmatpush1.msra.mxu0 %v4772
      %4790 = vmatprep.subr.mxu0 0.0
      %4791 = vmatpush1.msra.mxu0 %v4771
      %4792 = vmatprep.subr.mxu0 0.0
      %4793 = vmatpush1.msra.mxu0 %v4770
      %4794 = vmatprep.subr.mxu0 0.0
      %4795 = vmatpush1.msra.mxu0 %v4769
      %4796 = vmatprep.subr.mxu0 0.0
      %4797 = vmatpush1.msra.mxu0 %v4768
      %4798 = vmatprep.subr.mxu0 0.0
      %4799 = vmatpush1.msra.mxu0 %v4767
      %4800 = vmatprep.subr.mxu0 0.0
      %4801 = vmatpush1.msra.mxu0 %v4766
      %4802 = vmatprep.subr.mxu0 0.0
      %4803 = vmatpush1.msra.mxu0 %v4765
      %4804 = vmatprep.subr.mxu0 0.0
      %4805 = vmatpush1.msra.mxu0 %v4764
      %4806 = vmatprep.subr.mxu0 0.0
      %4807 = vmatpush1.msra.mxu0 %v4763
      %4808 = vmatprep.subr.mxu0 0.0
      %4809 = vmatpush1.msra.mxu0 %v4762
      %4810 = vmatprep.subr.mxu0 0.0
      %4811 = vmatpush2.msra.mxu0 0.0
      %4812 = vmatprep.subr.mxu0 0.0
      %4813 = vmatpush2.msra.mxu0 0.0
      %4814 = vmatprep.subr.mxu0 0.0
      %4815 = vmatpush2.msra.mxu0 0.0
      %4816 = vmatprep.subr.mxu0 0.0
      %4817 = vmatpush2.msra.mxu0 0.0
      %4818 = vmatprep.subr.mxu0 0.0
      %4819 = vmatpush2.msra.mxu0 0.0
      %4820 = vmatprep.subr.mxu0 0.0
      %4821 = vmatpush2.msra.mxu0 0.0
      %4822 = vmatprep.subr.mxu0 0.0
      %4823 = vmatpush2.msra.mxu0 0.0
      %4824 = vmatprep.subr.mxu0 0.0
      %4825 = vmatpush2.msra.mxu0 0.0
      %4826 = vmatprep.subr.mxu0 0.0
      %4827 = vmatpush2.msra.mxu0 0.0
      %4828 = vmatprep.subr.mxu0 0.0
      %4829 = vmatpush2.msra.mxu0 0.0
      %4830 = vmatprep.subr.mxu0 0.0
      %4831 = vmatpush2.msra.mxu0 0.0
      %4832 = vmatprep.subr.mxu0 0.0
      %4833 = vmatpush2.msra.mxu0 0.0
      %4834 = vmatprep.subr.mxu0 0.0
      %4835 = vmatpush2.msra.mxu0 0.0
      %4836 = vmatprep.subr.mxu0 0.0
      %4837 = vmatpush2.msra.mxu0 0.0
      %4838 = vmatprep.subr.mxu0 0.0
      %4839 = vmatpush2.msra.mxu0 0.0
      %4840 = vmatprep.subr.mxu0 0.0
      %4841 = vmatpush2.msra.mxu0 0.0
      %4842 = vmatprep.mubr.f32.mxu0 0.0
      %4843 = vmatmul.mubr.f32.gmra.mxu0 %v4730
      %v4844 = vpop.f32.mrf.mxu0
      %v4845 = vadd.f32 0.0, %v4844
      %v4846 = vpop.f32.mrf.mxu0
      %4847 = vmatprep.mubr.f32.mxu0 0.0
      %4848 = vmatmul.mubr.f32.gmra.mxu0 %v4731
      %v4849 = vpop.f32.mrf.mxu0
      %v4850 = vadd.f32 0.0, %v4849
      %v4851 = vpop.f32.mrf.mxu0
      %4852 = vmatprep.mubr.f32.mxu0 0.0
      %4853 = vmatmul.mubr.f32.gmra.mxu0 %v4732
      %v4854 = vpop.f32.mrf.mxu0
      %v4855 = vadd.f32 0.0, %v4854
      %v4856 = vpop.f32.mrf.mxu0
      %4857 = vmatprep.mubr.f32.mxu0 0.0
      %4858 = vmatmul.mubr.f32.gmra.mxu0 %v4733
      %v4859 = vpop.f32.mrf.mxu0
      %v4860 = vadd.f32 0.0, %v4859
      %v4861 = vpop.f32.mrf.mxu0
      %4862 = vmatprep.mubr.f32.mxu0 0.0
      %4863 = vmatmul.mubr.f32.gmra.mxu0 %v4734
      %v4864 = vpop.f32.mrf.mxu0
      %v4865 = vadd.f32 0.0, %v4864
      %v4866 = vpop.f32.mrf.mxu0
      %4867 = vmatprep.mubr.f32.mxu0 0.0
      %4868 = vmatmul.mubr.f32.gmra.mxu0 %v4735
      %v4869 = vpop.f32.mrf.mxu0
      %v4870 = vadd.f32 0.0, %v4869
      %v4871 = vpop.f32.mrf.mxu0
      %4872 = vmatprep.mubr.f32.mxu0 0.0
      %4873 = vmatmul.mubr.f32.gmra.mxu0 %v4736
      %v4874 = vpop.f32.mrf.mxu0
      %v4875 = vadd.f32 0.0, %v4874
      %v4876 = vpop.f32.mrf.mxu0
      %4877 = vmatprep.mubr.f32.mxu0 0.0
      %4878 = vmatmul.mubr.f32.gmra.mxu0 %v4737
      %v4879 = vpop.f32.mrf.mxu0
      %v4880 = vadd.f32 0.0, %v4879
      %v4881 = vpop.f32.mrf.mxu0
      %4882 = vmatprep.mubr.f32.mxu0 0.0
      %4883 = vmatmul.mubr.f32.gmra.mxu0 %v4738
      %v4884 = vpop.f32.mrf.mxu0
      %v4885 = vadd.f32 0.0, %v4884
      %v4886 = vpop.f32.mrf.mxu0
      %4887 = vmatprep.mubr.f32.mxu0 0.0
      %4888 = vmatmul.mubr.f32.gmra.mxu0 %v4739
      %v4889 = vpop.f32.mrf.mxu0
      %v4890 = vadd.f32 0.0, %v4889
      %v4891 = vpop.f32.mrf.mxu0
      %4892 = vmatprep.mubr.f32.mxu0 0.0
      %4893 = vmatmul.mubr.f32.gmra.mxu0 %v4740
      %v4894 = vpop.f32.mrf.mxu0
      %v4895 = vadd.f32 0.0, %v4894
      %v4896 = vpop.f32.mrf.mxu0
      %4897 = vmatprep.mubr.f32.mxu0 0.0
      %4898 = vmatmul.mubr.f32.gmra.mxu0 %v4741
      %v4899 = vpop.f32.mrf.mxu0
      %v4900 = vadd.f32 0.0, %v4899
      %v4901 = vpop.f32.mrf.mxu0
      %4902 = vmatprep.mubr.f32.mxu0 0.0
      %4903 = vmatmul.mubr.f32.gmra.mxu0 %v4742
      %v4904 = vpop.f32.mrf.mxu0
      %v4905 = vadd.f32 0.0, %v4904
      %v4906 = vpop.f32.mrf.mxu0
      %4907 = vmatprep.mubr.f32.mxu0 0.0
      %4908 = vmatmul.mubr.f32.gmra.mxu0 %v4743
      %v4909 = vpop.f32.mrf.mxu0
      %v4910 = vadd.f32 0.0, %v4909
      %v4911 = vpop.f32.mrf.mxu0
      %4912 = vmatprep.mubr.f32.mxu0 0.0
      %4913 = vmatmul.mubr.f32.gmra.mxu0 %v4744
      %v4914 = vpop.f32.mrf.mxu0
      %v4915 = vadd.f32 0.0, %v4914
      %v4916 = vpop.f32.mrf.mxu0
      %4917 = vmatprep.mubr.f32.mxu0 0.0
      %4918 = vmatmul.mubr.f32.gmra.mxu0 %v4745
      %v4919 = vpop.f32.mrf.mxu0
      %v4920 = vadd.f32 0.0, %v4919
      %v4921 = vpop.f32.mrf.mxu0
      %4922 = vdwg.mxu0
      %v4939 = vrot.slane %v4845, 2
      %v4940 = vrot.slane %v4850, 2
      %v4941 = vsel %vm1631, %v4939, %v4940
      %v4942 = vrot.slane %v4855, 2
      %v4943 = vsel %vm1631, %v4940, %v4942
      %v4944 = vrot.slane %v4860, 2
      %v4945 = vsel %vm1631, %v4942, %v4944
      %v4946 = vrot.slane %v4865, 2
      %v4947 = vsel %vm1631, %v4944, %v4946
      %v4948 = vrot.slane %v4870, 2
      %v4949 = vsel %vm1631, %v4946, %v4948
      %v4950 = vrot.slane %v4875, 2
      %v4951 = vsel %vm1631, %v4948, %v4950
      %v4952 = vrot.slane %v4880, 2
      %v4953 = vsel %vm1631, %v4950, %v4952
      %v4954 = vrot.slane %v4885, 2
      %v4955 = vsel %vm1631, %v4952, %v4954
      %v4956 = vrot.slane %v4890, 2
      %v4957 = vsel %vm1631, %v4954, %v4956
      %v4958 = vrot.slane %v4895, 2
      %v4959 = vsel %vm1631, %v4956, %v4958
      %v4960 = vrot.slane %v4900, 2
      %v4961 = vsel %vm1631, %v4958, %v4960
      %v4962 = vrot.slane %v4905, 2
      %v4963 = vsel %vm1631, %v4960, %v4962
      %v4964 = vrot.slane %v4910, 2
      %v4965 = vsel %vm1631, %v4962, %v4964
      %v4966 = vrot.slane %v4915, 2
      %v4967 = vsel %vm1631, %v4964, %v4966
      %v4968 = vrot.slane %v4920, 2
      %v4969 = vsel %vm1631, %v4966, %v4968
      %v4987 = vsel %vm1631, %v4968, %v4939
      %4988 = vmatprep.subr.mxu0 0.0
      %4989 = vmatpush1.msra.mxu0 %v4761
      %4990 = vmatprep.subr.mxu0 0.0
      %4991 = vmatpush1.msra.mxu0 %v4760
      %4992 = vmatprep.subr.mxu0 0.0
      %4993 = vmatpush1.msra.mxu0 %v4759
      %4994 = vmatprep.subr.mxu0 0.0
      %4995 = vmatpush1.msra.mxu0 %v4758
      %4996 = vmatprep.subr.mxu0 0.0
      %4997 = vmatpush1.msra.mxu0 %v4757
      %4998 = vmatprep.subr.mxu0 0.0
      %4999 = vmatpush1.msra.mxu0 %v4756
      %5000 = vmatprep.subr.mxu0 0.0
      %5001 = vmatpush1.msra.mxu0 %v4755
      %5002 = vmatprep.subr.mxu0 0.0
      %5003 = vmatpush1.msra.mxu0 %v4754
      %5004 = vmatprep.subr.mxu0 0.0
      %5005 = vmatpush1.msra.mxu0 %v4753
      %5006 = vmatprep.subr.mxu0 0.0
      %5007 = vmatpush1.msra.mxu0 %v4752
      %5008 = vmatprep.subr.mxu0 0.0
      %5009 = vmatpush1.msra.mxu0 %v4751
      %5010 = vmatprep.subr.mxu0 0.0
      %5011 = vmatpush1.msra.mxu0 %v4750
      %5012 = vmatprep.subr.mxu0 0.0
      %5013 = vmatpush1.msra.mxu0 %v4749
      %5014 = vmatprep.subr.mxu0 0.0
      %5015 = vmatpush1.msra.mxu0 %v4748
      %5016 = vmatprep.subr.mxu0 0.0
      %5017 = vmatpush1.msra.mxu0 %v4747
      %5018 = vmatprep.subr.mxu0 0.0
      %5019 = vmatpush1.msra.mxu0 %v4746
      %5020 = vmatprep.subr.mxu0 0.0
      %5021 = vmatpush2.msra.mxu0 0.0
      %5022 = vmatprep.subr.mxu0 0.0
      %5023 = vmatpush2.msra.mxu0 0.0
      %5024 = vmatprep.subr.mxu0 0.0
      %5025 = vmatpush2.msra.mxu0 0.0
      %5026 = vmatprep.subr.mxu0 0.0
      %5027 = vmatpush2.msra.mxu0 0.0
      %5028 = vmatprep.subr.mxu0 0.0
      %5029 = vmatpush2.msra.mxu0 0.0
      %5030 = vmatprep.subr.mxu0 0.0
      %5031 = vmatpush2.msra.mxu0 0.0
      %5032 = vmatprep.subr.mxu0 0.0
      %5033 = vmatpush2.msra.mxu0 0.0
      %5034 = vmatprep.subr.mxu0 0.0
      %5035 = vmatpush2.msra.mxu0 0.0
      %5036 = vmatprep.subr.mxu0 0.0
      %5037 = vmatpush2.msra.mxu0 0.0
      %5038 = vmatprep.subr.mxu0 0.0
      %5039 = vmatpush2.msra.mxu0 0.0
      %5040 = vmatprep.subr.mxu0 0.0
      %5041 = vmatpush2.msra.mxu0 0.0
      %5042 = vmatprep.subr.mxu0 0.0
      %5043 = vmatpush2.msra.mxu0 0.0
      %5044 = vmatprep.subr.mxu0 0.0
      %5045 = vmatpush2.msra.mxu0 0.0
      %5046 = vmatprep.subr.mxu0 0.0
      %5047 = vmatpush2.msra.mxu0 0.0
      %5048 = vmatprep.subr.mxu0 0.0
      %5049 = vmatpush2.msra.mxu0 0.0
      %5050 = vmatprep.subr.mxu0 0.0
      %5051 = vmatpush2.msra.mxu0 0.0
      %5052 = vmatprep.mubr.f32.mxu0 0.0
      %5053 = vmatmul.mubr.f32.gmra.mxu0 %v4730
      %v5054 = vpop.f32.mrf.mxu0
      %v5055 = vadd.f32 %v4941, %v5054
      %v5056 = vpop.f32.mrf.mxu0
      %5057 = vmatprep.mubr.f32.mxu0 0.0
      %5058 = vmatmul.mubr.f32.gmra.mxu0 %v4731
      %v5059 = vpop.f32.mrf.mxu0
      %v5060 = vadd.f32 %v4943, %v5059
      %v5061 = vpop.f32.mrf.mxu0
      %5062 = vmatprep.mubr.f32.mxu0 0.0
      %5063 = vmatmul.mubr.f32.gmra.mxu0 %v4732
      %v5064 = vpop.f32.mrf.mxu0
      %v5065 = vadd.f32 %v4945, %v5064
      %v5066 = vpop.f32.mrf.mxu0
      %5067 = vmatprep.mubr.f32.mxu0 0.0
      %5068 = vmatmul.mubr.f32.gmra.mxu0 %v4733
      %v5069 = vpop.f32.mrf.mxu0
      %v5070 = vadd.f32 %v4947, %v5069
      %v5071 = vpop.f32.mrf.mxu0
      %5072 = vmatprep.mubr.f32.mxu0 0.0
      %5073 = vmatmul.mubr.f32.gmra.mxu0 %v4734
      %v5074 = vpop.f32.mrf.mxu0
      %v5075 = vadd.f32 %v4949, %v5074
      %v5076 = vpop.f32.mrf.mxu0
      %5077 = vmatprep.mubr.f32.mxu0 0.0
      %5078 = vmatmul.mubr.f32.gmra.mxu0 %v4735
      %v5079 = vpop.f32.mrf.mxu0
      %v5080 = vadd.f32 %v4951, %v5079
      %v5081 = vpop.f32.mrf.mxu0
      %5082 = vmatprep.mubr.f32.mxu0 0.0
      %5083 = vmatmul.mubr.f32.gmra.mxu0 %v4736
      %v5084 = vpop.f32.mrf.mxu0
      %v5085 = vadd.f32 %v4953, %v5084
      %v5086 = vpop.f32.mrf.mxu0
      %5087 = vmatprep.mubr.f32.mxu0 0.0
      %5088 = vmatmul.mubr.f32.gmra.mxu0 %v4737
      %v5089 = vpop.f32.mrf.mxu0
      %v5090 = vadd.f32 %v4955, %v5089
      %v5091 = vpop.f32.mrf.mxu0
      %5092 = vmatprep.mubr.f32.mxu0 0.0
      %5093 = vmatmul.mubr.f32.gmra.mxu0 %v4738
      %v5094 = vpop.f32.mrf.mxu0
      %v5095 = vadd.f32 %v4957, %v5094
      %v5096 = vpop.f32.mrf.mxu0
      %5097 = vmatprep.mubr.f32.mxu0 0.0
      %5098 = vmatmul.mubr.f32.gmra.mxu0 %v4739
      %v5099 = vpop.f32.mrf.mxu0
      %v5100 = vadd.f32 %v4959, %v5099
      %v5101 = vpop.f32.mrf.mxu0
      %5102 = vmatprep.mubr.f32.mxu0 0.0
      %5103 = vmatmul.mubr.f32.gmra.mxu0 %v4740
      %v5104 = vpop.f32.mrf.mxu0
      %v5105 = vadd.f32 %v4961, %v5104
      %v5106 = vpop.f32.mrf.mxu0
      %5107 = vmatprep.mubr.f32.mxu0 0.0
      %5108 = vmatmul.mubr.f32.gmra.mxu0 %v4741
      %v5109 = vpop.f32.mrf.mxu0
      %v5110 = vadd.f32 %v4963, %v5109
      %v5111 = vpop.f32.mrf.mxu0
      %5112 = vmatprep.mubr.f32.mxu0 0.0
      %5113 = vmatmul.mubr.f32.gmra.mxu0 %v4742
      %v5114 = vpop.f32.mrf.mxu0
      %v5115 = vadd.f32 %v4965, %v5114
      %v5116 = vpop.f32.mrf.mxu0
      %5117 = vmatprep.mubr.f32.mxu0 0.0
      %5118 = vmatmul.mubr.f32.gmra.mxu0 %v4743
      %v5119 = vpop.f32.mrf.mxu0
      %v5120 = vadd.f32 %v4967, %v5119
      %v5121 = vpop.f32.mrf.mxu0
      %5122 = vmatprep.mubr.f32.mxu0 0.0
      %5123 = vmatmul.mubr.f32.gmra.mxu0 %v4744
      %v5124 = vpop.f32.mrf.mxu0
      %v5125 = vadd.f32 %v4969, %v5124
      %v5126 = vpop.f32.mrf.mxu0
      %5127 = vmatprep.mubr.f32.mxu0 0.0
      %5128 = vmatmul.mubr.f32.gmra.mxu0 %v4745
      %v5129 = vpop.f32.mrf.mxu0
      %v5130 = vadd.f32 %v4987, %v5129
      %v5131 = vpop.f32.mrf.mxu0
      %5132 = vdwg.mxu0
      %v5133 = vld [vmem:[%s6 + $0x100] sm:$0xff]
      %v5134 = vld [vmem:[%s6 + $0x108] sm:$0xff]
      %v5135 = vld [vmem:[%s6 + $0x110] sm:$0xff]
      %v5136 = vld [vmem:[%s6 + $0x118] sm:$0xff]
      %v5137 = vld [vmem:[%s6 + $0x120] sm:$0xff]
      %v5138 = vld [vmem:[%s6 + $0x128] sm:$0xff]
      %v5139 = vld [vmem:[%s6 + $0x130] sm:$0xff]
      %v5140 = vld [vmem:[%s6 + $0x138] sm:$0xff]
      %v5141 = vld [vmem:[%s6 + $0x140] sm:$0xff]
      %v5142 = vld [vmem:[%s6 + $0x148] sm:$0xff]
      %v5143 = vld [vmem:[%s6 + $0x150] sm:$0xff]
      %v5144 = vld [vmem:[%s6 + $0x158] sm:$0xff]
      %v5145 = vld [vmem:[%s6 + $0x160] sm:$0xff]
      %v5146 = vld [vmem:[%s6 + $0x168] sm:$0xff]
      %v5147 = vld [vmem:[%s6 + $0x170] sm:$0xff]
      %v5148 = vld [vmem:[%s6 + $0x178] sm:$0xff]
      %5149 = vmatprep.subr.mxu0 0.0
      %5150 = vmatpush1.msra.mxu0 %v5148
      %5151 = vmatprep.subr.mxu0 0.0
      %5152 = vmatpush1.msra.mxu0 %v5147
      %5153 = vmatprep.subr.mxu0 0.0
      %5154 = vmatpush1.msra.mxu0 %v5146
      %5155 = vmatprep.subr.mxu0 0.0
      %5156 = vmatpush1.msra.mxu0 %v5145
      %5157 = vmatprep.subr.mxu0 0.0
      %5158 = vmatpush1.msra.mxu0 %v5144
      %5159 = vmatprep.subr.mxu0 0.0
      %5160 = vmatpush1.msra.mxu0 %v5143
      %5161 = vmatprep.subr.mxu0 0.0
      %5162 = vmatpush1.msra.mxu0 %v5142
      %5163 = vmatprep.subr.mxu0 0.0
      %5164 = vmatpush1.msra.mxu0 %v5141
      %5165 = vmatprep.subr.mxu0 0.0
      %5166 = vmatpush1.msra.mxu0 %v5140
      %5167 = vmatprep.subr.mxu0 0.0
      %5168 = vmatpush1.msra.mxu0 %v5139
      %5169 = vmatprep.subr.mxu0 0.0
      %5170 = vmatpush1.msra.mxu0 %v5138
      %5171 = vmatprep.subr.mxu0 0.0
      %5172 = vmatpush1.msra.mxu0 %v5137
      %5173 = vmatprep.subr.mxu0 0.0
      %5174 = vmatpush1.msra.mxu0 %v5136
      %5175 = vmatprep.subr.mxu0 0.0
      %5176 = vmatpush1.msra.mxu0 %v5135
      %5177 = vmatprep.subr.mxu0 0.0
      %5178 = vmatpush1.msra.mxu0 %v5134
      %5179 = vmatprep.subr.mxu0 0.0
      %5180 = vmatpush1.msra.mxu0 %v5133
      %5181 = vmatprep.subr.mxu0 0.0
      %5182 = vmatpush2.msra.mxu0 0.0
      %5183 = vmatprep.subr.mxu0 0.0
      %5184 = vmatpush2.msra.mxu0 0.0
      %5185 = vmatprep.subr.mxu0 0.0
      %5186 = vmatpush2.msra.mxu0 0.0
      %5187 = vmatprep.subr.mxu0 0.0
      %5188 = vmatpush2.msra.mxu0 0.0
      %5189 = vmatprep.subr.mxu0 0.0
      %5190 = vmatpush2.msra.mxu0 0.0
      %5191 = vmatprep.subr.mxu0 0.0
      %5192 = vmatpush2.msra.mxu0 0.0
      %5193 = vmatprep.subr.mxu0 0.0
      %5194 = vmatpush2.msra.mxu0 0.0
      %5195 = vmatprep.subr.mxu0 0.0
      %5196 = vmatpush2.msra.mxu0 0.0
      %5197 = vmatprep.subr.mxu0 0.0
      %5198 = vmatpush2.msra.mxu0 0.0
      %5199 = vmatprep.subr.mxu0 0.0
      %5200 = vmatpush2.msra.mxu0 0.0
      %5201 = vmatprep.subr.mxu0 0.0
      %5202 = vmatpush2.msra.mxu0 0.0
      %5203 = vmatprep.subr.mxu0 0.0
      %5204 = vmatpush2.msra.mxu0 0.0
      %5205 = vmatprep.subr.mxu0 0.0
      %5206 = vmatpush2.msra.mxu0 0.0
      %5207 = vmatprep.subr.mxu0 0.0
      %5208 = vmatpush2.msra.mxu0 0.0
      %5209 = vmatprep.subr.mxu0 0.0
      %5210 = vmatpush2.msra.mxu0 0.0
      %5211 = vmatprep.subr.mxu0 0.0
      %5212 = vmatpush2.msra.mxu0 0.0
      %5213 = vmatprep.mubr.f32.mxu0 0.0
      %5214 = vmatmul.mubr.f32.gmra.mxu0 %v4730
      %v5215 = vpop.f32.mrf.mxu0
      %v5216 = vadd.f32 0.0, %v5215
      %v5217 = vpop.f32.mrf.mxu0
      %5218 = vmatprep.mubr.f32.mxu0 0.0
      %5219 = vmatmul.mubr.f32.gmra.mxu0 %v4731
      %v5220 = vpop.f32.mrf.mxu0
      %v5221 = vadd.f32 0.0, %v5220
      %v5222 = vpop.f32.mrf.mxu0
      %5223 = vmatprep.mubr.f32.mxu0 0.0
      %5224 = vmatmul.mubr.f32.gmra.mxu0 %v4732
      %v5225 = vpop.f32.mrf.mxu0
      %v5226 = vadd.f32 0.0, %v5225
      %v5227 = vpop.f32.mrf.mxu0
      %5228 = vmatprep.mubr.f32.mxu0 0.0
      %5229 = vmatmul.mubr.f32.gmra.mxu0 %v4733
      %v5230 = vpop.f32.mrf.mxu0
      %v5231 = vadd.f32 0.0, %v5230
      %v5232 = vpop.f32.mrf.mxu0
      %5233 = vmatprep.mubr.f32.mxu0 0.0
      %5234 = vmatmul.mubr.f32.gmra.mxu0 %v4734
      %v5235 = vpop.f32.mrf.mxu0
      %v5236 = vadd.f32 0.0, %v5235
      %v5237 = vpop.f32.mrf.mxu0
      %5238 = vmatprep.mubr.f32.mxu0 0.0
      %5239 = vmatmul.mubr.f32.gmra.mxu0 %v4735
      %v5240 = vpop.f32.mrf.mxu0
      %v5241 = vadd.f32 0.0, %v5240
      %v5242 = vpop.f32.mrf.mxu0
      %5243 = vmatprep.mubr.f32.mxu0 0.0
      %5244 = vmatmul.mubr.f32.gmra.mxu0 %v4736
      %v5245 = vpop.f32.mrf.mxu0
      %v5246 = vadd.f32 0.0, %v5245
      %v5247 = vpop.f32.mrf.mxu0
      %5248 = vmatprep.mubr.f32.mxu0 0.0
      %5249 = vmatmul.mubr.f32.gmra.mxu0 %v4737
      %v5250 = vpop.f32.mrf.mxu0
      %v5251 = vadd.f32 0.0, %v5250
      %v5252 = vpop.f32.mrf.mxu0
      %5253 = vmatprep.mubr.f32.mxu0 0.0
      %5254 = vmatmul.mubr.f32.gmra.mxu0 %v4738
      %v5255 = vpop.f32.mrf.mxu0
      %v5256 = vadd.f32 0.0, %v5255
      %v5257 = vpop.f32.mrf.mxu0
      %5258 = vmatprep.mubr.f32.mxu0 0.0
      %5259 = vmatmul.mubr.f32.gmra.mxu0 %v4739
      %v5260 = vpop.f32.mrf.mxu0
      %v5261 = vadd.f32 0.0, %v5260
      %v5262 = vpop.f32.mrf.mxu0
      %5263 = vmatprep.mubr.f32.mxu0 0.0
      %5264 = vmatmul.mubr.f32.gmra.mxu0 %v4740
      %v5265 = vpop.f32.mrf.mxu0
      %v5266 = vadd.f32 0.0, %v5265
      %v5267 = vpop.f32.mrf.mxu0
      %5268 = vmatprep.mubr.f32.mxu0 0.0
      %5269 = vmatmul.mubr.f32.gmra.mxu0 %v4741
      %v5270 = vpop.f32.mrf.mxu0
      %v5271 = vadd.f32 0.0, %v5270
      %v5272 = vpop.f32.mrf.mxu0
      %5273 = vmatprep.mubr.f32.mxu0 0.0
      %5274 = vmatmul.mubr.f32.gmra.mxu0 %v4742
      %v5275 = vpop.f32.mrf.mxu0
      %v5276 = vadd.f32 0.0, %v5275
      %v5277 = vpop.f32.mrf.mxu0
      %5278 = vmatprep.mubr.f32.mxu0 0.0
      %5279 = vmatmul.mubr.f32.gmra.mxu0 %v4743
      %v5280 = vpop.f32.mrf.mxu0
      %v5281 = vadd.f32 0.0, %v5280
      %v5282 = vpop.f32.mrf.mxu0
      %5283 = vmatprep.mubr.f32.mxu0 0.0
      %5284 = vmatmul.mubr.f32.gmra.mxu0 %v4744
      %v5285 = vpop.f32.mrf.mxu0
      %v5286 = vadd.f32 0.0, %v5285
      %v5287 = vpop.f32.mrf.mxu0
      %5288 = vmatprep.mubr.f32.mxu0 0.0
      %5289 = vmatmul.mubr.f32.gmra.mxu0 %v4745
      %v5290 = vpop.f32.mrf.mxu0
      %v5291 = vadd.f32 0.0, %v5290
      %v5292 = vpop.f32.mrf.mxu0
      %5293 = vdwg.mxu0
      %v5310 = vrot.slane %v5216, 4
      %v5311 = vrot.slane %v5221, 4
      %v5312 = vsel %vm4398, %v5310, %v5311
      %v5313 = vrot.slane %v5226, 4
      %v5314 = vsel %vm4398, %v5311, %v5313
      %v5315 = vrot.slane %v5231, 4
      %v5316 = vsel %vm4398, %v5313, %v5315
      %v5317 = vrot.slane %v5236, 4
      %v5318 = vsel %vm4398, %v5315, %v5317
      %v5319 = vrot.slane %v5241, 4
      %v5320 = vsel %vm4398, %v5317, %v5319
      %v5321 = vrot.slane %v5246, 4
      %v5322 = vsel %vm4398, %v5319, %v5321
      %v5323 = vrot.slane %v5251, 4
      %v5324 = vsel %vm4398, %v5321, %v5323
      %v5325 = vrot.slane %v5256, 4
      %v5326 = vsel %vm4398, %v5323, %v5325
      %v5327 = vrot.slane %v5261, 4
      %v5328 = vsel %vm4398, %v5325, %v5327
      %v5329 = vrot.slane %v5266, 4
      %v5330 = vsel %vm4398, %v5327, %v5329
      %v5331 = vrot.slane %v5271, 4
      %v5332 = vsel %vm4398, %v5329, %v5331
      %v5333 = vrot.slane %v5276, 4
      %v5334 = vsel %vm4398, %v5331, %v5333
      %v5335 = vrot.slane %v5281, 4
      %v5336 = vsel %vm4398, %v5333, %v5335
      %v5337 = vrot.slane %v5286, 4
      %v5338 = vsel %vm4398, %v5335, %v5337
      %v5339 = vrot.slane %v5291, 4
      %v5340 = vsel %vm4398, %v5337, %v5339
      %v5358 = vsel %vm4398, %v5339, %v5310
      %v5359 = vadd.f32 %v5055, %v5312
      %v5360 = vadd.f32 %v5060, %v5314
      %v5361 = vadd.f32 %v5065, %v5316
      %v5362 = vadd.f32 %v5070, %v5318
      %v5363 = vadd.f32 %v5075, %v5320
      %v5364 = vadd.f32 %v5080, %v5322
      %v5365 = vadd.f32 %v5085, %v5324
      %v5366 = vadd.f32 %v5090, %v5326
      %v5367 = vadd.f32 %v5095, %v5328
      %v5368 = vadd.f32 %v5100, %v5330
      %v5369 = vadd.f32 %v5105, %v5332
      %v5370 = vadd.f32 %v5110, %v5334
      %v5371 = vadd.f32 %v5115, %v5336
      %v5372 = vadd.f32 %v5120, %v5338
      %v5373 = vadd.f32 %v5125, %v5340
      %v5374 = vadd.f32 %v5130, %v5358
      %v5375 = vld [vmem:[%s6 + $0x180] sm:$0xff]
      %v5376 = vld [vmem:[%s6 + $0x188] sm:$0xff]
      %v5377 = vld [vmem:[%s6 + $0x190] sm:$0xff]
      %v5378 = vld [vmem:[%s6 + $0x198] sm:$0xff]
      %v5379 = vld [vmem:[%s6 + $0x1a0] sm:$0xff]
      %v5380 = vld [vmem:[%s6 + $0x1a8] sm:$0xff]
      %v5381 = vld [vmem:[%s6 + $0x1b0] sm:$0xff]
      %v5382 = vld [vmem:[%s6 + $0x1b8] sm:$0xff]
      %v5383 = vld [vmem:[%s6 + $0x1c0] sm:$0xff]
      %v5384 = vld [vmem:[%s6 + $0x1c8] sm:$0xff]
      %v5385 = vld [vmem:[%s6 + $0x1d0] sm:$0xff]
      %v5386 = vld [vmem:[%s6 + $0x1d8] sm:$0xff]
      %v5387 = vld [vmem:[%s6 + $0x1e0] sm:$0xff]
      %v5388 = vld [vmem:[%s6 + $0x1e8] sm:$0xff]
      %v5389 = vld [vmem:[%s6 + $0x1f0] sm:$0xff]
      %v5390 = vld [vmem:[%s6 + $0x1f8] sm:$0xff]
      %5391 = vmatprep.subr.mxu0 0.0
      %5392 = vmatpush1.msra.mxu0 %v5390
      %5393 = vmatprep.subr.mxu0 0.0
      %5394 = vmatpush1.msra.mxu0 %v5389
      %5395 = vmatprep.subr.mxu0 0.0
      %5396 = vmatpush1.msra.mxu0 %v5388
      %5397 = vmatprep.subr.mxu0 0.0
      %5398 = vmatpush1.msra.mxu0 %v5387
      %5399 = vmatprep.subr.mxu0 0.0
      %5400 = vmatpush1.msra.mxu0 %v5386
      %5401 = vmatprep.subr.mxu0 0.0
      %5402 = vmatpush1.msra.mxu0 %v5385
      %5403 = vmatprep.subr.mxu0 0.0
      %5404 = vmatpush1.msra.mxu0 %v5384
      %5405 = vmatprep.subr.mxu0 0.0
      %5406 = vmatpush1.msra.mxu0 %v5383
      %5407 = vmatprep.subr.mxu0 0.0
      %5408 = vmatpush1.msra.mxu0 %v5382
      %5409 = vmatprep.subr.mxu0 0.0
      %5410 = vmatpush1.msra.mxu0 %v5381
      %5411 = vmatprep.subr.mxu0 0.0
      %5412 = vmatpush1.msra.mxu0 %v5380
      %5413 = vmatprep.subr.mxu0 0.0
      %5414 = vmatpush1.msra.mxu0 %v5379
      %5415 = vmatprep.subr.mxu0 0.0
      %5416 = vmatpush1.msra.mxu0 %v5378
      %5417 = vmatprep.subr.mxu0 0.0
      %5418 = vmatpush1.msra.mxu0 %v5377
      %5419 = vmatprep.subr.mxu0 0.0
      %5420 = vmatpush1.msra.mxu0 %v5376
      %5421 = vmatprep.subr.mxu0 0.0
      %5422 = vmatpush1.msra.mxu0 %v5375
      %5423 = vmatprep.subr.mxu0 0.0
      %5424 = vmatpush2.msra.mxu0 0.0
      %5425 = vmatprep.subr.mxu0 0.0
      %5426 = vmatpush2.msra.mxu0 0.0
      %5427 = vmatprep.subr.mxu0 0.0
      %5428 = vmatpush2.msra.mxu0 0.0
      %5429 = vmatprep.subr.mxu0 0.0
      %5430 = vmatpush2.msra.mxu0 0.0
      %5431 = vmatprep.subr.mxu0 0.0
      %5432 = vmatpush2.msra.mxu0 0.0
      %5433 = vmatprep.subr.mxu0 0.0
      %5434 = vmatpush2.msra.mxu0 0.0
      %5435 = vmatprep.subr.mxu0 0.0
      %5436 = vmatpush2.msra.mxu0 0.0
      %5437 = vmatprep.subr.mxu0 0.0
      %5438 = vmatpush2.msra.mxu0 0.0
      %5439 = vmatprep.subr.mxu0 0.0
      %5440 = vmatpush2.msra.mxu0 0.0
      %5441 = vmatprep.subr.mxu0 0.0
      %5442 = vmatpush2.msra.mxu0 0.0
      %5443 = vmatprep.subr.mxu0 0.0
      %5444 = vmatpush2.msra.mxu0 0.0
      %5445 = vmatprep.subr.mxu0 0.0
      %5446 = vmatpush2.msra.mxu0 0.0
      %5447 = vmatprep.subr.mxu0 0.0
      %5448 = vmatpush2.msra.mxu0 0.0
      %5449 = vmatprep.subr.mxu0 0.0
      %5450 = vmatpush2.msra.mxu0 0.0
      %5451 = vmatprep.subr.mxu0 0.0
      %5452 = vmatpush2.msra.mxu0 0.0
      %5453 = vmatprep.subr.mxu0 0.0
      %5454 = vmatpush2.msra.mxu0 0.0
      %5455 = vmatprep.mubr.f32.mxu0 0.0
      %5456 = vmatmul.mubr.f32.gmra.mxu0 %v4730
      %v5457 = vpop.f32.mrf.mxu0
      %v5458 = vadd.f32 0.0, %v5457
      %v5459 = vpop.f32.mrf.mxu0
      %5460 = vmatprep.mubr.f32.mxu0 0.0
      %5461 = vmatmul.mubr.f32.gmra.mxu0 %v4731
      %v5462 = vpop.f32.mrf.mxu0
      %v5463 = vadd.f32 0.0, %v5462
      %v5464 = vpop.f32.mrf.mxu0
      %5465 = vmatprep.mubr.f32.mxu0 0.0
      %5466 = vmatmul.mubr.f32.gmra.mxu0 %v4732
      %v5467 = vpop.f32.mrf.mxu0
      %v5468 = vadd.f32 0.0, %v5467
      %v5469 = vpop.f32.mrf.mxu0
      %5470 = vmatprep.mubr.f32.mxu0 0.0
      %5471 = vmatmul.mubr.f32.gmra.mxu0 %v4733
      %v5472 = vpop.f32.mrf.mxu0
      %v5473 = vadd.f32 0.0, %v5472
      %v5474 = vpop.f32.mrf.mxu0
      %5475 = vmatprep.mubr.f32.mxu0 0.0
      %5476 = vmatmul.mubr.f32.gmra.mxu0 %v4734
      %v5477 = vpop.f32.mrf.mxu0
      %v5478 = vadd.f32 0.0, %v5477
      %v5479 = vpop.f32.mrf.mxu0
      %5480 = vmatprep.mubr.f32.mxu0 0.0
      %5481 = vmatmul.mubr.f32.gmra.mxu0 %v4735
      %v5482 = vpop.f32.mrf.mxu0
      %v5483 = vadd.f32 0.0, %v5482
      %v5484 = vpop.f32.mrf.mxu0
      %5485 = vmatprep.mubr.f32.mxu0 0.0
      %5486 = vmatmul.mubr.f32.gmra.mxu0 %v4736
      %v5487 = vpop.f32.mrf.mxu0
      %v5488 = vadd.f32 0.0, %v5487
      %v5489 = vpop.f32.mrf.mxu0
      %5490 = vmatprep.mubr.f32.mxu0 0.0
      %5491 = vmatmul.mubr.f32.gmra.mxu0 %v4737
      %v5492 = vpop.f32.mrf.mxu0
      %v5493 = vadd.f32 0.0, %v5492
      %v5494 = vpop.f32.mrf.mxu0
      %5495 = vmatprep.mubr.f32.mxu0 0.0
      %5496 = vmatmul.mubr.f32.gmra.mxu0 %v4738
      %v5497 = vpop.f32.mrf.mxu0
      %v5498 = vadd.f32 0.0, %v5497
      %v5499 = vpop.f32.mrf.mxu0
      %5500 = vmatprep.mubr.f32.mxu0 0.0
      %5501 = vmatmul.mubr.f32.gmra.mxu0 %v4739
      %v5502 = vpop.f32.mrf.mxu0
      %v5503 = vadd.f32 0.0, %v5502
      %v5504 = vpop.f32.mrf.mxu0
      %5505 = vmatprep.mubr.f32.mxu0 0.0
      %5506 = vmatmul.mubr.f32.gmra.mxu0 %v4740
      %v5507 = vpop.f32.mrf.mxu0
      %v5508 = vadd.f32 0.0, %v5507
      %v5509 = vpop.f32.mrf.mxu0
      %5510 = vmatprep.mubr.f32.mxu0 0.0
      %5511 = vmatmul.mubr.f32.gmra.mxu0 %v4741
      %v5512 = vpop.f32.mrf.mxu0
      %v5513 = vadd.f32 0.0, %v5512
      %v5514 = vpop.f32.mrf.mxu0
      %5515 = vmatprep.mubr.f32.mxu0 0.0
      %5516 = vmatmul.mubr.f32.gmra.mxu0 %v4742
      %v5517 = vpop.f32.mrf.mxu0
      %v5518 = vadd.f32 0.0, %v5517
      %v5519 = vpop.f32.mrf.mxu0
      %5520 = vmatprep.mubr.f32.mxu0 0.0
      %5521 = vmatmul.mubr.f32.gmra.mxu0 %v4743
      %v5522 = vpop.f32.mrf.mxu0
      %v5523 = vadd.f32 0.0, %v5522
      %v5524 = vpop.f32.mrf.mxu0
      %5525 = vmatprep.mubr.f32.mxu0 0.0
      %5526 = vmatmul.mubr.f32.gmra.mxu0 %v4744
      %v5527 = vpop.f32.mrf.mxu0
      %v5528 = vadd.f32 0.0, %v5527
      %v5529 = vpop.f32.mrf.mxu0
      %5530 = vmatprep.mubr.f32.mxu0 0.0
      %5531 = vmatmul.mubr.f32.gmra.mxu0 %v4745
      %v5532 = vpop.f32.mrf.mxu0
      %v5533 = vadd.f32 0.0, %v5532
      %v5534 = vpop.f32.mrf.mxu0
      %5535 = vdwg.mxu0
      %vm5552 = vcmask 1041408
      %v5553 = vrot.slane %v5458, 6
      %v5554 = vrot.slane %v5463, 6
      %v5555 = vsel %vm5552, %v5553, %v5554
      %v5556 = vrot.slane %v5468, 6
      %v5557 = vsel %vm5552, %v5554, %v5556
      %v5558 = vrot.slane %v5473, 6
      %v5559 = vsel %vm5552, %v5556, %v5558
      %v5560 = vrot.slane %v5478, 6
      %v5561 = vsel %vm5552, %v5558, %v5560
      %v5562 = vrot.slane %v5483, 6
      %v5563 = vsel %vm5552, %v5560, %v5562
      %v5564 = vrot.slane %v5488, 6
      %v5565 = vsel %vm5552, %v5562, %v5564
      %v5566 = vrot.slane %v5493, 6
      %v5567 = vsel %vm5552, %v5564, %v5566
      %v5568 = vrot.slane %v5498, 6
      %v5569 = vsel %vm5552, %v5566, %v5568
      %v5570 = vrot.slane %v5503, 6
      %v5571 = vsel %vm5552, %v5568, %v5570
      %v5572 = vrot.slane %v5508, 6
      %v5573 = vsel %vm5552, %v5570, %v5572
      %v5574 = vrot.slane %v5513, 6
      %v5575 = vsel %vm5552, %v5572, %v5574
      %v5576 = vrot.slane %v5518, 6
      %v5577 = vsel %vm5552, %v5574, %v5576
      %v5578 = vrot.slane %v5523, 6
      %v5579 = vsel %vm5552, %v5576, %v5578
      %v5580 = vrot.slane %v5528, 6
      %v5581 = vsel %vm5552, %v5578, %v5580
      %v5582 = vrot.slane %v5533, 6
      %v5583 = vsel %vm5552, %v5580, %v5582
      %v5601 = vsel %vm5552, %v5582, %v5553
      %v5602 = vadd.f32 %v5359, %v5555
      %v5603 = vadd.f32 %v5360, %v5557
      %v5604 = vadd.f32 %v5361, %v5559
      %v5605 = vadd.f32 %v5362, %v5561
      %v5606 = vadd.f32 %v5363, %v5563
      %v5607 = vadd.f32 %v5364, %v5565
      %v5608 = vadd.f32 %v5365, %v5567
      %v5609 = vadd.f32 %v5366, %v5569
      %v5610 = vadd.f32 %v5367, %v5571
      %v5611 = vadd.f32 %v5368, %v5573
      %v5612 = vadd.f32 %v5369, %v5575
      %v5613 = vadd.f32 %v5370, %v5577
      %v5614 = vadd.f32 %v5371, %v5579
      %v5615 = vadd.f32 %v5372, %v5581
      %v5616 = vadd.f32 %v5373, %v5583
      %v5617 = vadd.f32 %v5374, %v5601
      %v5618 = vld [vmem:[%s6 + $0x200] sm:$0xff]
      %v5619 = vld [vmem:[%s6 + $0x208] sm:$0xff]
      %v5620 = vld [vmem:[%s6 + $0x210] sm:$0xff]
      %v5621 = vld [vmem:[%s6 + $0x218] sm:$0xff]
      %v5622 = vld [vmem:[%s6 + $0x220] sm:$0xff]
      %v5623 = vld [vmem:[%s6 + $0x228] sm:$0xff]
      %v5624 = vld [vmem:[%s6 + $0x230] sm:$0xff]
      %v5625 = vld [vmem:[%s6 + $0x238] sm:$0xff]
      %v5626 = vld [vmem:[%s6 + $0x240] sm:$0xff]
      %v5627 = vld [vmem:[%s6 + $0x248] sm:$0xff]
      %v5628 = vld [vmem:[%s6 + $0x250] sm:$0xff]
      %v5629 = vld [vmem:[%s6 + $0x258] sm:$0xff]
      %v5630 = vld [vmem:[%s6 + $0x260] sm:$0xff]
      %v5631 = vld [vmem:[%s6 + $0x268] sm:$0xff]
      %v5632 = vld [vmem:[%s6 + $0x270] sm:$0xff]
      %v5633 = vld [vmem:[%s6 + $0x278] sm:$0xff]
      %5634 = vmatprep.subr.mxu0 0.0
      %5635 = vmatpush1.msra.mxu0 %v5633
      %5636 = vmatprep.subr.mxu0 0.0
      %5637 = vmatpush1.msra.mxu0 %v5632
      %5638 = vmatprep.subr.mxu0 0.0
      %5639 = vmatpush1.msra.mxu0 %v5631
      %5640 = vmatprep.subr.mxu0 0.0
      %5641 = vmatpush1.msra.mxu0 %v5630
      %5642 = vmatprep.subr.mxu0 0.0
      %5643 = vmatpush1.msra.mxu0 %v5629
      %5644 = vmatprep.subr.mxu0 0.0
      %5645 = vmatpush1.msra.mxu0 %v5628
      %5646 = vmatprep.subr.mxu0 0.0
      %5647 = vmatpush1.msra.mxu0 %v5627
      %5648 = vmatprep.subr.mxu0 0.0
      %5649 = vmatpush1.msra.mxu0 %v5626
      %5650 = vmatprep.subr.mxu0 0.0
      %5651 = vmatpush1.msra.mxu0 %v5625
      %5652 = vmatprep.subr.mxu0 0.0
      %5653 = vmatpush1.msra.mxu0 %v5624
      %5654 = vmatprep.subr.mxu0 0.0
      %5655 = vmatpush1.msra.mxu0 %v5623
      %5656 = vmatprep.subr.mxu0 0.0
      %5657 = vmatpush1.msra.mxu0 %v5622
      %5658 = vmatprep.subr.mxu0 0.0
      %5659 = vmatpush1.msra.mxu0 %v5621
      %5660 = vmatprep.subr.mxu0 0.0
      %5661 = vmatpush1.msra.mxu0 %v5620
      %5662 = vmatprep.subr.mxu0 0.0
      %5663 = vmatpush1.msra.mxu0 %v5619
      %5664 = vmatprep.subr.mxu0 0.0
      %5665 = vmatpush1.msra.mxu0 %v5618
      %5666 = vmatprep.subr.mxu0 0.0
      %5667 = vmatpush2.msra.mxu0 0.0
      %5668 = vmatprep.subr.mxu0 0.0
      %5669 = vmatpush2.msra.mxu0 0.0
      %5670 = vmatprep.subr.mxu0 0.0
      %5671 = vmatpush2.msra.mxu0 0.0
      %5672 = vmatprep.subr.mxu0 0.0
      %5673 = vmatpush2.msra.mxu0 0.0
      %5674 = vmatprep.subr.mxu0 0.0
      %5675 = vmatpush2.msra.mxu0 0.0
      %5676 = vmatprep.subr.mxu0 0.0
      %5677 = vmatpush2.msra.mxu0 0.0
      %5678 = vmatprep.subr.mxu0 0.0
      %5679 = vmatpush2.msra.mxu0 0.0
      %5680 = vmatprep.subr.mxu0 0.0
      %5681 = vmatpush2.msra.mxu0 0.0
      %5682 = vmatprep.subr.mxu0 0.0
      %5683 = vmatpush2.msra.mxu0 0.0
      %5684 = vmatprep.subr.mxu0 0.0
      %5685 = vmatpush2.msra.mxu0 0.0
      %5686 = vmatprep.subr.mxu0 0.0
      %5687 = vmatpush2.msra.mxu0 0.0
      %5688 = vmatprep.subr.mxu0 0.0
      %5689 = vmatpush2.msra.mxu0 0.0
      %5690 = vmatprep.subr.mxu0 0.0
      %5691 = vmatpush2.msra.mxu0 0.0
      %5692 = vmatprep.subr.mxu0 0.0
      %5693 = vmatpush2.msra.mxu0 0.0
      %5694 = vmatprep.subr.mxu0 0.0
      %5695 = vmatpush2.msra.mxu0 0.0
      %5696 = vmatprep.subr.mxu0 0.0
      %5697 = vmatpush2.msra.mxu0 0.0
      %5698 = vmatprep.mubr.f32.mxu0 0.0
      %5699 = vmatmul.mubr.f32.gmra.mxu0 %v4730
      %v5700 = vpop.f32.mrf.mxu0
      %v5701 = vadd.f32 0.0, %v5700
      %v5702 = vpop.f32.mrf.mxu0
      %5703 = vmatprep.mubr.f32.mxu0 0.0
      %5704 = vmatmul.mubr.f32.gmra.mxu0 %v4731
      %v5705 = vpop.f32.mrf.mxu0
      %v5706 = vadd.f32 0.0, %v5705
      %v5707 = vpop.f32.mrf.mxu0
      %5708 = vmatprep.mubr.f32.mxu0 0.0
      %5709 = vmatmul.mubr.f32.gmra.mxu0 %v4732
      %v5710 = vpop.f32.mrf.mxu0
      %v5711 = vadd.f32 0.0, %v5710
      %v5712 = vpop.f32.mrf.mxu0
      %5713 = vmatprep.mubr.f32.mxu0 0.0
      %5714 = vmatmul.mubr.f32.gmra.mxu0 %v4733
      %v5715 = vpop.f32.mrf.mxu0
      %v5716 = vadd.f32 0.0, %v5715
      %v5717 = vpop.f32.mrf.mxu0
      %5718 = vmatprep.mubr.f32.mxu0 0.0
      %5719 = vmatmul.mubr.f32.gmra.mxu0 %v4734
      %v5720 = vpop.f32.mrf.mxu0
      %v5721 = vadd.f32 0.0, %v5720
      %v5722 = vpop.f32.mrf.mxu0
      %5723 = vmatprep.mubr.f32.mxu0 0.0
      %5724 = vmatmul.mubr.f32.gmra.mxu0 %v4735
      %v5725 = vpop.f32.mrf.mxu0
      %v5726 = vadd.f32 0.0, %v5725
      %v5727 = vpop.f32.mrf.mxu0
      %5728 = vmatprep.mubr.f32.mxu0 0.0
      %5729 = vmatmul.mubr.f32.gmra.mxu0 %v4736
      %v5730 = vpop.f32.mrf.mxu0
      %v5731 = vadd.f32 0.0, %v5730
      %v5732 = vpop.f32.mrf.mxu0
      %5733 = vmatprep.mubr.f32.mxu0 0.0
      %5734 = vmatmul.mubr.f32.gmra.mxu0 %v4737
      %v5735 = vpop.f32.mrf.mxu0
      %v5736 = vadd.f32 0.0, %v5735
      %v5737 = vpop.f32.mrf.mxu0
      %5738 = vmatprep.mubr.f32.mxu0 0.0
      %5739 = vmatmul.mubr.f32.gmra.mxu0 %v4738
      %v5740 = vpop.f32.mrf.mxu0
      %v5741 = vadd.f32 0.0, %v5740
      %v5742 = vpop.f32.mrf.mxu0
      %5743 = vmatprep.mubr.f32.mxu0 0.0
      %5744 = vmatmul.mubr.f32.gmra.mxu0 %v4739
      %v5745 = vpop.f32.mrf.mxu0
      %v5746 = vadd.f32 0.0, %v5745
      %v5747 = vpop.f32.mrf.mxu0
      %5748 = vmatprep.mubr.f32.mxu0 0.0
      %5749 = vmatmul.mubr.f32.gmra.mxu0 %v4740
      %v5750 = vpop.f32.mrf.mxu0
      %v5751 = vadd.f32 0.0, %v5750
      %v5752 = vpop.f32.mrf.mxu0
      %5753 = vmatprep.mubr.f32.mxu0 0.0
      %5754 = vmatmul.mubr.f32.gmra.mxu0 %v4741
      %v5755 = vpop.f32.mrf.mxu0
      %v5756 = vadd.f32 0.0, %v5755
      %v5757 = vpop.f32.mrf.mxu0
      %5758 = vmatprep.mubr.f32.mxu0 0.0
      %5759 = vmatmul.mubr.f32.gmra.mxu0 %v4742
      %v5760 = vpop.f32.mrf.mxu0
      %v5761 = vadd.f32 0.0, %v5760
      %v5762 = vpop.f32.mrf.mxu0
      %5763 = vmatprep.mubr.f32.mxu0 0.0
      %5764 = vmatmul.mubr.f32.gmra.mxu0 %v4743
      %v5765 = vpop.f32.mrf.mxu0
      %v5766 = vadd.f32 0.0, %v5765
      %v5767 = vpop.f32.mrf.mxu0
      %5768 = vmatprep.mubr.f32.mxu0 0.0
      %5769 = vmatmul.mubr.f32.gmra.mxu0 %v4744
      %v5770 = vpop.f32.mrf.mxu0
      %v5771 = vadd.f32 0.0, %v5770
      %v5772 = vpop.f32.mrf.mxu0
      %5773 = vmatprep.mubr.f32.mxu0 0.0
      %5774 = vmatmul.mubr.f32.gmra.mxu0 %v4745
      %v5775 = vpop.f32.mrf.mxu0
      %v5776 = vadd.f32 0.0, %v5775
      %v5777 = vpop.f32.mrf.mxu0
      %5778 = vdwg.mxu0
      %v5779 = vadd.f32 %v5602, %v5706
      %v5780 = vadd.f32 %v5603, %v5711
      %v5781 = vadd.f32 %v5604, %v5716
      %v5782 = vadd.f32 %v5605, %v5721
      %v5783 = vadd.f32 %v5606, %v5726
      %v5784 = vadd.f32 %v5607, %v5731
      %v5785 = vadd.f32 %v5608, %v5736
      %v5786 = vadd.f32 %v5609, %v5741
      %v5787 = vadd.f32 %v5610, %v5746
      %v5788 = vadd.f32 %v5611, %v5751
      %v5789 = vadd.f32 %v5612, %v5756
      %v5790 = vadd.f32 %v5613, %v5761
      %v5791 = vadd.f32 %v5614, %v5766
      %v5792 = vadd.f32 %v5615, %v5771
      %v5793 = vadd.f32 %v5616, %v5776
      %v5794 = vadd.f32 %v5617, %v5701
      %v5795 = vld [vmem:[%s7] sm:$0x1]
      %v5797 = vlaneseq
      %v5798 = vshrl.u32 %v5797, 7
      %v5799 = vsub.s32 0, %v5798
      %v5800 = vrot.slane %v5795, %v5799
      %v5802 = vadd.f32 %v5779, %v5800
      %v5803 = vadd.f32 %v5780, %v5800
      %v5804 = vadd.f32 %v5781, %v5800
      %v5805 = vadd.f32 %v5782, %v5800
      %v5806 = vadd.f32 %v5783, %v5800
      %v5807 = vadd.f32 %v5784, %v5800
      %v5808 = vadd.f32 %v5785, %v5800
      %v5809 = vadd.f32 %v5786, %v5800
      %v5810 = vadd.f32 %v5787, %v5800
      %v5811 = vadd.f32 %v5788, %v5800
      %v5812 = vadd.f32 %v5789, %v5800
      %v5813 = vadd.f32 %v5790, %v5800
      %v5814 = vadd.f32 %v5791, %v5800
      %v5815 = vadd.f32 %v5792, %v5800
      %v5816 = vadd.f32 %v5793, %v5800
      %v5817 = vadd.f32 %v5794, %v5800
      %v5818 = vmax.f32 %v5802, 0.0
      %v5819 = vmax.f32 %v5803, 0.0
      %v5820 = vmax.f32 %v5804, 0.0
      %v5821 = vmax.f32 %v5805, 0.0
      %v5822 = vmax.f32 %v5806, 0.0
      %v5823 = vmax.f32 %v5807, 0.0
      %v5824 = vmax.f32 %v5808, 0.0
      %v5825 = vmax.f32 %v5809, 0.0
      %v5826 = vmax.f32 %v5810, 0.0
      %v5827 = vmax.f32 %v5811, 0.0
      %v5828 = vmax.f32 %v5812, 0.0
      %v5829 = vmax.f32 %v5813, 0.0
      %v5830 = vmax.f32 %v5814, 0.0
      %v5831 = vmax.f32 %v5815, 0.0
      %v5832 = vmax.f32 %v5816, 0.0
      %v5833 = vmax.f32 %v5817, 0.0
      %v5834 = vld [vmem:[%s8] sm:$0xff]
      %v5835 = vld [vmem:[%s8 + $0x8] sm:$0xff]
      %v5836 = vld [vmem:[%s8 + $0x10] sm:$0xff]
      %v5837 = vld [vmem:[%s8 + $0x18] sm:$0xff]
      %v5838 = vld [vmem:[%s8 + $0x20] sm:$0xff]
      %v5839 = vld [vmem:[%s8 + $0x28] sm:$0xff]
      %v5840 = vld [vmem:[%s8 + $0x30] sm:$0xff]
      %v5841 = vld [vmem:[%s8 + $0x38] sm:$0xff]
      %v5842 = vld [vmem:[%s8 + $0x40] sm:$0xff]
      %v5843 = vld [vmem:[%s8 + $0x48] sm:$0xff]
      %v5844 = vld [vmem:[%s8 + $0x50] sm:$0xff]
      %v5845 = vld [vmem:[%s8 + $0x58] sm:$0xff]
      %v5846 = vld [vmem:[%s8 + $0x60] sm:$0xff]
      %v5847 = vld [vmem:[%s8 + $0x68] sm:$0xff]
      %v5848 = vld [vmem:[%s8 + $0x70] sm:$0xff]
      %v5849 = vld [vmem:[%s8 + $0x78] sm:$0xff]
      %v5850 = vld [vmem:[%s9] sm:$0x1]
      %v5852 = vlaneseq
      %v5853 = vshrl.u32 %v5852, 7
      %v5854 = vsub.s32 0, %v5853
      %v5855 = vrot.slane %v5850, %v5854
      %5857 = vmatprep.subr.mxu0 0.0
      %5858 = vmatpush1.msra.mxu0 %v5849
      %5859 = vmatprep.subr.mxu0 0.0
      %5860 = vmatpush1.msra.mxu0 %v5848
      %5861 = vmatprep.subr.mxu0 0.0
      %5862 = vmatpush1.msra.mxu0 %v5847
      %5863 = vmatprep.subr.mxu0 0.0
      %5864 = vmatpush1.msra.mxu0 %v5846
      %5865 = vmatprep.subr.mxu0 0.0
      %5866 = vmatpush1.msra.mxu0 %v5845
      %5867 = vmatprep.subr.mxu0 0.0
      %5868 = vmatpush1.msra.mxu0 %v5844
      %5869 = vmatprep.subr.mxu0 0.0
      %5870 = vmatpush1.msra.mxu0 %v5843
      %5871 = vmatprep.subr.mxu0 0.0
      %5872 = vmatpush1.msra.mxu0 %v5842
      %5873 = vmatprep.subr.mxu0 0.0
      %5874 = vmatpush1.msra.mxu0 %v5841
      %5875 = vmatprep.subr.mxu0 0.0
      %5876 = vmatpush1.msra.mxu0 %v5840
      %5877 = vmatprep.subr.mxu0 0.0
      %5878 = vmatpush1.msra.mxu0 %v5839
      %5879 = vmatprep.subr.mxu0 0.0
      %5880 = vmatpush1.msra.mxu0 %v5838
      %5881 = vmatprep.subr.mxu0 0.0
      %5882 = vmatpush1.msra.mxu0 %v5837
      %5883 = vmatprep.subr.mxu0 0.0
      %5884 = vmatpush1.msra.mxu0 %v5836
      %5885 = vmatprep.subr.mxu0 0.0
      %5886 = vmatpush1.msra.mxu0 %v5835
      %5887 = vmatprep.subr.mxu0 0.0
      %5888 = vmatpush1.msra.mxu0 %v5834
      %5889 = vmatprep.subr.mxu0 0.0
      %5890 = vmatpush2.msra.mxu0 0.0
      %5891 = vmatprep.subr.mxu0 0.0
      %5892 = vmatpush2.msra.mxu0 0.0
      %5893 = vmatprep.subr.mxu0 0.0
      %5894 = vmatpush2.msra.mxu0 0.0
      %5895 = vmatprep.subr.mxu0 0.0
      %5896 = vmatpush2.msra.mxu0 0.0
      %5897 = vmatprep.subr.mxu0 0.0
      %5898 = vmatpush2.msra.mxu0 0.0
      %5899 = vmatprep.subr.mxu0 0.0
      %5900 = vmatpush2.msra.mxu0 0.0
      %5901 = vmatprep.subr.mxu0 0.0
      %5902 = vmatpush2.msra.mxu0 0.0
      %5903 = vmatprep.subr.mxu0 0.0
      %5904 = vmatpush2.msra.mxu0 0.0
      %5905 = vmatprep.subr.mxu0 0.0
      %5906 = vmatpush2.msra.mxu0 0.0
      %5907 = vmatprep.subr.mxu0 0.0
      %5908 = vmatpush2.msra.mxu0 0.0
      %5909 = vmatprep.subr.mxu0 0.0
      %5910 = vmatpush2.msra.mxu0 0.0
      %5911 = vmatprep.subr.mxu0 0.0
      %5912 = vmatpush2.msra.mxu0 0.0
      %5913 = vmatprep.subr.mxu0 0.0
      %5914 = vmatpush2.msra.mxu0 0.0
      %5915 = vmatprep.subr.mxu0 0.0
      %5916 = vmatpush2.msra.mxu0 0.0
      %5917 = vmatprep.subr.mxu0 0.0
      %5918 = vmatpush2.msra.mxu0 0.0
      %5919 = vmatprep.subr.mxu0 0.0
      %5920 = vmatpush2.msra.mxu0 0.0
      %5921 = vmatprep.mubr.f32.mxu0 0.0
      %5922 = vmatmul.mubr.f32.gmra.mxu0 %v5818
      %v5923 = vpop.f32.mrf.mxu0
      %v5924 = vadd.f32 %v5855, %v5923
      %v5925 = vpop.f32.mrf.mxu0
      %5926 = vmatprep.mubr.f32.mxu0 0.0
      %5927 = vmatmul.mubr.f32.gmra.mxu0 %v5819
      %v5928 = vpop.f32.mrf.mxu0
      %v5929 = vadd.f32 %v5855, %v5928
      %v5930 = vpop.f32.mrf.mxu0
      %5931 = vmatprep.mubr.f32.mxu0 0.0
      %5932 = vmatmul.mubr.f32.gmra.mxu0 %v5820
      %v5933 = vpop.f32.mrf.mxu0
      %v5934 = vadd.f32 %v5855, %v5933
      %v5935 = vpop.f32.mrf.mxu0
      %5936 = vmatprep.mubr.f32.mxu0 0.0
      %5937 = vmatmul.mubr.f32.gmra.mxu0 %v5821
      %v5938 = vpop.f32.mrf.mxu0
      %v5939 = vadd.f32 %v5855, %v5938
      %v5940 = vpop.f32.mrf.mxu0
      %5941 = vmatprep.mubr.f32.mxu0 0.0
      %5942 = vmatmul.mubr.f32.gmra.mxu0 %v5822
      %v5943 = vpop.f32.mrf.mxu0
      %v5944 = vadd.f32 %v5855, %v5943
      %v5945 = vpop.f32.mrf.mxu0
      %5946 = vmatprep.mubr.f32.mxu0 0.0
      %5947 = vmatmul.mubr.f32.gmra.mxu0 %v5823
      %v5948 = vpop.f32.mrf.mxu0
      %v5949 = vadd.f32 %v5855, %v5948
      %v5950 = vpop.f32.mrf.mxu0
      %5951 = vmatprep.mubr.f32.mxu0 0.0
      %5952 = vmatmul.mubr.f32.gmra.mxu0 %v5824
      %v5953 = vpop.f32.mrf.mxu0
      %v5954 = vadd.f32 %v5855, %v5953
      %v5955 = vpop.f32.mrf.mxu0
      %5956 = vmatprep.mubr.f32.mxu0 0.0
      %5957 = vmatmul.mubr.f32.gmra.mxu0 %v5825
      %v5958 = vpop.f32.mrf.mxu0
      %v5959 = vadd.f32 %v5855, %v5958
      %v5960 = vpop.f32.mrf.mxu0
      %5961 = vmatprep.mubr.f32.mxu0 0.0
      %5962 = vmatmul.mubr.f32.gmra.mxu0 %v5826
      %v5963 = vpop.f32.mrf.mxu0
      %v5964 = vadd.f32 %v5855, %v5963
      %v5965 = vpop.f32.mrf.mxu0
      %5966 = vmatprep.mubr.f32.mxu0 0.0
      %5967 = vmatmul.mubr.f32.gmra.mxu0 %v5827
      %v5968 = vpop.f32.mrf.mxu0
      %v5969 = vadd.f32 %v5855, %v5968
      %v5970 = vpop.f32.mrf.mxu0
      %5971 = vmatprep.mubr.f32.mxu0 0.0
      %5972 = vmatmul.mubr.f32.gmra.mxu0 %v5828
      %v5973 = vpop.f32.mrf.mxu0
      %v5974 = vadd.f32 %v5855, %v5973
      %v5975 = vpop.f32.mrf.mxu0
      %5976 = vmatprep.mubr.f32.mxu0 0.0
      %5977 = vmatmul.mubr.f32.gmra.mxu0 %v5829
      %v5978 = vpop.f32.mrf.mxu0
      %v5979 = vadd.f32 %v5855, %v5978
      %v5980 = vpop.f32.mrf.mxu0
      %5981 = vmatprep.mubr.f32.mxu0 0.0
      %5982 = vmatmul.mubr.f32.gmra.mxu0 %v5830
      %v5983 = vpop.f32.mrf.mxu0
      %v5984 = vadd.f32 %v5855, %v5983
      %v5985 = vpop.f32.mrf.mxu0
      %5986 = vmatprep.mubr.f32.mxu0 0.0
      %5987 = vmatmul.mubr.f32.gmra.mxu0 %v5831
      %v5988 = vpop.f32.mrf.mxu0
      %v5989 = vadd.f32 %v5855, %v5988
      %v5990 = vpop.f32.mrf.mxu0
      %5991 = vmatprep.mubr.f32.mxu0 0.0
      %5992 = vmatmul.mubr.f32.gmra.mxu0 %v5832
      %v5993 = vpop.f32.mrf.mxu0
      %v5994 = vadd.f32 %v5855, %v5993
      %v5995 = vpop.f32.mrf.mxu0
      %5996 = vmatprep.mubr.f32.mxu0 0.0
      %5997 = vmatmul.mubr.f32.gmra.mxu0 %v5833
      %v5998 = vpop.f32.mrf.mxu0
      %v5999 = vadd.f32 %v5855, %v5998
      %v6000 = vpop.f32.mrf.mxu0
      %6001 = vdwg.mxu0
      %v6002 = vmax.f32 %v5924, 0.0
      %v6003 = vmax.f32 %v5929, 0.0
      %v6004 = vmax.f32 %v5934, 0.0
      %v6005 = vmax.f32 %v5939, 0.0
      %v6006 = vmax.f32 %v5944, 0.0
      %v6007 = vmax.f32 %v5949, 0.0
      %v6008 = vmax.f32 %v5954, 0.0
      %v6009 = vmax.f32 %v5959, 0.0
      %v6010 = vmax.f32 %v5964, 0.0
      %v6011 = vmax.f32 %v5969, 0.0
      %v6012 = vmax.f32 %v5974, 0.0
      %v6013 = vmax.f32 %v5979, 0.0
      %v6014 = vmax.f32 %v5984, 0.0
      %v6015 = vmax.f32 %v5989, 0.0
      %v6016 = vmax.f32 %v5994, 0.0
      %v6017 = vmax.f32 %v5999, 0.0
      %v6018 = vld [vmem:[%s10] sm:$0xff]
      %v6019 = vld [vmem:[%s10 + $0x8] sm:$0xff]
      %v6020 = vld [vmem:[%s10 + $0x10] sm:$0xff]
      %v6021 = vld [vmem:[%s10 + $0x18] sm:$0xff]
      %v6022 = vld [vmem:[%s10 + $0x20] sm:$0xff]
      %v6023 = vld [vmem:[%s10 + $0x28] sm:$0xff]
      %v6024 = vld [vmem:[%s10 + $0x30] sm:$0xff]
      %v6025 = vld [vmem:[%s10 + $0x38] sm:$0xff]
      %v6026 = vld [vmem:[%s10 + $0x40] sm:$0xff]
      %v6027 = vld [vmem:[%s10 + $0x48] sm:$0xff]
      %v6028 = vld [vmem:[%s10 + $0x50] sm:$0xff]
      %v6029 = vld [vmem:[%s10 + $0x58] sm:$0xff]
      %v6030 = vld [vmem:[%s10 + $0x60] sm:$0xff]
      %v6031 = vld [vmem:[%s10 + $0x68] sm:$0xff]
      %v6032 = vld [vmem:[%s10 + $0x70] sm:$0xff]
      %v6033 = vld [vmem:[%s10 + $0x78] sm:$0xff]
      %v6034 = vld [vmem:[%s11] sm:$0x1]
      %v6036 = vlaneseq
      %v6037 = vshrl.u32 %v6036, 7
      %v6038 = vsub.s32 0, %v6037
      %v6039 = vrot.slane %v6034, %v6038
      %6041 = vmatprep.subr.mxu0 0.0
      %6042 = vmatpush1.msra.mxu0 %v6033
      %6043 = vmatprep.subr.mxu0 0.0
      %6044 = vmatpush1.msra.mxu0 %v6032
      %6045 = vmatprep.subr.mxu0 0.0
      %6046 = vmatpush1.msra.mxu0 %v6031
      %6047 = vmatprep.subr.mxu0 0.0
      %6048 = vmatpush1.msra.mxu0 %v6030
      %6049 = vmatprep.subr.mxu0 0.0
      %6050 = vmatpush1.msra.mxu0 %v6029
      %6051 = vmatprep.subr.mxu0 0.0
      %6052 = vmatpush1.msra.mxu0 %v6028
      %6053 = vmatprep.subr.mxu0 0.0
      %6054 = vmatpush1.msra.mxu0 %v6027
      %6055 = vmatprep.subr.mxu0 0.0
      %6056 = vmatpush1.msra.mxu0 %v6026
      %6057 = vmatprep.subr.mxu0 0.0
      %6058 = vmatpush1.msra.mxu0 %v6025
      %6059 = vmatprep.subr.mxu0 0.0
      %6060 = vmatpush1.msra.mxu0 %v6024
      %6061 = vmatprep.subr.mxu0 0.0
      %6062 = vmatpush1.msra.mxu0 %v6023
      %6063 = vmatprep.subr.mxu0 0.0
      %6064 = vmatpush1.msra.mxu0 %v6022
      %6065 = vmatprep.subr.mxu0 0.0
      %6066 = vmatpush1.msra.mxu0 %v6021
      %6067 = vmatprep.subr.mxu0 0.0
      %6068 = vmatpush1.msra.mxu0 %v6020
      %6069 = vmatprep.subr.mxu0 0.0
      %6070 = vmatpush1.msra.mxu0 %v6019
      %6071 = vmatprep.subr.mxu0 0.0
      %6072 = vmatpush1.msra.mxu0 %v6018
      %6073 = vmatprep.subr.mxu0 0.0
      %6074 = vmatpush2.msra.mxu0 0.0
      %6075 = vmatprep.subr.mxu0 0.0
      %6076 = vmatpush2.msra.mxu0 0.0
      %6077 = vmatprep.subr.mxu0 0.0
      %6078 = vmatpush2.msra.mxu0 0.0
      %6079 = vmatprep.subr.mxu0 0.0
      %6080 = vmatpush2.msra.mxu0 0.0
      %6081 = vmatprep.subr.mxu0 0.0
      %6082 = vmatpush2.msra.mxu0 0.0
      %6083 = vmatprep.subr.mxu0 0.0
      %6084 = vmatpush2.msra.mxu0 0.0
      %6085 = vmatprep.subr.mxu0 0.0
      %6086 = vmatpush2.msra.mxu0 0.0
      %6087 = vmatprep.subr.mxu0 0.0
      %6088 = vmatpush2.msra.mxu0 0.0
      %6089 = vmatprep.subr.mxu0 0.0
      %6090 = vmatpush2.msra.mxu0 0.0
      %6091 = vmatprep.subr.mxu0 0.0
      %6092 = vmatpush2.msra.mxu0 0.0
      %6093 = vmatprep.subr.mxu0 0.0
      %6094 = vmatpush2.msra.mxu0 0.0
      %6095 = vmatprep.subr.mxu0 0.0
      %6096 = vmatpush2.msra.mxu0 0.0
      %6097 = vmatprep.subr.mxu0 0.0
      %6098 = vmatpush2.msra.mxu0 0.0
      %6099 = vmatprep.subr.mxu0 0.0
      %6100 = vmatpush2.msra.mxu0 0.0
      %6101 = vmatprep.subr.mxu0 0.0
      %6102 = vmatpush2.msra.mxu0 0.0
      %6103 = vmatprep.subr.mxu0 0.0
      %6104 = vmatpush2.msra.mxu0 0.0
      %6105 = vmatprep.mubr.f32.mxu0 0.0
      %6106 = vmatmul.mubr.f32.gmra.mxu0 %v6002
      %v6107 = vpop.f32.mrf.mxu0
      %v6108 = vadd.f32 %v6039, %v6107
      %v6109 = vpop.f32.mrf.mxu0
      %6110 = vmatprep.mubr.f32.mxu0 0.0
      %6111 = vmatmul.mubr.f32.gmra.mxu0 %v6003
      %v6112 = vpop.f32.mrf.mxu0
      %v6113 = vadd.f32 %v6039, %v6112
      %v6114 = vpop.f32.mrf.mxu0
      %6115 = vmatprep.mubr.f32.mxu0 0.0
      %6116 = vmatmul.mubr.f32.gmra.mxu0 %v6004
      %v6117 = vpop.f32.mrf.mxu0
      %v6118 = vadd.f32 %v6039, %v6117
      %v6119 = vpop.f32.mrf.mxu0
      %6120 = vmatprep.mubr.f32.mxu0 0.0
      %6121 = vmatmul.mubr.f32.gmra.mxu0 %v6005
      %v6122 = vpop.f32.mrf.mxu0
      %v6123 = vadd.f32 %v6039, %v6122
      %v6124 = vpop.f32.mrf.mxu0
      %6125 = vmatprep.mubr.f32.mxu0 0.0
      %6126 = vmatmul.mubr.f32.gmra.mxu0 %v6006
      %v6127 = vpop.f32.mrf.mxu0
      %v6128 = vadd.f32 %v6039, %v6127
      %v6129 = vpop.f32.mrf.mxu0
      %6130 = vmatprep.mubr.f32.mxu0 0.0
      %6131 = vmatmul.mubr.f32.gmra.mxu0 %v6007
      %v6132 = vpop.f32.mrf.mxu0
      %v6133 = vadd.f32 %v6039, %v6132
      %v6134 = vpop.f32.mrf.mxu0
      %6135 = vmatprep.mubr.f32.mxu0 0.0
      %6136 = vmatmul.mubr.f32.gmra.mxu0 %v6008
      %v6137 = vpop.f32.mrf.mxu0
      %v6138 = vadd.f32 %v6039, %v6137
      %v6139 = vpop.f32.mrf.mxu0
      %6140 = vmatprep.mubr.f32.mxu0 0.0
      %6141 = vmatmul.mubr.f32.gmra.mxu0 %v6009
      %v6142 = vpop.f32.mrf.mxu0
      %v6143 = vadd.f32 %v6039, %v6142
      %v6144 = vpop.f32.mrf.mxu0
      %6145 = vmatprep.mubr.f32.mxu0 0.0
      %6146 = vmatmul.mubr.f32.gmra.mxu0 %v6010
      %v6147 = vpop.f32.mrf.mxu0
      %v6148 = vadd.f32 %v6039, %v6147
      %v6149 = vpop.f32.mrf.mxu0
      %6150 = vmatprep.mubr.f32.mxu0 0.0
      %6151 = vmatmul.mubr.f32.gmra.mxu0 %v6011
      %v6152 = vpop.f32.mrf.mxu0
      %v6153 = vadd.f32 %v6039, %v6152
      %v6154 = vpop.f32.mrf.mxu0
      %6155 = vmatprep.mubr.f32.mxu0 0.0
      %6156 = vmatmul.mubr.f32.gmra.mxu0 %v6012
      %v6157 = vpop.f32.mrf.mxu0
      %v6158 = vadd.f32 %v6039, %v6157
      %v6159 = vpop.f32.mrf.mxu0
      %6160 = vmatprep.mubr.f32.mxu0 0.0
      %6161 = vmatmul.mubr.f32.gmra.mxu0 %v6013
      %v6162 = vpop.f32.mrf.mxu0
      %v6163 = vadd.f32 %v6039, %v6162
      %v6164 = vpop.f32.mrf.mxu0
      %6165 = vmatprep.mubr.f32.mxu0 0.0
      %6166 = vmatmul.mubr.f32.gmra.mxu0 %v6014
      %v6167 = vpop.f32.mrf.mxu0
      %v6168 = vadd.f32 %v6039, %v6167
      %v6169 = vpop.f32.mrf.mxu0
      %6170 = vmatprep.mubr.f32.mxu0 0.0
      %6171 = vmatmul.mubr.f32.gmra.mxu0 %v6015
      %v6172 = vpop.f32.mrf.mxu0
      %v6173 = vadd.f32 %v6039, %v6172
      %v6174 = vpop.f32.mrf.mxu0
      %6175 = vmatprep.mubr.f32.mxu0 0.0
      %6176 = vmatmul.mubr.f32.gmra.mxu0 %v6016
      %v6177 = vpop.f32.mrf.mxu0
      %v6178 = vadd.f32 %v6039, %v6177
      %v6179 = vpop.f32.mrf.mxu0
      %6180 = vmatprep.mubr.f32.mxu0 0.0
      %6181 = vmatmul.mubr.f32.gmra.mxu0 %v6017
      %v6182 = vpop.f32.mrf.mxu0
      %v6183 = vadd.f32 %v6039, %v6182
      %v6184 = vpop.f32.mrf.mxu0
      %6185 = vdwg.mxu0
      %6186 = vst [vmem:[%s437] sm:$0xff] %v6108
      %6187 = vst [vmem:[%s437 + $0x8] sm:$0xff] %v6113
      %6188 = vst [vmem:[%s437 + $0x10] sm:$0xff] %v6118
      %6189 = vst [vmem:[%s437 + $0x18] sm:$0xff] %v6123
      %6190 = vst [vmem:[%s437 + $0x20] sm:$0xff] %v6128
      %6191 = vst [vmem:[%s437 + $0x28] sm:$0xff] %v6133
      %6192 = vst [vmem:[%s437 + $0x30] sm:$0xff] %v6138
      %6193 = vst [vmem:[%s437 + $0x38] sm:$0xff] %v6143
      %6194 = vst [vmem:[%s437 + $0x40] sm:$0xff] %v6148
      %6195 = vst [vmem:[%s437 + $0x48] sm:$0xff] %v6153
      %6196 = vst [vmem:[%s437 + $0x50] sm:$0xff] %v6158
      %6197 = vst [vmem:[%s437 + $0x58] sm:$0xff] %v6163
      %6198 = vst [vmem:[%s437 + $0x60] sm:$0xff] %v6168
      %6199 = vst [vmem:[%s437 + $0x68] sm:$0xff] %v6173
      %6200 = vst [vmem:[%s437 + $0x70] sm:$0xff] %v6178
      %6201 = vst [vmem:[%s437 + $0x78] sm:$0xff] %v6183
      %s6202 = smul.u32 16, %s23
      %p6203 = scmp.lt.s32.totalorder %s6202, 31
      %s6204 = scalar_select %p6203, %s6202, 31
      %s6205 = smul.addr %s6204, 8
      %s6206 = scalar_lea.vmem %s12, %s6205
      // Predicated region
      $region69: #{net_forward.1} parent=67 // pred_check
        %p6207 = pneg %p303
      $region70: #{net_forward.1} parent=67 // pred_check_branch
        %6209 = sbr.rel (%p6207) target = $region72
      $region71: #{net_forward.1} parent=67 // pred_region
        %s6210 = smul.u32 16, %s23
      $region72: #{net_forward.1} parent=67 // pred_fallthru
        _
    $region68: #{net_forward.1} parent=5 // pred_fallthru
      _
    %p6211 = scmp.le.s32.totalorder 2, %s18
    // Predicated region
    $region73: #{net_forward.1} parent=5 // pred_check
      %p6212 = pneg %p6211
    $region74: #{net_forward.1} parent=5 // pred_check_branch
      %6214 = sbr.rel (%p6212) target = $region76
    $region75: #{net_forward.1} parent=5 // pred_region
      %s6215 = ssub.s32 %s18, 2
      // Predicated region
      $region77: #{net_forward.1} parent=75 // pred_check
        %p6216 = pneg %p309
      $region78: #{net_forward.1} parent=75 // pred_check_branch
        %6218 = sbr.rel (%p6216) target = $region80
      $region79: #{net_forward.1} parent=75 // pred_region
        %s6219 = smul.u32 16, %s24
        %p6220 = scmp.lt.s32.totalorder %s6219, 31
        %s6221 = scalar_select %p6220, %s6219, 31
        %s6222 = smul.addr %s6221, 8
        %s6223 = scalar_lea.vmem %s12, %s6222
      $region80: #{net_forward.1} parent=75 // pred_fallthru
        _
    $region76: #{net_forward.1} parent=5 // pred_fallthru
      _
  $region6: #{net_forward.1} parent=0 // loop_footer
    %s22 = sadd.s32 1, %s18
  $region7: #{net_forward.1} parent=0 // loop_footer_branch
    %17 = sbr.rel target = $region3
  $region8: #{net_forward.1} parent=0 // loop_exit
    _

</llo_original>
